<compile_context>
chip_gen: v5e
topology: v5e:2x2
jax: 0.10.0
libtpu: 0.0.40
codegen_flags: <defaults>
</compile_context>

<pallas_src>
import functools

import jax
import jax.numpy as jnp
from jax.experimental import pallas as pl
from jax.experimental.pallas import tpu as pltpu


def _to_channel_major(x):
    """[th, C, W] -> [C, th, W] (lane dim W unchanged)."""
    es = getattr(pltpu, "einshape", None)
    if es is not None:
        return es("hcw->chw", x)
    return jnp.transpose(x, (1, 0, 2))


def _chunk_bounds(c_gwc, c_cat, cpg, target):
    """Static chunk boundaries over the fused (gwc ++ concat) channel dim.

    Chunks are aligned to whole gwc groups; the concat channels ride along
    with the final chunk, so small problems stay a single fused warp matmul.
    """
    step = max(cpg, (target // cpg) * cpg)
    bounds = list(range(0, c_gwc, step))
    bounds.append(c_gwc + c_cat)
    return list(zip(bounds[:-1], bounds[1:]))


# ----------------------------------------------------------------------------
# Pallas kernel: one (batch, h-tile, disparity) step.
# ----------------------------------------------------------------------------
def _cost_volume_kernel(xg_ref, y_ref, xc_ref, disp_ref, out_ref, *,
                        num_groups, chunk_target):
    """
    xg_ref  : (1, th, Cg, W)     left gwc features, H-major (input dtype)
    y_ref   : (1, th, Cg+Cc, W)  right gwc++concat features (vertically
                                 resampled), H-major, bf16
    xc_ref  : (1, Cc, th, W)     left concat features, NCHW block
    disp_ref: (1, 1, th, W)      disparity samples for this (b, d, h-tile)
    out_ref : (1, G + 2*Cc, 1, th, W)
    """
    f32 = jnp.float32
    dt = out_ref.dtype

    Cg = xg_ref.shape[2]
    Cc = xc_ref.shape[1]
    th, W = disp_ref.shape[2], disp_ref.shape[3]
    G = num_groups
    cpg = Cg // G

    disp = disp_ref[0, 0].astype(f32)                                 # [th, W]

    # grid_sample(align_corners=False) source x pixel coordinate per (h, w_out).
    w_out = jax.lax.broadcasted_iota(jnp.int32, (th, W), 1).astype(f32)
    pix_x = (w_out - disp) * (W / (W - 1.0)) - 0.5

    # Bilinear "hat" matrix Mx[h, w_out, w_in]: max(0, 1 - |w_in - pix_x|)
    # reproduces the two-tap bilinear weights exactly; taps outside [0, W-1]
    # have no column -> padding_mode='zeros' for free.  Built in f32 (v5e VPU
    # has no bf16 math), cast once to bf16 to feed the MXU.
    w_in = jax.lax.broadcasted_iota(jnp.int32, (1, 1, W), 2).astype(f32)
    mx = jnp.maximum(0.0, 1.0 - jnp.abs(w_in - pix_x[:, :, None]))    # [th, W, W]
    mx_b = mx.astype(jnp.bfloat16)
    # TODO(synk): for v7x-scale W (>=512) add a w_out grid axis so the
    # quadratic [th, W, W] interp matrix stops limiting the h-tile size.

    # Left-feature validity (x_warped[:, mw < disp] = 0); the mask and 1/cpg
    # commute with the channel-group sum -> fold into one per-group multiply.
    keep = (w_out >= disp).astype(f32)                                # [th, W]
    gscale = keep * (1.0 / cpg)

    # Concat volume, left half: masked copy of the left concat features.
    xc = xc_ref[0].astype(f32)                                        # [Cc, th, W]
    out_ref[0, G:G + Cc, 0, :, :] = (xc * keep[None, :, :]).astype(dt)

    # Warp + reduce the fused (gwc ++ concat) channels in static, group-aligned
    # chunks so f32 temporaries stay ~chunk*th*W independent of the real Cg.
    for c0, c1 in _chunk_bounds(Cg, Cc, cpg, chunk_target):
        # Horizontal warp on the MXU, batched over the h rows of this tile:
        #   y_w[h, c, v] = sum_w y[h, c, w] * Mx[h, v, w]   (bf16 x bf16 -> f32)
        y_chunk = y_ref[0, :, c0:c1, :]                               # bf16
        y_w = jnp.einsum('hcw,hvw->hcv', y_chunk, mx_b,
                         preferred_element_type=f32)                  # [th, c1-c0, W]

        # Group-wise correlation for the gwc channels of this chunk.
        n_gwc = min(c1, Cg) - c0
        if n_gwc > 0:
            xg_chunk = xg_ref[0, :, c0:c0 + n_gwc, :].astype(f32)
            prod = xg_chunk * y_w[:, :n_gwc, :]                       # [th, n_gwc, W]
            # NOTE: per-group slice+sum+store kept (robust Mosaic lowering even
            # when cpg is not a multiple of 8); mask/scale applied post-sum.
            for g in range(c0 // cpg, (c0 + n_gwc) // cpg):
                rel = g * cpg - c0
                grp = prod[:, rel:rel + cpg, :].sum(axis=1) * gscale  # [th, W]
                out_ref[0, g, 0, :, :] = grp.astype(dt)

        # Concat volume, right half: warped right concat features.
        n_cat = c1 - max(c0, Cg)
        if n_cat > 0:
            cat0 = max(c0, Cg) - Cg
            yc_w = y_w[:, (c1 - c0 - n_cat):, :]                      # [th, n_cat, W]
            out_ref[0, G + Cc + cat0:G + Cc + cat0 + n_cat, 0, :, :] = (
                _to_channel_major(yc_w).astype(dt))


# ----------------------------------------------------------------------------
# Host-side helpers
# ----------------------------------------------------------------------------
def _make_y_interp_matrix(H, dtype=jnp.float32):
    """Vertical bilinear weights of grid_sample(align_corners=False, zeros pad)."""
    h = jnp.arange(H, dtype=jnp.float32)
    pix_y = h * (H / (H - 1.0)) - 0.5
    k = jnp.arange(H, dtype=jnp.float32)
    m = jnp.maximum(0.0, 1.0 - jnp.abs(k[None, :] - pix_y[:, None]))  # [H_out, H_in]
    return m.astype(dtype)


def _tpu_vmem_capacity():
    try:
        return int(pltpu.get_tpu_info().vmem_capacity_bytes)
    except Exception:
        return 64 << 20          # conservative default (v7x per-core VMEM)


def _pick_tile_h(H, W, Cg, Cc, ctot, in_isz, out_isz, disp_isz, max_chunk,
                 feat_buffers, budget_bytes):
    """Largest h-tile (full H, or a divisor of H that is a multiple of 8) that fits."""
    def footprint(th):
        feat = th * W * (Cg * in_isz + (Cg + Cc) * 2 + Cc * in_isz)   # feature blocks
        rest = th * W * (disp_isz + ctot * out_isz)                   # disp + out blocks
        interp = th * W * W * 6                                       # Mx f32 + bf16 copy
        temps = th * W * (14 * max_chunk + 40)                        # per-chunk temporaries
        return feat_buffers * feat + 2 * rest + interp + temps

    cands = [t for t in (H, 1024, 512, 256, 128, 64, 32, 16, 8)
             if t == H or (t < H and H % t == 0)]
    for th in cands:
        if footprint(th) <= budget_bytes:
            return th, footprint(th)
    th = cands[-1]
    return th, footprint(th)


def _build_cost_volume_call(bs, Cg, Cc, H, W, ndisp, num_groups, out_dtype,
                            in_dtype, disp_dtype, chunk_target,
                            single_buffer_invariant):
    ctot = num_groups + 2 * Cc
    cpg = Cg // num_groups
    bounds = _chunk_bounds(Cg, Cc, cpg, chunk_target)
    max_chunk = max(c1 - c0 for c0, c1 in bounds)

    cap = _tpu_vmem_capacity()
    budget = int(0.55 * cap)                      # generation-aware VMEM budget
    feat_buffers = 1 if single_buffer_invariant else 2
    th, step_bytes = _pick_tile_h(H, W, Cg, Cc, ctot,
                                  jnp.dtype(in_dtype).itemsize,
                                  jnp.dtype(out_dtype).itemsize,
                                  jnp.dtype(disp_dtype).itemsize,
                                  max_chunk, feat_buffers, budget)
    nh = H // th

    # The feature inputs are disparity-invariant; with d innermost they keep
    # the same block index for ndisp consecutive steps, so single-buffering
    # halves their VMEM footprint and only exposes one DMA per h-tile boundary.
    feat_kw = dict(pipeline_mode=pl.Buffered(1)) if single_buffer_invariant else {}

    in_specs = [
        pl.BlockSpec((1, th, Cg, W), lambda b, h, d: (b, h, 0, 0), **feat_kw),       # left gwc (H-major)
        pl.BlockSpec((1, th, Cg + Cc, W), lambda b, h, d: (b, h, 0, 0), **feat_kw),  # right gwc++concat (bf16, H-major)
        pl.BlockSpec((1, Cc, th, W), lambda b, h, d: (b, 0, h, 0), **feat_kw),       # left concat (NCHW)
        pl.BlockSpec((1, 1, th, W), lambda b, h, d: (b, d, h, 0)),                   # disparity samples
    ]
    out_specs = pl.BlockSpec((1, ctot, 1, th, W), lambda b, h, d: (b, 0, d, h, 0))

    kernel = functools.partial(_cost_volume_kernel, num_groups=num_groups,
                               chunk_target=chunk_target)

    vmem_limit = int(min(0.9 * cap, max(32 << 20, step_bytes + (8 << 20))))
    return pl.pallas_call(
        kernel,
        out_shape=jax.ShapeDtypeStruct((bs, ctot, ndisp, H, W), out_dtype),
        # Disparity innermost: d-invariant feature blocks keep the same block
        # index across the whole d loop, so Pallas does not re-fetch them.
        grid=(bs, nh, ndisp),
        in_specs=in_specs,
        out_specs=out_specs,
        compiler_params=pltpu.CompilerParams(
            dimension_semantics=("parallel", "parallel", "parallel"),
            vmem_limit_bytes=vmem_limit),
    )


# ----------------------------------------------------------------------------
# Wrapper: mirrors GetCostVolume.forward (NCHW features)
# ----------------------------------------------------------------------------
def get_cost_volume(features_left, features_right, disp_range_samples, ndisp,
                    num_groups, out_dtype=None, chunk_target=128):
    xg = features_left['gwc_feature']
    yg = features_right['gwc_feature']
    xc = features_left['concat_feature']
    yc = features_right['concat_feature']

    bs, Cg, H, W = xg.shape
    Cc = xc.shape[1]
    assert Cg % num_groups == 0
    f32 = jnp.float32
    # On HBM-write-bound chips (v5e/v6e), pass out_dtype=jnp.bfloat16 to halve
    # the volume's output traffic; default preserves the module's dtype.
    out_dtype = xg.dtype if out_dtype is None else out_dtype

    # Disparity-independent vertical (height) bilinear resample of the right
    # features: one XLA matmul over the fused (gwc ++ concat) channel dim,
    # emitted H-major [B, H, Cg+Cc, W] and cast to bf16 so the in-kernel
    # horizontal warp is a single bf16 batched MXU matmul, no transposes.
    my = _make_y_interp_matrix(H, f32)                                   # [H_out, H_in]
    y_all = jnp.concatenate([yg, yc], axis=1).astype(f32)                # [B, Cg+Cc, H, W]
    y_all_h = jnp.einsum('hk,bckw->bhcw', my, y_all,
                         preferred_element_type=f32,
                         precision=jax.lax.Precision.HIGHEST).astype(jnp.bfloat16)
    # Left gwc features H-major as well (they multiply the warped right feats).
    xg_h = jnp.transpose(xg, (0, 2, 1, 3))                               # [B, H, Cg, W]

    args = (xg_h, y_all_h, xc, disp_range_samples)
    build = functools.partial(
        _build_cost_volume_call, bs, Cg, Cc, H, W, ndisp, num_groups,
        out_dtype, xg.dtype, disp_range_samples.dtype, chunk_target)
    try:
        return build(single_buffer_invariant=True)(*args)
    except Exception:
        # Runtime may reject pl.Buffered(1); fall back to default double
        # buffering (same kernel; tile size re-derived for the larger footprint).
        return build(single_buffer_invariant=False)(*args)


# ----------------------------------------------------------------------------
# Pure-JAX reference (direct gather re-implementation of the PyTorch semantics)
# ----------------------------------------------------------------------------
def _ref_cost_volume(xg, yg, xc, yc, disp, num_groups):
    bs, Cg, H, W = xg.shape
    Cc = xc.shape[1]
    f32 = jnp.float32
    mh = jnp.arange(H, dtype=f32)[None, None, :, None]
    mw = jnp.arange(W, dtype=f32)[None, None, None, :]
    pix_x = (mw - disp) * (W / (W - 1.0)) - 0.5
    pix_y = jnp.broadcast_to(mh * (H / (H - 1.0)) - 0.5, pix_x.shape)

    def grid_sample(y):
        C = y.shape[1]
        x0 = jnp.floor(pix_x); x1 = x0 + 1
        y0 = jnp.floor(pix_y); y1 = y0 + 1
        wx1 = pix_x - x0; wx0 = 1.0 - wx1
        wy1 = pix_y - y0; wy0 = 1.0 - wy1

        def corner(yi, xi, wgt):
            valid = ((yi >= 0) & (yi <= H - 1) & (xi >= 0) & (xi <= W - 1)).astype(f32)
            yi_c = jnp.clip(yi, 0, H - 1).astype(jnp.int32)
            xi_c = jnp.clip(xi, 0, W - 1).astype(jnp.int32)
            b_idx = jnp.arange(bs)[:, None, None, None, None]
            c_idx = jnp.arange(C)[None, :, None, None, None]
            vals = y[b_idx, c_idx, yi_c[:, None], xi_c[:, None]]
            return vals * (wgt * valid)[:, None]

        return (corner(y0, x0, wy0 * wx0) + corner(y0, x1, wy0 * wx1)
                + corner(y1, x0, wy1 * wx0) + corner(y1, x1, wy1 * wx1))

    yg_w = grid_sample(yg)
    yc_w = grid_sample(yc)
    keep = (mw >= disp).astype(f32)[:, None]
    xg_m = xg[:, :, None] * keep
    xc_m = xc[:, :, None] * keep
    cpg = Cg // num_groups
    ndisp = disp.shape[1]
    gwc = (xg_m * yg_w).reshape(bs, num_groups, cpg, ndisp, H, W).mean(axis=2)
    return jnp.concatenate([gwc, xc_m, yc_w], axis=1)


if __name__ == "__main__":
    bs, H, W = 2, 16, 16
    Cg, Cc = 8, 4            # gwc_feature / concat_feature channels
    ndisp, num_groups = 8, 4

    key = jax.random.PRNGKey(0)
    kxg, kyg, kxc, kyc, kd = jax.random.split(key, 5)
    features_left = {
        'gwc_feature': jax.random.normal(kxg, (bs, Cg, H, W), jnp.float32),
        'concat_feature': jax.random.normal(kxc, (bs, Cc, H, W), jnp.float32),
    }
    features_right = {
        'gwc_feature': jax.random.normal(kyg, (bs, Cg, H, W), jnp.float32),
        'concat_feature': jax.random.normal(kyc, (bs, Cc, H, W), jnp.float32),
    }
    disp_range_samples = jax.random.uniform(
        kd, (bs, ndisp, H, W), jnp.float32, 0.0, 0.6 * W)

    vol = get_cost_volume(features_left, features_right, disp_range_samples,
                          ndisp, num_groups)
    vol = jax.block_until_ready(vol)

    ref = _ref_cost_volume(features_left['gwc_feature'], features_right['gwc_feature'],
                           features_left['concat_feature'], features_right['concat_feature'],
                           disp_range_samples, num_groups)
    assert vol.shape == (bs, num_groups + 2 * Cc, ndisp, H, W)
    # The warp matmuls run with bf16 operands (f32 accumulation), so compare
    # against the f32 gather reference with a bf16-level tolerance.
    err = float(jnp.max(jnp.abs(vol.astype(jnp.float32) - ref)))
    assert jnp.allclose(vol.astype(jnp.float32), ref, atol=5e-2, rtol=5e-2), err
    print("KERNEL_OK")
</pallas_src>

<mosaic_0001>
module attributes {stable_mosaic.version = 11 : i64} {
  func.func @_cost_volume_kernel(%arg0: i32, %arg1: i32, %arg2: i32, %arg3: memref<1x16x8x16xf32, #tpu.memory_space<vmem>>, %arg4: memref<1x16x12x16xbf16, #tpu.memory_space<vmem>>, %arg5: memref<1x4x16x16xf32, #tpu.memory_space<vmem>>, %arg6: memref<1x1x16x16xf32, #tpu.memory_space<vmem>>, %arg7: memref<1x12x1x16x16xf32, #tpu.memory_space<vmem>>) attributes {dimension_semantics = [#tpu.dimension_semantics<parallel>, #tpu.dimension_semantics<parallel>, #tpu.dimension_semantics<parallel>], iteration_bounds = array<i64: 2, 1, 8>, scalar_prefetch = 0 : i64, scratch_operands = 0 : i64, tpu.core_type = #tpu.core_type<tc>, window_params = [{pipeline_mode = #tpu.pipeline_mode<synchronous>, transform_indices = @transform_0, window_bounds = array<i64: 1, 16, 8, 16>}, {pipeline_mode = #tpu.pipeline_mode<synchronous>, transform_indices = @transform_1, window_bounds = array<i64: 1, 16, 12, 16>}, {pipeline_mode = #tpu.pipeline_mode<synchronous>, transform_indices = @transform_2, window_bounds = array<i64: 1, 4, 16, 16>}, {transform_indices = @transform_3, window_bounds = array<i64: 1, 1, 16, 16>}, {transform_indices = @transform_4, window_bounds = array<i64: 1, 12, 1, 16, 16>}]} {
    %c0 = arith.constant 0 : index
    %c0_0 = arith.constant 0 : index
    %c0_1 = arith.constant 0 : index
    %c0_2 = arith.constant 0 : index
    %0 = vector.load %arg6[%c0, %c0_0, %c0_1, %c0_2] : memref<1x1x16x16xf32, #tpu.memory_space<vmem>>, vector<1x1x16x16xf32>
    %1 = vector.shape_cast %0 : vector<1x1x16x16xf32> to vector<16x16xf32>
    %2 = tpu.iota {dimensions = array<i32: 1>} : vector<16x16xi32>
    %3 = arith.sitofp %2 : vector<16x16xi32> to vector<16x16xf32>
    %4 = arith.subf %3, %1 : vector<16x16xf32>
    %cst = arith.constant 1.06666672 : f32
    %5 = vector.broadcast %cst : f32 to vector<16x16xf32>
    %6 = arith.mulf %4, %5 : vector<16x16xf32>
    %cst_3 = arith.constant 5.000000e-01 : f32
    %7 = vector.broadcast %cst_3 : f32 to vector<16x16xf32>
    %8 = arith.subf %6, %7 : vector<16x16xf32>
    %9 = tpu.iota {dimensions = array<i32: 2>} : vector<1x1x16xi32>
    %10 = arith.sitofp %9 : vector<1x1x16xi32> to vector<1x1x16xf32>
    %11 = vector.shape_cast %8 : vector<16x16xf32> to vector<16x16x1xf32>
    %12 = vector.broadcast %10 : vector<1x1x16xf32> to vector<16x16x16xf32>
    %13 = vector.broadcast %11 : vector<16x16x1xf32> to vector<16x16x16xf32>
    %14 = arith.subf %12, %13 : vector<16x16x16xf32>
    %15 = math.absf %14 : vector<16x16x16xf32>
    %cst_4 = arith.constant 1.000000e+00 : f32
    %16 = vector.broadcast %cst_4 : f32 to vector<16x16x16xf32>
    %17 = arith.subf %16, %15 : vector<16x16x16xf32>
    %cst_5 = arith.constant 0.000000e+00 : f32
    %18 = vector.broadcast %cst_5 : f32 to vector<16x16x16xf32>
    %19 = arith.maximumf %18, %17 : vector<16x16x16xf32>
    %20 = arith.truncf %19 : vector<16x16x16xf32> to vector<16x16x16xbf16>
    %21 = arith.cmpf oge, %3, %1 : vector<16x16xf32>
    %22 = arith.extui %21 : vector<16x16xi1> to vector<16x16xi32>
    %23 = arith.sitofp %22 : vector<16x16xi32> to vector<16x16xf32>
    %cst_6 = arith.constant 5.000000e-01 : f32
    %24 = vector.broadcast %cst_6 : f32 to vector<16x16xf32>
    %25 = arith.mulf %23, %24 : vector<16x16xf32>
    %c0_7 = arith.constant 0 : index
    %c0_8 = arith.constant 0 : index
    %c0_9 = arith.constant 0 : index
    %c0_10 = arith.constant 0 : index
    %26 = vector.load %arg5[%c0_7, %c0_8, %c0_9, %c0_10] : memref<1x4x16x16xf32, #tpu.memory_space<vmem>>, vector<1x4x16x16xf32>
    %27 = vector.shape_cast %26 : vector<1x4x16x16xf32> to vector<4x16x16xf32>
    %28 = vector.shape_cast %23 : vector<16x16xf32> to vector<1x16x16xf32>
    %29 = vector.broadcast %28 : vector<1x16x16xf32> to vector<4x16x16xf32>
    %30 = arith.mulf %27, %29 : vector<4x16x16xf32>
    %c0_11 = arith.constant 0 : index
    %c4 = arith.constant 4 : index
    %c0_12 = arith.constant 0 : index
    %c0_13 = arith.constant 0 : index
    %c0_14 = arith.constant 0 : index
    %31 = vector.load %arg7[%c0_11, %c4, %c0_12, %c0_13, %c0_14] : memref<1x12x1x16x16xf32, #tpu.memory_space<vmem>>, vector<1x4x1x16x16xf32>
    %32 = vector.shape_cast %31 : vector<1x4x1x16x16xf32> to vector<4x16x16xf32>
    %33 = vector.shape_cast %30 : vector<4x16x16xf32> to vector<1x4x1x16x16xf32>
    tpu.vector_store %arg7[%c0_11, %c4, %c0_12, %c0_13, %c0_14], %33 {strides = array<i32>} : memref<1x12x1x16x16xf32, #tpu.memory_space<vmem>>, vector<1x4x1x16x16xf32>,
    %c0_15 = arith.constant 0 : index
    %c0_16 = arith.constant 0 : index
    %c0_17 = arith.constant 0 : index
    %c0_18 = arith.constant 0 : index
    %34 = vector.load %arg4[%c0_15, %c0_16, %c0_17, %c0_18] : memref<1x16x12x16xbf16, #tpu.memory_space<vmem>>, vector<1x16x12x16xbf16>
    %35 = vector.shape_cast %34 : vector<1x16x12x16xbf16> to vector<16x12x16xbf16>
    "tpu.trace_start"() <{level = 10 : i32, message = "hcw,hvw->hcv"}> : () -> ()
    %cst_19 = arith.constant dense<0.000000e+00> : vector<16x12x16xf32>
    %36 = tpu.matmul %35, %20, %cst_19 {dimension_numbers = #tpu.dot_dimension_numbers<[2], [2], [1], [1], [0, 0, 0, 1, 1, 1], [0], [0]>} : vector<16x12x16xbf16>, vector<16x16x16xbf16>, vector<16x12x16xf32> -> vector<16x12x16xf32>
    "tpu.trace_stop"() : () -> ()
    %c0_20 = arith.constant 0 : index
    %c0_21 = arith.constant 0 : index
    %c0_22 = arith.constant 0 : index
    %c0_23 = arith.constant 0 : index
    %37 = vector.load %arg3[%c0_20, %c0_21, %c0_22, %c0_23] : memref<1x16x8x16xf32, #tpu.memory_space<vmem>>, vector<1x16x8x16xf32>
    %38 = vector.shape_cast %37 : vector<1x16x8x16xf32> to vector<16x8x16xf32>
    %39 = vector.extract_strided_slice %36 {offsets = [0, 0, 0], sizes = [16, 8, 16], strides = [1, 1, 1]} : vector<16x12x16xf32> to vector<16x8x16xf32>
    %40 = arith.mulf %38, %39 : vector<16x8x16xf32>
    %41 = vector.extract_strided_slice %40 {offsets = [0, 0, 0], sizes = [16, 2, 16], strides = [1, 1, 1]} : vector<16x8x16xf32> to vector<16x2x16xf32>
    %cst_24 = arith.constant dense<0.000000e+00> : vector<16x16xf32>
    %42 = vector.multi_reduction <add>, %41, %cst_24 [1] : vector<16x2x16xf32> to vector<16x16xf32>
    %43 = arith.mulf %42, %25 : vector<16x16xf32>
    %c0_25 = arith.constant 0 : index
    %c0_26 = arith.constant 0 : index
    %c0_27 = arith.constant 0 : index
    %c0_28 = arith.constant 0 : index
    %c0_29 = arith.constant 0 : index
    %44 = vector.load %arg7[%c0_25, %c0_26, %c0_27, %c0_28, %c0_29] : memref<1x12x1x16x16xf32, #tpu.memory_space<vmem>>, vector<1x1x1x16x16xf32>
    %45 = vector.shape_cast %44 : vector<1x1x1x16x16xf32> to vector<16x16xf32>
    %46 = vector.shape_cast %43 : vector<16x16xf32> to vector<1x1x1x16x16xf32>
    tpu.vector_store %arg7[%c0_25, %c0_26, %c0_27, %c0_28, %c0_29], %46 {strides = array<i32>} : memref<1x12x1x16x16xf32, #tpu.memory_space<vmem>>, vector<1x1x1x16x16xf32>,
    %47 = vector.extract_strided_slice %40 {offsets = [0, 2, 0], sizes = [16, 2, 16], strides = [1, 1, 1]} : vector<16x8x16xf32> to vector<16x2x16xf32>
    %cst_30 = arith.constant dense<0.000000e+00> : vector<16x16xf32>
    %48 = vector.multi_reduction <add>, %47, %cst_30 [1] : vector<16x2x16xf32> to vector<16x16xf32>
    %49 = arith.mulf %48, %25 : vector<16x16xf32>
    %c0_31 = arith.constant 0 : index
    %c1 = arith.constant 1 : index
    %c0_32 = arith.constant 0 : index
    %c0_33 = arith.constant 0 : index
    %c0_34 = arith.constant 0 : index
    %50 = vector.load %arg7[%c0_31, %c1, %c0_32, %c0_33, %c0_34] : memref<1x12x1x16x16xf32, #tpu.memory_space<vmem>>, vector<1x1x1x16x16xf32>
    %51 = vector.shape_cast %50 : vector<1x1x1x16x16xf32> to vector<16x16xf32>
    %52 = vector.shape_cast %49 : vector<16x16xf32> to vector<1x1x1x16x16xf32>
    tpu.vector_store %arg7[%c0_31, %c1, %c0_32, %c0_33, %c0_34], %52 {strides = array<i32>} : memref<1x12x1x16x16xf32, #tpu.memory_space<vmem>>, vector<1x1x1x16x16xf32>,
    %53 = vector.extract_strided_slice %40 {offsets = [0, 4, 0], sizes = [16, 2, 16], strides = [1, 1, 1]} : vector<16x8x16xf32> to vector<16x2x16xf32>
    %cst_35 = arith.constant dense<0.000000e+00> : vector<16x16xf32>
    %54 = vector.multi_reduction <add>, %53, %cst_35 [1] : vector<16x2x16xf32> to vector<16x16xf32>
    %55 = arith.mulf %54, %25 : vector<16x16xf32>
    %c0_36 = arith.constant 0 : index
    %c2 = arith.constant 2 : index
    %c0_37 = arith.constant 0 : index
    %c0_38 = arith.constant 0 : index
    %c0_39 = arith.constant 0 : index
    %56 = vector.load %arg7[%c0_36, %c2, %c0_37, %c0_38, %c0_39] : memref<1x12x1x16x16xf32, #tpu.memory_space<vmem>>, vector<1x1x1x16x16xf32>
    %57 = vector.shape_cast %56 : vector<1x1x1x16x16xf32> to vector<16x16xf32>
    %58 = vector.shape_cast %55 : vector<16x16xf32> to vector<1x1x1x16x16xf32>
    tpu.vector_store %arg7[%c0_36, %c2, %c0_37, %c0_38, %c0_39], %58 {strides = array<i32>} : memref<1x12x1x16x16xf32, #tpu.memory_space<vmem>>, vector<1x1x1x16x16xf32>,
    %59 = vector.extract_strided_slice %40 {offsets = [0, 6, 0], sizes = [16, 2, 16], strides = [1, 1, 1]} : vector<16x8x16xf32> to vector<16x2x16xf32>
    %cst_40 = arith.constant dense<0.000000e+00> : vector<16x16xf32>
    %60 = vector.multi_reduction <add>, %59, %cst_40 [1] : vector<16x2x16xf32> to vector<16x16xf32>
    %61 = arith.mulf %60, %25 : vector<16x16xf32>
    %c0_41 = arith.constant 0 : index
    %c3 = arith.constant 3 : index
    %c0_42 = arith.constant 0 : index
    %c0_43 = arith.constant 0 : index
    %c0_44 = arith.constant 0 : index
    %62 = vector.load %arg7[%c0_41, %c3, %c0_42, %c0_43, %c0_44] : memref<1x12x1x16x16xf32, #tpu.memory_space<vmem>>, vector<1x1x1x16x16xf32>
    %63 = vector.shape_cast %62 : vector<1x1x1x16x16xf32> to vector<16x16xf32>
    %64 = vector.shape_cast %61 : vector<16x16xf32> to vector<1x1x1x16x16xf32>
    tpu.vector_store %arg7[%c0_41, %c3, %c0_42, %c0_43, %c0_44], %64 {strides = array<i32>} : memref<1x12x1x16x16xf32, #tpu.memory_space<vmem>>, vector<1x1x1x16x16xf32>,
    %65 = vector.extract_strided_slice %36 {offsets = [0, 8, 0], sizes = [16, 4, 16], strides = [1, 1, 1]} : vector<16x12x16xf32> to vector<16x4x16xf32>
    %66 = tpu.transpose %65, [1, 0, 2] : vector<16x4x16xf32> -> vector<4x16x16xf32>
    %c0_45 = arith.constant 0 : index
    %c8 = arith.constant 8 : index
    %c0_46 = arith.constant 0 : index
    %c0_47 = arith.constant 0 : index
    %c0_48 = arith.constant 0 : index
    %67 = vector.load %arg7[%c0_45, %c8, %c0_46, %c0_47, %c0_48] : memref<1x12x1x16x16xf32, #tpu.memory_space<vmem>>, vector<1x4x1x16x16xf32>
    %68 = vector.shape_cast %67 : vector<1x4x1x16x16xf32> to vector<4x16x16xf32>
    %69 = vector.shape_cast %66 : vector<4x16x16xf32> to vector<1x4x1x16x16xf32>
    tpu.vector_store %arg7[%c0_45, %c8, %c0_46, %c0_47, %c0_48], %69 {strides = array<i32>} : memref<1x12x1x16x16xf32, #tpu.memory_space<vmem>>, vector<1x4x1x16x16xf32>,
    return
  }
  func.func @transform_0(%arg0: i32, %arg1: i32, %arg2: i32) -> (i32, i32, i32, i32) {
    %c0_i32 = arith.constant 0 : i32
    %c0_i32_0 = arith.constant 0 : i32
    %c0_i32_1 = arith.constant 0 : i32
    return %arg0, %arg1, %c0_i32, %c0_i32_0 : i32, i32, i32, i32
  }
  func.func @transform_1(%arg0: i32, %arg1: i32, %arg2: i32) -> (i32, i32, i32, i32) {
    %c0_i32 = arith.constant 0 : i32
    %c0_i32_0 = arith.constant 0 : i32
    %c0_i32_1 = arith.constant 0 : i32
    return %arg0, %arg1, %c0_i32, %c0_i32_0 : i32, i32, i32, i32
  }
  func.func @transform_2(%arg0: i32, %arg1: i32, %arg2: i32) -> (i32, i32, i32, i32) {
    %c0_i32 = arith.constant 0 : i32
    %c0_i32_0 = arith.constant 0 : i32
    %c0_i32_1 = arith.constant 0 : i32
    return %arg0, %c0_i32, %arg1, %c0_i32_0 : i32, i32, i32, i32
  }
  func.func @transform_3(%arg0: i32, %arg1: i32, %arg2: i32) -> (i32, i32, i32, i32) {
    %c0_i32 = arith.constant 0 : i32
    %c0_i32_0 = arith.constant 0 : i32
    return %arg0, %arg2, %arg1, %c0_i32 : i32, i32, i32, i32
  }
  func.func @transform_4(%arg0: i32, %arg1: i32, %arg2: i32) -> (i32, i32, i32, i32, i32) {
    %c0_i32 = arith.constant 0 : i32
    %c0_i32_0 = arith.constant 0 : i32
    %c0_i32_1 = arith.constant 0 : i32
    return %arg0, %c0_i32, %arg2, %arg1, %c0_i32_0 : i32, i32, i32, i32, i32
  }
}

module attributes {stable_mosaic.version = 11 : i64} {
  func.func @_cost_volume_kernel(%arg0: i32, %arg1: i32, %arg2: i32, %arg3: memref<1x16x8x16xf32, #tpu.memory_space<vmem>>, %arg4: memref<1x16x12x16xbf16, #tpu.memory_space<vmem>>, %arg5: memref<1x4x16x16xf32, #tpu.memory_space<vmem>>, %arg6: memref<1x1x16x16xf32, #tpu.memory_space<vmem>>, %arg7: memref<1x12x1x16x16xf32, #tpu.memory_space<vmem>>) attributes {dimension_semantics = [#tpu.dimension_semantics<parallel>, #tpu.dimension_semantics<parallel>, #tpu.dimension_semantics<parallel>], iteration_bounds = array<i64: 2, 1, 8>, scalar_prefetch = 0 : i64, scratch_operands = 0 : i64, tpu.core_type = #tpu.core_type<tc>, window_params = [{transform_indices = @transform_0, window_bounds = array<i64: 1, 16, 8, 16>}, {transform_indices = @transform_1, window_bounds = array<i64: 1, 16, 12, 16>}, {transform_indices = @transform_2, window_bounds = array<i64: 1, 4, 16, 16>}, {transform_indices = @transform_3, window_bounds = array<i64: 1, 1, 16, 16>}, {transform_indices = @transform_4, window_bounds = array<i64: 1, 12, 1, 16, 16>}]} {
    %c0 = arith.constant 0 : index
    %c0_0 = arith.constant 0 : index
    %c0_1 = arith.constant 0 : index
    %c0_2 = arith.constant 0 : index
    %0 = vector.load %arg6[%c0, %c0_0, %c0_1, %c0_2] : memref<1x1x16x16xf32, #tpu.memory_space<vmem>>, vector<1x1x16x16xf32>
    %1 = vector.shape_cast %0 : vector<1x1x16x16xf32> to vector<16x16xf32>
    %2 = tpu.iota {dimensions = array<i32: 1>} : vector<16x16xi32>
    %3 = arith.sitofp %2 : vector<16x16xi32> to vector<16x16xf32>
    %4 = arith.subf %3, %1 : vector<16x16xf32>
    %cst = arith.constant 1.06666672 : f32
    %5 = vector.broadcast %cst : f32 to vector<16x16xf32>
    %6 = arith.mulf %4, %5 : vector<16x16xf32>
    %cst_3 = arith.constant 5.000000e-01 : f32
    %7 = vector.broadcast %cst_3 : f32 to vector<16x16xf32>
    %8 = arith.subf %6, %7 : vector<16x16xf32>
    %9 = tpu.iota {dimensions = array<i32: 2>} : vector<1x1x16xi32>
    %10 = arith.sitofp %9 : vector<1x1x16xi32> to vector<1x1x16xf32>
    %11 = vector.shape_cast %8 : vector<16x16xf32> to vector<16x16x1xf32>
    %12 = vector.broadcast %10 : vector<1x1x16xf32> to vector<16x16x16xf32>
    %13 = vector.broadcast %11 : vector<16x16x1xf32> to vector<16x16x16xf32>
    %14 = arith.subf %12, %13 : vector<16x16x16xf32>
    %15 = math.absf %14 : vector<16x16x16xf32>
    %cst_4 = arith.constant 1.000000e+00 : f32
    %16 = vector.broadcast %cst_4 : f32 to vector<16x16x16xf32>
    %17 = arith.subf %16, %15 : vector<16x16x16xf32>
    %cst_5 = arith.constant 0.000000e+00 : f32
    %18 = vector.broadcast %cst_5 : f32 to vector<16x16x16xf32>
    %19 = arith.maximumf %18, %17 : vector<16x16x16xf32>
    %20 = arith.truncf %19 : vector<16x16x16xf32> to vector<16x16x16xbf16>
    %21 = arith.cmpf oge, %3, %1 : vector<16x16xf32>
    %22 = arith.extui %21 : vector<16x16xi1> to vector<16x16xi32>
    %23 = arith.sitofp %22 : vector<16x16xi32> to vector<16x16xf32>
    %cst_6 = arith.constant 5.000000e-01 : f32
    %24 = vector.broadcast %cst_6 : f32 to vector<16x16xf32>
    %25 = arith.mulf %23, %24 : vector<16x16xf32>
    %c0_7 = arith.constant 0 : index
    %c0_8 = arith.constant 0 : index
    %c0_9 = arith.constant 0 : index
    %c0_10 = arith.constant 0 : index
    %26 = vector.load %arg5[%c0_7, %c0_8, %c0_9, %c0_10] : memref<1x4x16x16xf32, #tpu.memory_space<vmem>>, vector<1x4x16x16xf32>
    %27 = vector.shape_cast %26 : vector<1x4x16x16xf32> to vector<4x16x16xf32>
    %28 = vector.shape_cast %23 : vector<16x16xf32> to vector<1x16x16xf32>
    %29 = vector.broadcast %28 : vector<1x16x16xf32> to vector<4x16x16xf32>
    %30 = arith.mulf %27, %29 : vector<4x16x16xf32>
    %c0_11 = arith.constant 0 : index
    %c4 = arith.constant 4 : index
    %c0_12 = arith.constant 0 : index
    %c0_13 = arith.constant 0 : index
    %c0_14 = arith.constant 0 : index
    %31 = vector.load %arg7[%c0_11, %c4, %c0_12, %c0_13, %c0_14] : memref<1x12x1x16x16xf32, #tpu.memory_space<vmem>>, vector<1x4x1x16x16xf32>
    %32 = vector.shape_cast %31 : vector<1x4x1x16x16xf32> to vector<4x16x16xf32>
    %33 = vector.shape_cast %30 : vector<4x16x16xf32> to vector<1x4x1x16x16xf32>
    tpu.vector_store %arg7[%c0_11, %c4, %c0_12, %c0_13, %c0_14], %33 {strides = array<i32>} : memref<1x12x1x16x16xf32, #tpu.memory_space<vmem>>, vector<1x4x1x16x16xf32>,
    %c0_15 = arith.constant 0 : index
    %c0_16 = arith.constant 0 : index
    %c0_17 = arith.constant 0 : index
    %c0_18 = arith.constant 0 : index
    %34 = vector.load %arg4[%c0_15, %c0_16, %c0_17, %c0_18] : memref<1x16x12x16xbf16, #tpu.memory_space<vmem>>, vector<1x16x12x16xbf16>
    %35 = vector.shape_cast %34 : vector<1x16x12x16xbf16> to vector<16x12x16xbf16>
    "tpu.trace_start"() <{level = 10 : i32, message = "hcw,hvw->hcv"}> : () -> ()
    %cst_19 = arith.constant dense<0.000000e+00> : vector<16x12x16xf32>
    %36 = tpu.matmul %35, %20, %cst_19 {dimension_numbers = #tpu.dot_dimension_numbers<[2], [2], [1], [1], [0, 0, 0, 1, 1, 1], [0], [0]>} : vector<16x12x16xbf16>, vector<16x16x16xbf16>, vector<16x12x16xf32> -> vector<16x12x16xf32>
    "tpu.trace_stop"() : () -> ()
    %c0_20 = arith.constant 0 : index
    %c0_21 = arith.constant 0 : index
    %c0_22 = arith.constant 0 : index
    %c0_23 = arith.constant 0 : index
    %37 = vector.load %arg3[%c0_20, %c0_21, %c0_22, %c0_23] : memref<1x16x8x16xf32, #tpu.memory_space<vmem>>, vector<1x16x8x16xf32>
    %38 = vector.shape_cast %37 : vector<1x16x8x16xf32> to vector<16x8x16xf32>
    %39 = vector.extract_strided_slice %36 {offsets = [0, 0, 0], sizes = [16, 8, 16], strides = [1, 1, 1]} : vector<16x12x16xf32> to vector<16x8x16xf32>
    %40 = arith.mulf %38, %39 : vector<16x8x16xf32>
    %41 = vector.extract_strided_slice %40 {offsets = [0, 0, 0], sizes = [16, 2, 16], strides = [1, 1, 1]} : vector<16x8x16xf32> to vector<16x2x16xf32>
    %cst_24 = arith.constant dense<0.000000e+00> : vector<16x16xf32>
    %42 = vector.multi_reduction <add>, %41, %cst_24 [1] : vector<16x2x16xf32> to vector<16x16xf32>
    %43 = arith.mulf %42, %25 : vector<16x16xf32>
    %c0_25 = arith.constant 0 : index
    %c0_26 = arith.constant 0 : index
    %c0_27 = arith.constant 0 : index
    %c0_28 = arith.constant 0 : index
    %c0_29 = arith.constant 0 : index
    %44 = vector.load %arg7[%c0_25, %c0_26, %c0_27, %c0_28, %c0_29] : memref<1x12x1x16x16xf32, #tpu.memory_space<vmem>>, vector<1x1x1x16x16xf32>
    %45 = vector.shape_cast %44 : vector<1x1x1x16x16xf32> to vector<16x16xf32>
    %46 = vector.shape_cast %43 : vector<16x16xf32> to vector<1x1x1x16x16xf32>
    tpu.vector_store %arg7[%c0_25, %c0_26, %c0_27, %c0_28, %c0_29], %46 {strides = array<i32>} : memref<1x12x1x16x16xf32, #tpu.memory_space<vmem>>, vector<1x1x1x16x16xf32>,
    %47 = vector.extract_strided_slice %40 {offsets = [0, 2, 0], sizes = [16, 2, 16], strides = [1, 1, 1]} : vector<16x8x16xf32> to vector<16x2x16xf32>
    %cst_30 = arith.constant dense<0.000000e+00> : vector<16x16xf32>
    %48 = vector.multi_reduction <add>, %47, %cst_30 [1] : vector<16x2x16xf32> to vector<16x16xf32>
    %49 = arith.mulf %48, %25 : vector<16x16xf32>
    %c0_31 = arith.constant 0 : index
    %c1 = arith.constant 1 : index
    %c0_32 = arith.constant 0 : index
    %c0_33 = arith.constant 0 : index
    %c0_34 = arith.constant 0 : index
    %50 = vector.load %arg7[%c0_31, %c1, %c0_32, %c0_33, %c0_34] : memref<1x12x1x16x16xf32, #tpu.memory_space<vmem>>, vector<1x1x1x16x16xf32>
    %51 = vector.shape_cast %50 : vector<1x1x1x16x16xf32> to vector<16x16xf32>
    %52 = vector.shape_cast %49 : vector<16x16xf32> to vector<1x1x1x16x16xf32>
    tpu.vector_store %arg7[%c0_31, %c1, %c0_32, %c0_33, %c0_34], %52 {strides = array<i32>} : memref<1x12x1x16x16xf32, #tpu.memory_space<vmem>>, vector<1x1x1x16x16xf32>,
    %53 = vector.extract_strided_slice %40 {offsets = [0, 4, 0], sizes = [16, 2, 16], strides = [1, 1, 1]} : vector<16x8x16xf32> to vector<16x2x16xf32>
    %cst_35 = arith.constant dense<0.000000e+00> : vector<16x16xf32>
    %54 = vector.multi_reduction <add>, %53, %cst_35 [1] : vector<16x2x16xf32> to vector<16x16xf32>
    %55 = arith.mulf %54, %25 : vector<16x16xf32>
    %c0_36 = arith.constant 0 : index
    %c2 = arith.constant 2 : index
    %c0_37 = arith.constant 0 : index
    %c0_38 = arith.constant 0 : index
    %c0_39 = arith.constant 0 : index
    %56 = vector.load %arg7[%c0_36, %c2, %c0_37, %c0_38, %c0_39] : memref<1x12x1x16x16xf32, #tpu.memory_space<vmem>>, vector<1x1x1x16x16xf32>
    %57 = vector.shape_cast %56 : vector<1x1x1x16x16xf32> to vector<16x16xf32>
    %58 = vector.shape_cast %55 : vector<16x16xf32> to vector<1x1x1x16x16xf32>
    tpu.vector_store %arg7[%c0_36, %c2, %c0_37, %c0_38, %c0_39], %58 {strides = array<i32>} : memref<1x12x1x16x16xf32, #tpu.memory_space<vmem>>, vector<1x1x1x16x16xf32>,
    %59 = vector.extract_strided_slice %40 {offsets = [0, 6, 0], sizes = [16, 2, 16], strides = [1, 1, 1]} : vector<16x8x16xf32> to vector<16x2x16xf32>
    %cst_40 = arith.constant dense<0.000000e+00> : vector<16x16xf32>
    %60 = vector.multi_reduction <add>, %59, %cst_40 [1] : vector<16x2x16xf32> to vector<16x16xf32>
    %61 = arith.mulf %60, %25 : vector<16x16xf32>
    %c0_41 = arith.constant 0 : index
    %c3 = arith.constant 3 : index
    %c0_42 = arith.constant 0 : index
    %c0_43 = arith.constant 0 : index
    %c0_44 = arith.constant 0 : index
    %62 = vector.load %arg7[%c0_41, %c3, %c0_42, %c0_43, %c0_44] : memref<1x12x1x16x16xf32, #tpu.memory_space<vmem>>, vector<1x1x1x16x16xf32>
    %63 = vector.shape_cast %62 : vector<1x1x1x16x16xf32> to vector<16x16xf32>
    %64 = vector.shape_cast %61 : vector<16x16xf32> to vector<1x1x1x16x16xf32>
    tpu.vector_store %arg7[%c0_41, %c3, %c0_42, %c0_43, %c0_44], %64 {strides = array<i32>} : memref<1x12x1x16x16xf32, #tpu.memory_space<vmem>>, vector<1x1x1x16x16xf32>,
    %65 = vector.extract_strided_slice %36 {offsets = [0, 8, 0], sizes = [16, 4, 16], strides = [1, 1, 1]} : vector<16x12x16xf32> to vector<16x4x16xf32>
    %66 = tpu.transpose %65, [1, 0, 2] : vector<16x4x16xf32> -> vector<4x16x16xf32>
    %c0_45 = arith.constant 0 : index
    %c8 = arith.constant 8 : index
    %c0_46 = arith.constant 0 : index
    %c0_47 = arith.constant 0 : index
    %c0_48 = arith.constant 0 : index
    %67 = vector.load %arg7[%c0_45, %c8, %c0_46, %c0_47, %c0_48] : memref<1x12x1x16x16xf32, #tpu.memory_space<vmem>>, vector<1x4x1x16x16xf32>
    %68 = vector.shape_cast %67 : vector<1x4x1x16x16xf32> to vector<4x16x16xf32>
    %69 = vector.shape_cast %66 : vector<4x16x16xf32> to vector<1x4x1x16x16xf32>
    tpu.vector_store %arg7[%c0_45, %c8, %c0_46, %c0_47, %c0_48], %69 {strides = array<i32>} : memref<1x12x1x16x16xf32, #tpu.memory_space<vmem>>, vector<1x4x1x16x16xf32>,
    return
  }
  func.func @transform_0(%arg0: i32, %arg1: i32, %arg2: i32) -> (i32, i32, i32, i32) {
    %c0_i32 = arith.constant 0 : i32
    %c0_i32_0 = arith.constant 0 : i32
    %c0_i32_1 = arith.constant 0 : i32
    return %arg0, %arg1, %c0_i32, %c0_i32_0 : i32, i32, i32, i32
  }
  func.func @transform_1(%arg0: i32, %arg1: i32, %arg2: i32) -> (i32, i32, i32, i32) {
    %c0_i32 = arith.constant 0 : i32
    %c0_i32_0 = arith.constant 0 : i32
    %c0_i32_1 = arith.constant 0 : i32
    return %arg0, %arg1, %c0_i32, %c0_i32_0 : i32, i32, i32, i32
  }
  func.func @transform_2(%arg0: i32, %arg1: i32, %arg2: i32) -> (i32, i32, i32, i32) {
    %c0_i32 = arith.constant 0 : i32
    %c0_i32_0 = arith.constant 0 : i32
    %c0_i32_1 = arith.constant 0 : i32
    return %arg0, %c0_i32, %arg1, %c0_i32_0 : i32, i32, i32, i32
  }
  func.func @transform_3(%arg0: i32, %arg1: i32, %arg2: i32) -> (i32, i32, i32, i32) {
    %c0_i32 = arith.constant 0 : i32
    %c0_i32_0 = arith.constant 0 : i32
    return %arg0, %arg2, %arg1, %c0_i32 : i32, i32, i32, i32
  }
  func.func @transform_4(%arg0: i32, %arg1: i32, %arg2: i32) -> (i32, i32, i32, i32, i32) {
    %c0_i32 = arith.constant 0 : i32
    %c0_i32_0 = arith.constant 0 : i32
    %c0_i32_1 = arith.constant 0 : i32
    return %arg0, %c0_i32, %arg2, %arg1, %c0_i32_0 : i32, i32, i32, i32, i32
  }
}

</mosaic_0001>

<llo_original>
// kernel: tpu_custom_call.1
$region0: #{tpu_custom_call.1}
  #allocation0 [shape = 'u32[]', space=smem, size = 0x4, offset = 0x4, fixed_abs, tag = 'smem constant byte address 0x4 - core index']
  #allocation1 [shape = 'u32[72,128]{1,0:T(1,128)}', space=vmem, size = 0x9000, scoped, tag = 'internal scratch']
  #allocation9 [shape = 's32[]', space=sflag, size = 0x4, offset = 0, fixed_abs, tag = 'sflag constant byte address 0x0 - dummy sync flag']
  %s0 = inlined_call_operand.hbm [shape: f32[2,16,8,16], index: 0, kind: input, shape index: {}]
  %s1 = inlined_call_operand.vmem [shape: bf16[2,16,12,16], index: 1, kind: input, shape index: {}]
  %s2 = inlined_call_operand.hbm [shape: f32[2,4,16,16], index: 2, kind: input, shape index: {}]
  %s3 = inlined_call_operand.hbm [shape: f32[2,8,16,16], index: 3, kind: input, shape index: {}]
  %s4 = inlined_call_operand.hbm [shape: f32[2,12,8,16,16], index: 4, kind: output, shape index: {}]
  %s5 = sld [smem:[#allocation0]]
  $region61: #{tpu_custom_call.1} parent=0
    _
  %s7 = ssub.s32 1, %s5
  %s8 = scalar_select 0, %s7, %s5
  $region1: #{tpu_custom_call.1} parent=0
    #allocation2 [shape = 'u8[65536]{0}', space=vmem, size = 0x10000, scoped, tag = 'input window, operand 0, single buffered']
    #allocation3 [shape = 's32[2]{0}', space=sflag, size = 0x8, scoped, tag = 'scoped memory for tpu_custom_call.1']
    #allocation4 [shape = 's32[2]{0}', space=sflag, size = 0x8, scoped, tag = 'scoped memory for tpu_custom_call.1']
    #allocation5 [shape = 'u8[32768]{0}', space=vmem, size = 0x8000, scoped, tag = 'input window, operand 2, single buffered']
    #allocation6 [shape = 's32[1]{0}', space=sflag, size = 0x4, scoped, tag = 'scoped memory for tpu_custom_call.1']
    #allocation7 [shape = 'u8[16384]{0}', space=vmem, size = 0x4000, scoped, tag = 'input window, operand 3']
    #allocation8 [shape = 'u8[196608]{0}', space=vmem, size = 0x30000, scoped, tag = 'output window, operand 0']
    %9 = vsyncpa [#allocation3], 0
    %10 = vsyncpa [#allocation6], 0
    %11 = vsyncpa [#allocation4], 0
    %s12 = scalar_lea.sflag [#allocation4], 1
    %13 = vsyncpa %s12, 0
    loop: start=0, step=1, limit=18
    $region2: #{tpu_custom_call.1} parent=1 // loop_pre_header
      _
    $region3: #{tpu_custom_call.1} parent=1 // loop_header
      %s15 = sphi 0, %s19
      %p16 = scmp.ge.s32.totalorder %s15, 18
      %s22 = sphi 0, %s41
      %s23 = sphi 0, %s37
      %s24 = sphi 0, %s33
      %s25 = sphi 0, %s22
      %s26 = sphi 0, %s23
      %s27 = sphi 0, %s24
      %s28 = sphi 0, %s25
      %s29 = sphi 0, %s26
      %s30 = sphi 0, %s27
      %s46 = sphi 0, %s48
      %s49 = sphi 0, %s46
      %s50 = sphi 0, %s49
      %s66 = sphi 0, %s50
      %s74 = sphi 0, %s76
      %s77 = sphi 0, %s74
      %s78 = sphi 0, %s77
      %s94 = sphi 0, %s78
      %s102 = sphi 0, %s104
      %s105 = sphi 0, %s102
      %s106 = sphi 0, %s105
      %s122 = sphi 0, %s106
      %s132 = sphi 0, %s134
      %s135 = sphi 0, %s132
      %s136 = sphi 0, %s135
      %s152 = sphi 0, %s136
      %s162 = sphi 0, %s164
      %s165 = sphi 0, %s162
      %s166 = sphi 0, %s165
      %s182 = sphi 0, %s166
    $region4: #{tpu_custom_call.1} parent=1 // loop_header_branch
      %18 = sbr.rel (%p16) target = $region8
    $region5: #{tpu_custom_call.1} parent=1 // loop_body
      %s20 = ssub.s32 %s15, 1
      %s21 = ssub.s32 %s15, 2
      %s31 = sadd.s32 1, %s24
      %p32 = scmp.ge.s32.totalorder %s31, 8
      %s33 = scalar_select %p32, 0, %s31
      %s34 = sadd.s32 1, %s23
      %s35 = scalar_select %p32, %s34, %s23
      %p36 = scmp.ge.s32.totalorder %s35, 1
      %s37 = scalar_select %p36, 0, %s35
      %s38 = sadd.s32 1, %s22
      %s39 = scalar_select %p36, %s38, %s22
      %p40 = scmp.ge.s32.totalorder %s39, 2
      %s41 = scalar_select %p40, 0, %s39
      %s42 = ssub.s32 %s22, %s41
      %s43 = ssub.s32 %s23, %s37
      %s44 = sor.u32 %s42, %s43
      %p45 = scmp.eq.s32.totalorder %s44, 0
      %s47 = sadd.s32 %s46, 1
      %s48 = scalar_select %p45, %s46, %s47
      %p51 = pneg %p45
      %p52 = scmp.eq.s32.totalorder %s15, 15
      %p53 = por %p51, %p52
      %p54 = scmp.ne.s32.totalorder %s46, %s49
      %p55 = scmp.eq.s32.totalorder %s15, 0
      %p56 = por %p54, %p55
      %p57 = scmp.ne.s32.totalorder %s46, %s49
      %p58 = scmp.eq.s32.totalorder %s20, 15
      %p59 = por %p57, %p58
      %p60 = scmp.ne.s32.totalorder %s49, %s50
      %p61 = scmp.eq.s32.totalorder %s20, 0
      %p62 = por %p60, %p61
      %p63 = scmp.ne.s32.totalorder %s49, %s50
      %p64 = scmp.eq.s32.totalorder %s21, 15
      %p65 = por %p63, %p64
      %p67 = scmp.ne.s32.totalorder %s50, %s66
      %p68 = scmp.eq.s32.totalorder %s21, 0
      %p69 = por %p67, %p68
      %s70 = ssub.s32 %s22, %s41
      %s71 = ssub.s32 %s23, %s37
      %s72 = sor.u32 %s70, %s71
      %p73 = scmp.eq.s32.totalorder %s72, 0
      %s75 = sadd.s32 %s74, 1
      %s76 = scalar_select %p73, %s74, %s75
      %p79 = pneg %p73
      %p80 = scmp.eq.s32.totalorder %s15, 15
      %p81 = por %p79, %p80
      %p82 = scmp.ne.s32.totalorder %s74, %s77
      %p83 = scmp.eq.s32.totalorder %s15, 0
      %p84 = por %p82, %p83
      %p85 = scmp.ne.s32.totalorder %s74, %s77
      %p86 = scmp.eq.s32.totalorder %s20, 15
      %p87 = por %p85, %p86
      %p88 = scmp.ne.s32.totalorder %s77, %s78
      %p89 = scmp.eq.s32.totalorder %s20, 0
      %p90 = por %p88, %p89
      %p91 = scmp.ne.s32.totalorder %s77, %s78
      %p92 = scmp.eq.s32.totalorder %s21, 15
      %p93 = por %p91, %p92
      %p95 = scmp.ne.s32.totalorder %s78, %s94
      %p96 = scmp.eq.s32.totalorder %s21, 0
      %p97 = por %p95, %p96
      %s98 = ssub.s32 %s22, %s41
      %s99 = ssub.s32 %s23, %s37
      %s100 = sor.u32 %s98, %s99
      %p101 = scmp.eq.s32.totalorder %s100, 0
      %s103 = sadd.s32 %s102, 1
      %s104 = scalar_select %p101, %s102, %s103
      %p107 = pneg %p101
      %p108 = scmp.eq.s32.totalorder %s15, 15
      %p109 = por %p107, %p108
      %p110 = scmp.ne.s32.totalorder %s102, %s105
      %p111 = scmp.eq.s32.totalorder %s15, 0
      %p112 = por %p110, %p111
      %p113 = scmp.ne.s32.totalorder %s102, %s105
      %p114 = scmp.eq.s32.totalorder %s20, 15
      %p115 = por %p113, %p114
      %p116 = scmp.ne.s32.totalorder %s105, %s106
      %p117 = scmp.eq.s32.totalorder %s20, 0
      %p118 = por %p116, %p117
      %p119 = scmp.ne.s32.totalorder %s105, %s106
      %p120 = scmp.eq.s32.totalorder %s21, 15
      %p121 = por %p119, %p120
      %p123 = scmp.ne.s32.totalorder %s106, %s122
      %p124 = scmp.eq.s32.totalorder %s21, 0
      %p125 = por %p123, %p124
      %s126 = ssub.s32 %s22, %s41
      %s127 = ssub.s32 %s24, %s33
      %s128 = sor.u32 %s126, %s127
      %s129 = ssub.s32 %s23, %s37
      %s130 = sor.u32 %s128, %s129
      %p131 = scmp.eq.s32.totalorder %s130, 0
      %s133 = sadd.s32 %s132, 1
      %s134 = scalar_select %p131, %s132, %s133
      %p137 = pneg %p131
      %p138 = scmp.eq.s32.totalorder %s15, 15
      %p139 = por %p137, %p138
      %p140 = scmp.ne.s32.totalorder %s132, %s135
      %p141 = scmp.eq.s32.totalorder %s15, 0
      %p142 = por %p140, %p141
      %p143 = scmp.ne.s32.totalorder %s132, %s135
      %p144 = scmp.eq.s32.totalorder %s20, 15
      %p145 = por %p143, %p144
      %p146 = scmp.ne.s32.totalorder %s135, %s136
      %p147 = scmp.eq.s32.totalorder %s20, 0
      %p148 = por %p146, %p147
      %p149 = scmp.ne.s32.totalorder %s135, %s136
      %p150 = scmp.eq.s32.totalorder %s21, 15
      %p151 = por %p149, %p150
      %p153 = scmp.ne.s32.totalorder %s136, %s152
      %p154 = scmp.eq.s32.totalorder %s21, 0
      %p155 = por %p153, %p154
      %s156 = ssub.s32 %s22, %s41
      %s157 = ssub.s32 %s24, %s33
      %s158 = sor.u32 %s156, %s157
      %s159 = ssub.s32 %s23, %s37
      %s160 = sor.u32 %s158, %s159
      %p161 = scmp.eq.s32.totalorder %s160, 0
      %s163 = sadd.s32 %s162, 1
      %s164 = scalar_select %p161, %s162, %s163
      %p167 = pneg %p161
      %p168 = scmp.eq.s32.totalorder %s15, 15
      %p169 = por %p167, %p168
      %p170 = scmp.ne.s32.totalorder %s162, %s165
      %p171 = scmp.eq.s32.totalorder %s15, 0
      %p172 = por %p170, %p171
      %p173 = scmp.ne.s32.totalorder %s162, %s165
      %p174 = scmp.eq.s32.totalorder %s20, 15
      %p175 = por %p173, %p174
      %p176 = scmp.ne.s32.totalorder %s165, %s166
      %p177 = scmp.eq.s32.totalorder %s20, 0
      %p178 = por %p176, %p177
      %p179 = scmp.ne.s32.totalorder %s165, %s166
      %p180 = scmp.eq.s32.totalorder %s21, 15
      %p181 = por %p179, %p180
      %p183 = scmp.ne.s32.totalorder %s166, %s182
      %p184 = scmp.eq.s32.totalorder %s21, 0
      %p185 = por %p183, %p184
      %p186 = scmp.le.s32.totalorder 1, %s15
      %p187 = scmp.lt.s32.totalorder %s15, 17
      %p188 = pnand %p186, %p187
      %p189 = pneg %p188
      // Predicated region
      $region9: #{tpu_custom_call.1} parent=5 // pred_check
        _
      $region10: #{tpu_custom_call.1} parent=5 // pred_check_branch
        %191 = sbr.rel (%p188) target = $region12
      $region11: #{tpu_custom_call.1} parent=5 // pred_region
        %s192 = ssub.s32 %s15, 1
        // Predicated region
        $region13: #{tpu_custom_call.1} parent=11 // pred_check
          %p193 = pneg %p62
        $region14: #{tpu_custom_call.1} parent=11 // pred_check_branch
          %195 = sbr.rel (%p193) target = $region16
        $region15: #{tpu_custom_call.1} parent=11 // pred_region
          %s196 = smul.u32 16, %s26
          %198 = vsyncadd [#allocation3], 0
          %s199 = smul.addr %s25, 16
          %s200 = sadd.s32 %s196, %s199
          %s201 = smul.addr %s200, 8
          %s202 = scalar_lea.hbm %s0, %s201
          %s203 = sshll.u32 %s202, 4
          %s204 = int_to_ptr.hbm [resolvable:$true] %s203
          %s205 = sshll.u32 [#allocation2], 4
          %s206 = int_to_ptr.vmem [resolvable:$true] %s205
          %211 = dma.hbm_to_vmem [thread:$0]  %s204, 2048, %s206, [#allocation3], 128, 128, 8
        $region16: #{tpu_custom_call.1} parent=11 // pred_fallthru
          _
        // Predicated region
        $region17: #{tpu_custom_call.1} parent=11 // pred_check
          %p212 = pneg %p90
        $region18: #{tpu_custom_call.1} parent=11 // pred_check_branch
          %214 = sbr.rel (%p212) target = $region20
        $region19: #{tpu_custom_call.1} parent=11 // pred_region
          %s215 = smul.u32 16, %s26
          %p216 = scmp.lt.s32.totalorder %s25, 1
          %s217 = scalar_select %p216, %s25, 1
          %p218 = scmp.lt.s32.totalorder %s215, 15
          %s219 = scalar_select %p218, %s215, 15
          %s220 = smul.addr %s219, 2
          %s221 = smul.addr %s217, 32
          %s222 = sadd.s32 %s220, %s221
          %s223 = smul.addr %s222, 4
          %s224 = scalar_lea.vmem %s1, %s223
          %s225 = smul.u32 16, %s26
        $region20: #{tpu_custom_call.1} parent=11 // pred_fallthru
          _
        // Predicated region
        $region21: #{tpu_custom_call.1} parent=11 // pred_check
          %p226 = pneg %p118
        $region22: #{tpu_custom_call.1} parent=11 // pred_check_branch
          %228 = sbr.rel (%p226) target = $region24
        $region23: #{tpu_custom_call.1} parent=11 // pred_region
          %s229 = smul.u32 2, %s26
          %231 = vsyncadd [#allocation6], 0
          %s232 = smul.addr %s25, 8
          %s233 = sadd.s32 %s229, %s232
          %s234 = smul.addr %s233, 8
          %s235 = scalar_lea.hbm %s2, %s234
          %s236 = sshll.u32 %s235, 4
          %s237 = int_to_ptr.hbm [resolvable:$true] %s236
          %s238 = sshll.u32 [#allocation5], 4
          %s239 = int_to_ptr.vmem [resolvable:$true] %s238
          %244 = dma.hbm_to_vmem [thread:$0]  %s237, 1024, %s239, [#allocation6], 128, 128, 8
        $region24: #{tpu_custom_call.1} parent=11 // pred_fallthru
          _
      $region12: #{tpu_custom_call.1} parent=5 // pred_fallthru
        _
      %p245 = scmp.lt.s32.totalorder %s15, 16
      // Predicated region
      $region25: #{tpu_custom_call.1} parent=5 // pred_check
        %p246 = pneg %p245
      $region26: #{tpu_custom_call.1} parent=5 // pred_check_branch
        %248 = sbr.rel (%p246) target = $region28
      $region27: #{tpu_custom_call.1} parent=5 // pred_region
        // Predicated region
        $region29: #{tpu_custom_call.1} parent=27 // pred_check
          %p249 = pneg %p142
        $region30: #{tpu_custom_call.1} parent=27 // pred_check_branch
          %251 = sbr.rel (%p249) target = $region32
        $region31: #{tpu_custom_call.1} parent=27 // pred_region
          %s252 = sand.u32 %s15, 1
          %s253 = scalar_lea.sflag [#allocation3], %s252
          %s254 = sand.u32 %s132, 1
          %s255 = smul.addr %s254, 16
          %s256 = scalar_lea.vmem [#allocation7], %s255
          %s257 = smul.u32 2, %s23
          %259 = vsyncadd %s253, 0
          %s260 = smul.addr %s24, 2
          %s261 = sadd.s32 %s257, %s260
          %s262 = smul.addr %s22, 16
          %s263 = sadd.s32 %s261, %s262
          %s264 = smul.addr %s263, 8
          %s265 = scalar_lea.hbm %s3, %s264
          %s266 = sshll.u32 %s265, 4
          %s267 = int_to_ptr.hbm [resolvable:$true] %s266
          %s268 = sshll.u32 %s256, 4
          %s269 = int_to_ptr.vmem [resolvable:$true] %s268
          %274 = dma.hbm_to_vmem [thread:$0]  %s267, 256, %s269, %s253, 128, 128, 8
        $region32: #{tpu_custom_call.1} parent=27 // pred_fallthru
          _
      $region28: #{tpu_custom_call.1} parent=5 // pred_fallthru
        _
      %p275 = scmp.le.s32.totalorder 1, %s15
      %p276 = scmp.lt.s32.totalorder %s15, 17
      %p277 = pnand %p275, %p276
      %p278 = pneg %p277
      // Predicated region
      $region33: #{tpu_custom_call.1} parent=5 // pred_check
        _
      $region34: #{tpu_custom_call.1} parent=5 // pred_check_branch
        %280 = sbr.rel (%p277) target = $region36
      $region35: #{tpu_custom_call.1} parent=5 // pred_region
        %s281 = ssub.s32 %s15, 1
        // Predicated region
        $region37: #{tpu_custom_call.1} parent=35 // pred_check
          %p282 = pneg %p62
        $region38: #{tpu_custom_call.1} parent=35 // pred_check_branch
          %284 = sbr.rel (%p282) target = $region40
        $region39: #{tpu_custom_call.1} parent=35 // pred_region
          %286 = dma.done [#allocation3], 2048
        $region40: #{tpu_custom_call.1} parent=35 // pred_fallthru
          _
        // Predicated region
        $region41: #{tpu_custom_call.1} parent=35 // pred_check
          %p287 = pneg %p118
        $region42: #{tpu_custom_call.1} parent=35 // pred_check_branch
          %289 = sbr.rel (%p287) target = $region44
        $region43: #{tpu_custom_call.1} parent=35 // pred_region
          %291 = dma.done [#allocation6], 1024
        $region44: #{tpu_custom_call.1} parent=35 // pred_fallthru
          _
        %s292 = sand.u32 %s20, 1
        %s293 = scalar_lea.sflag [#allocation3], %s292
        %s294 = sand.u32 %s135, 1
        %s295 = smul.addr %s294, 16
        %s296 = scalar_lea.vmem [#allocation7], %s295
        // Predicated region
        $region45: #{tpu_custom_call.1} parent=35 // pred_check
          %p297 = pneg %p148
        $region46: #{tpu_custom_call.1} parent=35 // pred_check_branch
          %299 = sbr.rel (%p297) target = $region48
        $region47: #{tpu_custom_call.1} parent=35 // pred_region
          %301 = dma.done %s293, 256
        $region48: #{tpu_custom_call.1} parent=35 // pred_fallthru
          _
        %p302 = pneg %p62
        %p303 = pneg %p59
        %s304 = smul.u32 16, %s26
        %p305 = scmp.lt.s32.totalorder %s25, 1
        %s306 = scalar_select %p305, %s25, 1
        %p307 = scmp.lt.s32.totalorder %s304, 15
        %s308 = scalar_select %p307, %s304, 15
        %s309 = smul.addr %s308, 2
        %s310 = smul.addr %s306, 32
        %s311 = sadd.s32 %s309, %s310
        %s312 = smul.addr %s311, 4
        %s313 = scalar_lea.vmem %s1, %s312
        %p314 = pneg %p90
        %p315 = pneg %p87
        %p316 = pneg %p118
        %p317 = pneg %p115
        %s318 = sand.u32 %s20, 1
        %s319 = scalar_lea.sflag [#allocation3], %s318
        %s320 = sand.u32 %s135, 1
        %s321 = smul.addr %s320, 16
        %s322 = scalar_lea.vmem [#allocation7], %s321
        %p323 = pneg %p148
        %p324 = pneg %p145
        %p325 = pneg %p178
        %p326 = pneg %p175
        %s327 = sand.u32 %s165, 1
        %s328 = scalar_lea.sflag [#allocation4], %s327
        %s329 = sand.u32 %s165, 1
        %s330 = smul.addr %s329, 192
        %s331 = scalar_lea.vmem [#allocation8], %s330
        %s332 = smul.u32 16, %s26
        %s333 = smul.u32 16, %s26
        %p334 = scmp.lt.s32.totalorder %s25, 1
        %s335 = scalar_select %p334, %s25, 1
        %p336 = scmp.lt.s32.totalorder %s333, 15
        %s337 = scalar_select %p336, %s333, 15
        %s338 = smul.addr %s337, 2
        %s339 = smul.addr %s335, 32
        %s340 = sadd.s32 %s338, %s339
        %s341 = smul.addr %s340, 4
        %s342 = scalar_lea.vmem %s1, %s341
        %s343 = smul.u32 16, %s26
        %s344 = smul.u32 2, %s26
        %s345 = smul.u32 2, %s26
        %s346 = smul.u32 2, %s26
        %v348 = vld [vmem:[%s296] sm:$0xff]
        %v349 = vld [vmem:[%s296 + $0x8] sm:$0xff]
        %v350 = vlaneseq
        %v351 = vand.u32 %v350, 127
        %v352 = vcvt.s32.f32 %v351
        %v353 = vsub.f32 %v352, %v348
        %v354 = vsub.f32 %v352, %v349
        %v355 = vmul.f32 %v353, 1.0666667
        %v356 = vmul.f32 %v354, 1.0666667
        %v357 = vsub.f32 %v355, 0.5
        %v358 = vsub.f32 %v356, 0.5
        %v359 = vperm.slane %v357, 0
        %v360 = vlaneseq
        %v361 = vshrl.u32 %v360, 7
        %363 = vset.pattern.permute.xlu0 %v361
        %364 = vperm.xlu0 %363, %v359
        %v365 = vpop.permute.xlu0 %364
        %v366 = vlaneseq
        %v367 = vshrl.u32 %v366, 7
        %v368 = vadd.s32 %v367, 8
        %369 = vset.pattern.permute.xlu0 %v368
        %370 = vperm.xlu0 %369, %v359
        %v371 = vpop.permute.xlu0 %370
        %v372 = vperm.slane %v357, 1
        %v373 = vlaneseq
        %v374 = vshrl.u32 %v373, 7
        %376 = vset.pattern.permute.xlu0 %v374
        %377 = vperm.xlu0 %376, %v372
        %v378 = vpop.permute.xlu0 %377
        %v379 = vlaneseq
        %v380 = vshrl.u32 %v379, 7
        %v381 = vadd.s32 %v380, 8
        %382 = vset.pattern.permute.xlu0 %v381
        %383 = vperm.xlu0 %382, %v372
        %v384 = vpop.permute.xlu0 %383
        %v385 = vperm.slane %v357, 2
        %v386 = vlaneseq
        %v387 = vshrl.u32 %v386, 7
        %389 = vset.pattern.permute.xlu0 %v387
        %390 = vperm.xlu0 %389, %v385
        %v391 = vpop.permute.xlu0 %390
        %v392 = vlaneseq
        %v393 = vshrl.u32 %v392, 7
        %v394 = vadd.s32 %v393, 8
        %395 = vset.pattern.permute.xlu0 %v394
        %396 = vperm.xlu0 %395, %v385
        %v397 = vpop.permute.xlu0 %396
        %v398 = vperm.slane %v357, 3
        %v399 = vlaneseq
        %v400 = vshrl.u32 %v399, 7
        %402 = vset.pattern.permute.xlu0 %v400
        %403 = vperm.xlu0 %402, %v398
        %v404 = vpop.permute.xlu0 %403
        %v405 = vlaneseq
        %v406 = vshrl.u32 %v405, 7
        %v407 = vadd.s32 %v406, 8
        %408 = vset.pattern.permute.xlu0 %v407
        %409 = vperm.xlu0 %408, %v398
        %v410 = vpop.permute.xlu0 %409
        %v411 = vperm.slane %v357, 4
        %v412 = vlaneseq
        %v413 = vshrl.u32 %v412, 7
        %415 = vset.pattern.permute.xlu0 %v413
        %416 = vperm.xlu0 %415, %v411
        %v417 = vpop.permute.xlu0 %416
        %v418 = vlaneseq
        %v419 = vshrl.u32 %v418, 7
        %v420 = vadd.s32 %v419, 8
        %421 = vset.pattern.permute.xlu0 %v420
        %422 = vperm.xlu0 %421, %v411
        %v423 = vpop.permute.xlu0 %422
        %v424 = vperm.slane %v357, 5
        %v425 = vlaneseq
        %v426 = vshrl.u32 %v425, 7
        %428 = vset.pattern.permute.xlu0 %v426
        %429 = vperm.xlu0 %428, %v424
        %v430 = vpop.permute.xlu0 %429
        %v431 = vlaneseq
        %v432 = vshrl.u32 %v431, 7
        %v433 = vadd.s32 %v432, 8
        %434 = vset.pattern.permute.xlu0 %v433
        %435 = vperm.xlu0 %434, %v424
        %v436 = vpop.permute.xlu0 %435
        %v437 = vperm.slane %v357, 6
        %v438 = vlaneseq
        %v439 = vshrl.u32 %v438, 7
        %441 = vset.pattern.permute.xlu0 %v439
        %442 = vperm.xlu0 %441, %v437
        %v443 = vpop.permute.xlu0 %442
        %v444 = vlaneseq
        %v445 = vshrl.u32 %v444, 7
        %v446 = vadd.s32 %v445, 8
        %447 = vset.pattern.permute.xlu0 %v446
        %448 = vperm.xlu0 %447, %v437
        %v449 = vpop.permute.xlu0 %448
        %v450 = vperm.slane %v357, 7
        %v451 = vlaneseq
        %v452 = vshrl.u32 %v451, 7
        %454 = vset.pattern.permute.xlu0 %v452
        %455 = vperm.xlu0 %454, %v450
        %v456 = vpop.permute.xlu0 %455
        %v457 = vlaneseq
        %v458 = vshrl.u32 %v457, 7
        %v459 = vadd.s32 %v458, 8
        %460 = vset.pattern.permute.xlu0 %v459
        %461 = vperm.xlu0 %460, %v450
        %v462 = vpop.permute.xlu0 %461
        %v463 = vperm.slane %v358, 0
        %v464 = vlaneseq
        %v465 = vshrl.u32 %v464, 7
        %467 = vset.pattern.permute.xlu0 %v465
        %468 = vperm.xlu0 %467, %v463
        %v469 = vpop.permute.xlu0 %468
        %v470 = vlaneseq
        %v471 = vshrl.u32 %v470, 7
        %v472 = vadd.s32 %v471, 8
        %473 = vset.pattern.permute.xlu0 %v472
        %474 = vperm.xlu0 %473, %v463
        %v475 = vpop.permute.xlu0 %474
        %v476 = vperm.slane %v358, 1
        %v477 = vlaneseq
        %v478 = vshrl.u32 %v477, 7
        %480 = vset.pattern.permute.xlu0 %v478
        %481 = vperm.xlu0 %480, %v476
        %v482 = vpop.permute.xlu0 %481
        %v483 = vlaneseq
        %v484 = vshrl.u32 %v483, 7
        %v485 = vadd.s32 %v484, 8
        %486 = vset.pattern.permute.xlu0 %v485
        %487 = vperm.xlu0 %486, %v476
        %v488 = vpop.permute.xlu0 %487
        %v489 = vperm.slane %v358, 2
        %v490 = vlaneseq
        %v491 = vshrl.u32 %v490, 7
        %493 = vset.pattern.permute.xlu0 %v491
        %494 = vperm.xlu0 %493, %v489
        %v495 = vpop.permute.xlu0 %494
        %v496 = vlaneseq
        %v497 = vshrl.u32 %v496, 7
        %v498 = vadd.s32 %v497, 8
        %499 = vset.pattern.permute.xlu0 %v498
        %500 = vperm.xlu0 %499, %v489
        %v501 = vpop.permute.xlu0 %500
        %v502 = vperm.slane %v358, 3
        %v503 = vlaneseq
        %v504 = vshrl.u32 %v503, 7
        %506 = vset.pattern.permute.xlu0 %v504
        %507 = vperm.xlu0 %506, %v502
        %v508 = vpop.permute.xlu0 %507
        %v509 = vlaneseq
        %v510 = vshrl.u32 %v509, 7
        %v511 = vadd.s32 %v510, 8
        %512 = vset.pattern.permute.xlu0 %v511
        %513 = vperm.xlu0 %512, %v502
        %v514 = vpop.permute.xlu0 %513
        %v515 = vperm.slane %v358, 4
        %v516 = vlaneseq
        %v517 = vshrl.u32 %v516, 7
        %519 = vset.pattern.permute.xlu0 %v517
        %520 = vperm.xlu0 %519, %v515
        %v521 = vpop.permute.xlu0 %520
        %v522 = vlaneseq
        %v523 = vshrl.u32 %v522, 7
        %v524 = vadd.s32 %v523, 8
        %525 = vset.pattern.permute.xlu0 %v524
        %526 = vperm.xlu0 %525, %v515
        %v527 = vpop.permute.xlu0 %526
        %v528 = vperm.slane %v358, 5
        %v529 = vlaneseq
        %v530 = vshrl.u32 %v529, 7
        %532 = vset.pattern.permute.xlu0 %v530
        %533 = vperm.xlu0 %532, %v528
        %v534 = vpop.permute.xlu0 %533
        %v535 = vlaneseq
        %v536 = vshrl.u32 %v535, 7
        %v537 = vadd.s32 %v536, 8
        %538 = vset.pattern.permute.xlu0 %v537
        %539 = vperm.xlu0 %538, %v528
        %v540 = vpop.permute.xlu0 %539
        %v541 = vperm.slane %v358, 6
        %v542 = vlaneseq
        %v543 = vshrl.u32 %v542, 7
        %545 = vset.pattern.permute.xlu0 %v543
        %546 = vperm.xlu0 %545, %v541
        %v547 = vpop.permute.xlu0 %546
        %v548 = vlaneseq
        %v549 = vshrl.u32 %v548, 7
        %v550 = vadd.s32 %v549, 8
        %551 = vset.pattern.permute.xlu0 %v550
        %552 = vperm.xlu0 %551, %v541
        %v553 = vpop.permute.xlu0 %552
        %v554 = vperm.slane %v358, 7
        %v555 = vlaneseq
        %v556 = vshrl.u32 %v555, 7
        %558 = vset.pattern.permute.xlu0 %v556
        %559 = vperm.xlu0 %558, %v554
        %v560 = vpop.permute.xlu0 %559
        %v561 = vlaneseq
        %v562 = vshrl.u32 %v561, 7
        %v563 = vadd.s32 %v562, 8
        %564 = vset.pattern.permute.xlu0 %v563
        %565 = vperm.xlu0 %564, %v554
        %v566 = vpop.permute.xlu0 %565
        %v567 = vsub.f32 %v352, %v365
        %v568 = vsub.f32 %v352, %v371
        %v569 = vsub.f32 %v352, %v378
        %v570 = vsub.f32 %v352, %v384
        %v571 = vsub.f32 %v352, %v391
        %v572 = vsub.f32 %v352, %v397
        %v573 = vsub.f32 %v352, %v404
        %v574 = vsub.f32 %v352, %v410
        %v575 = vsub.f32 %v352, %v417
        %v576 = vsub.f32 %v352, %v423
        %v577 = vsub.f32 %v352, %v430
        %v578 = vsub.f32 %v352, %v436
        %v579 = vsub.f32 %v352, %v443
        %v580 = vsub.f32 %v352, %v449
        %v581 = vsub.f32 %v352, %v456
        %v582 = vsub.f32 %v352, %v462
        %v583 = vsub.f32 %v352, %v469
        %v584 = vsub.f32 %v352, %v475
        %v585 = vsub.f32 %v352, %v482
        %v586 = vsub.f32 %v352, %v488
        %v587 = vsub.f32 %v352, %v495
        %v588 = vsub.f32 %v352, %v501
        %v589 = vsub.f32 %v352, %v508
        %v590 = vsub.f32 %v352, %v514
        %v591 = vsub.f32 %v352, %v521
        %v592 = vsub.f32 %v352, %v527
        %v593 = vsub.f32 %v352, %v534
        %v594 = vsub.f32 %v352, %v540
        %v595 = vsub.f32 %v352, %v547
        %v596 = vsub.f32 %v352, %v553
        %v597 = vsub.f32 %v352, %v560
        %v598 = vsub.f32 %v352, %v566
        %v599 = vand.u32 2147483647, %v567
        %v600 = vand.u32 2147483647, %v568
        %v601 = vand.u32 2147483647, %v569
        %v602 = vand.u32 2147483647, %v570
        %v603 = vand.u32 2147483647, %v571
        %v604 = vand.u32 2147483647, %v572
        %v605 = vand.u32 2147483647, %v573
        %v606 = vand.u32 2147483647, %v574
        %v607 = vand.u32 2147483647, %v575
        %v608 = vand.u32 2147483647, %v576
        %v609 = vand.u32 2147483647, %v577
        %v610 = vand.u32 2147483647, %v578
        %v611 = vand.u32 2147483647, %v579
        %v612 = vand.u32 2147483647, %v580
        %v613 = vand.u32 2147483647, %v581
        %v614 = vand.u32 2147483647, %v582
        %v615 = vand.u32 2147483647, %v583
        %v616 = vand.u32 2147483647, %v584
        %v617 = vand.u32 2147483647, %v585
        %v618 = vand.u32 2147483647, %v586
        %v619 = vand.u32 2147483647, %v587
        %v620 = vand.u32 2147483647, %v588
        %v621 = vand.u32 2147483647, %v589
        %v622 = vand.u32 2147483647, %v590
        %v623 = vand.u32 2147483647, %v591
        %v624 = vand.u32 2147483647, %v592
        %v625 = vand.u32 2147483647, %v593
        %v626 = vand.u32 2147483647, %v594
        %v627 = vand.u32 2147483647, %v595
        %v628 = vand.u32 2147483647, %v596
        %v629 = vand.u32 2147483647, %v597
        %v630 = vand.u32 2147483647, %v598
        %v631 = vsub.f32 1.0, %v599
        %v632 = vsub.f32 1.0, %v600
        %v633 = vsub.f32 1.0, %v601
        %v634 = vsub.f32 1.0, %v602
        %v635 = vsub.f32 1.0, %v603
        %v636 = vsub.f32 1.0, %v604
        %v637 = vsub.f32 1.0, %v605
        %v638 = vsub.f32 1.0, %v606
        %v639 = vsub.f32 1.0, %v607
        %v640 = vsub.f32 1.0, %v608
        %v641 = vsub.f32 1.0, %v609
        %v642 = vsub.f32 1.0, %v610
        %v643 = vsub.f32 1.0, %v611
        %v644 = vsub.f32 1.0, %v612
        %v645 = vsub.f32 1.0, %v613
        %v646 = vsub.f32 1.0, %v614
        %v647 = vsub.f32 1.0, %v615
        %v648 = vsub.f32 1.0, %v616
        %v649 = vsub.f32 1.0, %v617
        %v650 = vsub.f32 1.0, %v618
        %v651 = vsub.f32 1.0, %v619
        %v652 = vsub.f32 1.0, %v620
        %v653 = vsub.f32 1.0, %v621
        %v654 = vsub.f32 1.0, %v622
        %v655 = vsub.f32 1.0, %v623
        %v656 = vsub.f32 1.0, %v624
        %v657 = vsub.f32 1.0, %v625
        %v658 = vsub.f32 1.0, %v626
        %v659 = vsub.f32 1.0, %v627
        %v660 = vsub.f32 1.0, %v628
        %v661 = vsub.f32 1.0, %v629
        %v662 = vsub.f32 1.0, %v630
        %v663 = vmax.f32 %v631, 0.0
        %v664 = vmax.f32 %v632, 0.0
        %v665 = vmax.f32 %v633, 0.0
        %v666 = vmax.f32 %v634, 0.0
        %v667 = vmax.f32 %v635, 0.0
        %v668 = vmax.f32 %v636, 0.0
        %v669 = vmax.f32 %v637, 0.0
        %v670 = vmax.f32 %v638, 0.0
        %v671 = vmax.f32 %v639, 0.0
        %v672 = vmax.f32 %v640, 0.0
        %v673 = vmax.f32 %v641, 0.0
        %v674 = vmax.f32 %v642, 0.0
        %v675 = vmax.f32 %v643, 0.0
        %v676 = vmax.f32 %v644, 0.0
        %v677 = vmax.f32 %v645, 0.0
        %v678 = vmax.f32 %v646, 0.0
        %v679 = vmax.f32 %v647, 0.0
        %v680 = vmax.f32 %v648, 0.0
        %v681 = vmax.f32 %v649, 0.0
        %v682 = vmax.f32 %v650, 0.0
        %v683 = vmax.f32 %v651, 0.0
        %v684 = vmax.f32 %v652, 0.0
        %v685 = vmax.f32 %v653, 0.0
        %v686 = vmax.f32 %v654, 0.0
        %v687 = vmax.f32 %v655, 0.0
        %v688 = vmax.f32 %v656, 0.0
        %v689 = vmax.f32 %v657, 0.0
        %v690 = vmax.f32 %v658, 0.0
        %v691 = vmax.f32 %v659, 0.0
        %v692 = vmax.f32 %v660, 0.0
        %v693 = vmax.f32 %v661, 0.0
        %v694 = vmax.f32 %v662, 0.0
        %v695 = vpack.c.bf16 %v663, %v663
        %v696 = vpack.c.bf16 %v664, %v664
        %v697 = vpack.c.bf16 %v665, %v665
        %v698 = vpack.c.bf16 %v666, %v666
        %v699 = vpack.c.bf16 %v667, %v667
        %v700 = vpack.c.bf16 %v668, %v668
        %v701 = vpack.c.bf16 %v669, %v669
        %v702 = vpack.c.bf16 %v670, %v670
        %v703 = vpack.c.bf16 %v671, %v671
        %v704 = vpack.c.bf16 %v672, %v672
        %v705 = vpack.c.bf16 %v673, %v673
        %v706 = vpack.c.bf16 %v674, %v674
        %v707 = vpack.c.bf16 %v675, %v675
        %v708 = vpack.c.bf16 %v676, %v676
        %v709 = vpack.c.bf16 %v677, %v677
        %v710 = vpack.c.bf16 %v678, %v678
        %v711 = vpack.c.bf16 %v679, %v679
        %v712 = vpack.c.bf16 %v680, %v680
        %v713 = vpack.c.bf16 %v681, %v681
        %v714 = vpack.c.bf16 %v682, %v682
        %v715 = vpack.c.bf16 %v683, %v683
        %v716 = vpack.c.bf16 %v684, %v684
        %v717 = vpack.c.bf16 %v685, %v685
        %v718 = vpack.c.bf16 %v686, %v686
        %v719 = vpack.c.bf16 %v687, %v687
        %v720 = vpack.c.bf16 %v688, %v688
        %v721 = vpack.c.bf16 %v689, %v689
        %v722 = vpack.c.bf16 %v690, %v690
        %v723 = vpack.c.bf16 %v691, %v691
        %v724 = vpack.c.bf16 %v692, %v692
        %v725 = vpack.c.bf16 %v693, %v693
        %v726 = vpack.c.bf16 %v694, %v694
        %vm727 = vcmp.ge.f32.partialorder %v352, %v348
        %vm728 = vcmp.ge.f32.partialorder %v352, %v349
        %v729 = vsel %vm727, 1, 0
        %v730 = vsel %vm728, 1, 0
        %v731 = vcvt.s32.f32 %v729
        %v732 = vcvt.s32.f32 %v730
        %v733 = vmul.f32 %v731, 0.5
        %v734 = vmul.f32 %v732, 0.5
        %v735 = vld [vmem:[#allocation5] sm:$0xff]
        %v736 = vld [vmem:[#allocation5 + $0x8] sm:$0xff]
        %v737 = vld [vmem:[#allocation5 + $0x10] sm:$0xff]
        %v738 = vld [vmem:[#allocation5 + $0x18] sm:$0xff]
        %v739 = vld [vmem:[#allocation5 + $0x20] sm:$0xff]
        %v740 = vld [vmem:[#allocation5 + $0x28] sm:$0xff]
        %v741 = vld [vmem:[#allocation5 + $0x30] sm:$0xff]
        %v742 = vld [vmem:[#allocation5 + $0x38] sm:$0xff]
        %v743 = vmul.f32 %v735, %v731
        %v744 = vmul.f32 %v736, %v732
        %v745 = vmul.f32 %v737, %v731
        %v746 = vmul.f32 %v738, %v732
        %v747 = vmul.f32 %v739, %v731
        %v748 = vmul.f32 %v740, %v732
        %v749 = vmul.f32 %v741, %v731
        %v750 = vmul.f32 %v742, %v732
        %s751 = scalar_lea.vmem %s331, 64 [#allocation8]
        %vm752 = vcmask 130048
        %753 = vst.msk [vmem:[%s751] sm:$0xff] %vm752, %v743
        %754 = vst.msk [vmem:[%s751 + $0x8] sm:$0xff] %vm752, %v744
        %755 = vst.msk [vmem:[%s751 + $0x10] sm:$0xff] %vm752, %v745
        %756 = vst.msk [vmem:[%s751 + $0x18] sm:$0xff] %vm752, %v746
        %757 = vst.msk [vmem:[%s751 + $0x20] sm:$0xff] %vm752, %v747
        %758 = vst.msk [vmem:[%s751 + $0x28] sm:$0xff] %vm752, %v748
        %759 = vst.msk [vmem:[%s751 + $0x30] sm:$0xff] %vm752, %v749
        %760 = vst.msk [vmem:[%s751 + $0x38] sm:$0xff] %vm752, %v750
        %v761 = vld [vmem:[%s342] sm:$0xf]
        %v762 = vld [vmem:[%s342 + $0x4] sm:$0x3]
        %v763 = vld [vmem:[%s342 + $0x8] sm:$0xf]
        %v764 = vld [vmem:[%s342 + $0xc] sm:$0x3]
        %v765 = vld [vmem:[%s342 + $0x10] sm:$0xf]
        %v766 = vld [vmem:[%s342 + $0x14] sm:$0x3]
        %v767 = vld [vmem:[%s342 + $0x18] sm:$0xf]
        %v768 = vld [vmem:[%s342 + $0x1c] sm:$0x3]
        %v769 = vld [vmem:[%s342 + $0x20] sm:$0xf]
        %v770 = vld [vmem:[%s342 + $0x24] sm:$0x3]
        %v771 = vld [vmem:[%s342 + $0x28] sm:$0xf]
        %v772 = vld [vmem:[%s342 + $0x2c] sm:$0x3]
        %v773 = vld [vmem:[%s342 + $0x30] sm:$0xf]
        %v774 = vld [vmem:[%s342 + $0x34] sm:$0x3]
        %v775 = vld [vmem:[%s342 + $0x38] sm:$0xf]
        %v776 = vld [vmem:[%s342 + $0x3c] sm:$0x3]
        %v777 = vld [vmem:[%s342 + $0x40] sm:$0xf]
        %v778 = vld [vmem:[%s342 + $0x44] sm:$0x3]
        %v779 = vld [vmem:[%s342 + $0x48] sm:$0xf]
        %v780 = vld [vmem:[%s342 + $0x4c] sm:$0x3]
        %v781 = vld [vmem:[%s342 + $0x50] sm:$0xf]
        %v782 = vld [vmem:[%s342 + $0x54] sm:$0x3]
        %v783 = vld [vmem:[%s342 + $0x58] sm:$0xf]
        %v784 = vld [vmem:[%s342 + $0x5c] sm:$0x3]
        %v785 = vld [vmem:[%s342 + $0x60] sm:$0xf]
        %v786 = vld [vmem:[%s342 + $0x64] sm:$0x3]
        %v787 = vld [vmem:[%s342 + $0x68] sm:$0xf]
        %v788 = vld [vmem:[%s342 + $0x6c] sm:$0x3]
        %v789 = vld [vmem:[%s342 + $0x70] sm:$0xf]
        %v790 = vld [vmem:[%s342 + $0x74] sm:$0x3]
        %v791 = vld [vmem:[%s342 + $0x78] sm:$0xf]
        %v792 = vld [vmem:[%s342 + $0x7c] sm:$0x3]
        %v795 = vunpack.c.l.b16 %v761
        %v796 = vunpack.c.l.b16 %v762
        %v797 = vpack.c.b16 %v796, %v795
        %v800 = vunpack.c.l.b16 %v695
        %v801 = vunpack.c.l.b16 %v696
        %v802 = vpack.c.b16 %v801, %v800
        %v804 = vsel %vm752, %v797, 0
        %v807 = vsel %vm752, %v802, 0
        %809 = vmatpush.bf16.xpose.msra.mxu0 0
        %810 = vmatpush.bf16.xpose.msra.mxu0 0
        %811 = vmatpush.bf16.xpose.msra.mxu0 0
        %812 = vmatpush.bf16.xpose.msra.mxu0 0
        %813 = vmatpush.bf16.xpose.msra.mxu0 0
        %814 = vmatpush.bf16.xpose.msra.mxu0 0
        %815 = vmatpush.bf16.xpose.msra.mxu0 0
        %816 = vmatpush.bf16.xpose.msra.mxu0 %v807
        %817 = vmatmul.bf16.gmra.mxu0 %v804
        %v818 = vpop.f32.mrf.mxu0
        %v819 = vadd.f32 0.0, %v818
        %v820 = vpop.f32.mrf.mxu0
        %v821 = vadd.f32 0.0, %v820
        %822 = vdwg.mxu0
        %v825 = vunpack.c.l.b16 %v763
        %v826 = vunpack.c.l.b16 %v764
        %v827 = vpack.c.b16 %v826, %v825
        %v830 = vunpack.c.l.b16 %v697
        %v831 = vunpack.c.l.b16 %v698
        %v832 = vpack.c.b16 %v831, %v830
        %v834 = vsel %vm752, %v827, 0
        %v837 = vsel %vm752, %v832, 0
        %839 = vmatpush.bf16.xpose.msra.mxu0 0
        %840 = vmatpush.bf16.xpose.msra.mxu0 0
        %841 = vmatpush.bf16.xpose.msra.mxu0 0
        %842 = vmatpush.bf16.xpose.msra.mxu0 0
        %843 = vmatpush.bf16.xpose.msra.mxu0 0
        %844 = vmatpush.bf16.xpose.msra.mxu0 0
        %845 = vmatpush.bf16.xpose.msra.mxu0 0
        %846 = vmatpush.bf16.xpose.msra.mxu0 %v837
        %847 = vmatmul.bf16.gmra.mxu0 %v834
        %v848 = vpop.f32.mrf.mxu0
        %v849 = vadd.f32 0.0, %v848
        %v850 = vpop.f32.mrf.mxu0
        %v851 = vadd.f32 0.0, %v850
        %852 = vdwg.mxu0
        %v855 = vunpack.c.l.b16 %v765
        %v856 = vunpack.c.l.b16 %v766
        %v857 = vpack.c.b16 %v856, %v855
        %v860 = vunpack.c.l.b16 %v699
        %v861 = vunpack.c.l.b16 %v700
        %v862 = vpack.c.b16 %v861, %v860
        %v864 = vsel %vm752, %v857, 0
        %v867 = vsel %vm752, %v862, 0
        %869 = vmatpush.bf16.xpose.msra.mxu0 0
        %870 = vmatpush.bf16.xpose.msra.mxu0 0
        %871 = vmatpush.bf16.xpose.msra.mxu0 0
        %872 = vmatpush.bf16.xpose.msra.mxu0 0
        %873 = vmatpush.bf16.xpose.msra.mxu0 0
        %874 = vmatpush.bf16.xpose.msra.mxu0 0
        %875 = vmatpush.bf16.xpose.msra.mxu0 0
        %876 = vmatpush.bf16.xpose.msra.mxu0 %v867
        %877 = vmatmul.bf16.gmra.mxu0 %v864
        %v878 = vpop.f32.mrf.mxu0
        %v879 = vadd.f32 0.0, %v878
        %v880 = vpop.f32.mrf.mxu0
        %v881 = vadd.f32 0.0, %v880
        %882 = vdwg.mxu0
        %v885 = vunpack.c.l.b16 %v767
        %v886 = vunpack.c.l.b16 %v768
        %v887 = vpack.c.b16 %v886, %v885
        %v890 = vunpack.c.l.b16 %v701
        %v891 = vunpack.c.l.b16 %v702
        %v892 = vpack.c.b16 %v891, %v890
        %v894 = vsel %vm752, %v887, 0
        %v897 = vsel %vm752, %v892, 0
        %899 = vmatpush.bf16.xpose.msra.mxu0 0
        %900 = vmatpush.bf16.xpose.msra.mxu0 0
        %901 = vmatpush.bf16.xpose.msra.mxu0 0
        %902 = vmatpush.bf16.xpose.msra.mxu0 0
        %903 = vmatpush.bf16.xpose.msra.mxu0 0
        %904 = vmatpush.bf16.xpose.msra.mxu0 0
        %905 = vmatpush.bf16.xpose.msra.mxu0 0
        %906 = vmatpush.bf16.xpose.msra.mxu0 %v897
        %907 = vmatmul.bf16.gmra.mxu0 %v894
        %v908 = vpop.f32.mrf.mxu0
        %v909 = vadd.f32 0.0, %v908
        %v910 = vpop.f32.mrf.mxu0
        %v911 = vadd.f32 0.0, %v910
        %912 = vdwg.mxu0
        %v915 = vunpack.c.l.b16 %v769
        %v916 = vunpack.c.l.b16 %v770
        %v917 = vpack.c.b16 %v916, %v915
        %v920 = vunpack.c.l.b16 %v703
        %v921 = vunpack.c.l.b16 %v704
        %v922 = vpack.c.b16 %v921, %v920
        %v924 = vsel %vm752, %v917, 0
        %v927 = vsel %vm752, %v922, 0
        %929 = vmatpush.bf16.xpose.msra.mxu0 0
        %930 = vmatpush.bf16.xpose.msra.mxu0 0
        %931 = vmatpush.bf16.xpose.msra.mxu0 0
        %932 = vmatpush.bf16.xpose.msra.mxu0 0
        %933 = vmatpush.bf16.xpose.msra.mxu0 0
        %934 = vmatpush.bf16.xpose.msra.mxu0 0
        %935 = vmatpush.bf16.xpose.msra.mxu0 0
        %936 = vmatpush.bf16.xpose.msra.mxu0 %v927
        %937 = vmatmul.bf16.gmra.mxu0 %v924
        %v938 = vpop.f32.mrf.mxu0
        %v939 = vadd.f32 0.0, %v938
        %v940 = vpop.f32.mrf.mxu0
        %v941 = vadd.f32 0.0, %v940
        %942 = vdwg.mxu0
        %v945 = vunpack.c.l.b16 %v771
        %v946 = vunpack.c.l.b16 %v772
        %v947 = vpack.c.b16 %v946, %v945
        %v950 = vunpack.c.l.b16 %v705
        %v951 = vunpack.c.l.b16 %v706
        %v952 = vpack.c.b16 %v951, %v950
        %v954 = vsel %vm752, %v947, 0
        %v957 = vsel %vm752, %v952, 0
        %959 = vmatpush.bf16.xpose.msra.mxu0 0
        %960 = vmatpush.bf16.xpose.msra.mxu0 0
        %961 = vmatpush.bf16.xpose.msra.mxu0 0
        %962 = vmatpush.bf16.xpose.msra.mxu0 0
        %963 = vmatpush.bf16.xpose.msra.mxu0 0
        %964 = vmatpush.bf16.xpose.msra.mxu0 0
        %965 = vmatpush.bf16.xpose.msra.mxu0 0
        %966 = vmatpush.bf16.xpose.msra.mxu0 %v957
        %967 = vmatmul.bf16.gmra.mxu0 %v954
        %v968 = vpop.f32.mrf.mxu0
        %v969 = vadd.f32 0.0, %v968
        %v970 = vpop.f32.mrf.mxu0
        %v971 = vadd.f32 0.0, %v970
        %972 = vdwg.mxu0
        %v975 = vunpack.c.l.b16 %v773
        %v976 = vunpack.c.l.b16 %v774
        %v977 = vpack.c.b16 %v976, %v975
        %v980 = vunpack.c.l.b16 %v707
        %v981 = vunpack.c.l.b16 %v708
        %v982 = vpack.c.b16 %v981, %v980
        %v984 = vsel %vm752, %v977, 0
        %v987 = vsel %vm752, %v982, 0
        %989 = vmatpush.bf16.xpose.msra.mxu0 0
        %990 = vmatpush.bf16.xpose.msra.mxu0 0
        %991 = vmatpush.bf16.xpose.msra.mxu0 0
        %992 = vmatpush.bf16.xpose.msra.mxu0 0
        %993 = vmatpush.bf16.xpose.msra.mxu0 0
        %994 = vmatpush.bf16.xpose.msra.mxu0 0
        %995 = vmatpush.bf16.xpose.msra.mxu0 0
        %996 = vmatpush.bf16.xpose.msra.mxu0 %v987
        %997 = vmatmul.bf16.gmra.mxu0 %v984
        %v998 = vpop.f32.mrf.mxu0
        %v999 = vadd.f32 0.0, %v998
        %v1000 = vpop.f32.mrf.mxu0
        %v1001 = vadd.f32 0.0, %v1000
        %1002 = vdwg.mxu0
        %v1005 = vunpack.c.l.b16 %v775
        %v1006 = vunpack.c.l.b16 %v776
        %v1007 = vpack.c.b16 %v1006, %v1005
        %v1010 = vunpack.c.l.b16 %v709
        %v1011 = vunpack.c.l.b16 %v710
        %v1012 = vpack.c.b16 %v1011, %v1010
        %v1014 = vsel %vm752, %v1007, 0
        %v1017 = vsel %vm752, %v1012, 0
        %1019 = vmatpush.bf16.xpose.msra.mxu0 0
        %1020 = vmatpush.bf16.xpose.msra.mxu0 0
        %1021 = vmatpush.bf16.xpose.msra.mxu0 0
        %1022 = vmatpush.bf16.xpose.msra.mxu0 0
        %1023 = vmatpush.bf16.xpose.msra.mxu0 0
        %1024 = vmatpush.bf16.xpose.msra.mxu0 0
        %1025 = vmatpush.bf16.xpose.msra.mxu0 0
        %1026 = vmatpush.bf16.xpose.msra.mxu0 %v1017
        %1027 = vmatmul.bf16.gmra.mxu0 %v1014
        %v1028 = vpop.f32.mrf.mxu0
        %v1029 = vadd.f32 0.0, %v1028
        %v1030 = vpop.f32.mrf.mxu0
        %v1031 = vadd.f32 0.0, %v1030
        %1032 = vdwg.mxu0
        %v1035 = vunpack.c.l.b16 %v777
        %v1036 = vunpack.c.l.b16 %v778
        %v1037 = vpack.c.b16 %v1036, %v1035
        %v1040 = vunpack.c.l.b16 %v711
        %v1041 = vunpack.c.l.b16 %v712
        %v1042 = vpack.c.b16 %v1041, %v1040
        %v1044 = vsel %vm752, %v1037, 0
        %v1047 = vsel %vm752, %v1042, 0
        %1049 = vmatpush.bf16.xpose.msra.mxu0 0
        %1050 = vmatpush.bf16.xpose.msra.mxu0 0
        %1051 = vmatpush.bf16.xpose.msra.mxu0 0
        %1052 = vmatpush.bf16.xpose.msra.mxu0 0
        %1053 = vmatpush.bf16.xpose.msra.mxu0 0
        %1054 = vmatpush.bf16.xpose.msra.mxu0 0
        %1055 = vmatpush.bf16.xpose.msra.mxu0 0
        %1056 = vmatpush.bf16.xpose.msra.mxu0 %v1047
        %1057 = vmatmul.bf16.gmra.mxu0 %v1044
        %v1058 = vpop.f32.mrf.mxu0
        %v1059 = vadd.f32 0.0, %v1058
        %v1060 = vpop.f32.mrf.mxu0
        %v1061 = vadd.f32 0.0, %v1060
        %1062 = vdwg.mxu0
        %v1065 = vunpack.c.l.b16 %v779
        %v1066 = vunpack.c.l.b16 %v780
        %v1067 = vpack.c.b16 %v1066, %v1065
        %v1070 = vunpack.c.l.b16 %v713
        %v1071 = vunpack.c.l.b16 %v714
        %v1072 = vpack.c.b16 %v1071, %v1070
        %v1074 = vsel %vm752, %v1067, 0
        %v1077 = vsel %vm752, %v1072, 0
        %1079 = vmatpush.bf16.xpose.msra.mxu0 0
        %1080 = vmatpush.bf16.xpose.msra.mxu0 0
        %1081 = vmatpush.bf16.xpose.msra.mxu0 0
        %1082 = vmatpush.bf16.xpose.msra.mxu0 0
        %1083 = vmatpush.bf16.xpose.msra.mxu0 0
        %1084 = vmatpush.bf16.xpose.msra.mxu0 0
        %1085 = vmatpush.bf16.xpose.msra.mxu0 0
        %1086 = vmatpush.bf16.xpose.msra.mxu0 %v1077
        %1087 = vmatmul.bf16.gmra.mxu0 %v1074
        %v1088 = vpop.f32.mrf.mxu0
        %v1089 = vadd.f32 0.0, %v1088
        %v1090 = vpop.f32.mrf.mxu0
        %v1091 = vadd.f32 0.0, %v1090
        %1092 = vdwg.mxu0
        %v1095 = vunpack.c.l.b16 %v781
        %v1096 = vunpack.c.l.b16 %v782
        %v1097 = vpack.c.b16 %v1096, %v1095
        %v1100 = vunpack.c.l.b16 %v715
        %v1101 = vunpack.c.l.b16 %v716
        %v1102 = vpack.c.b16 %v1101, %v1100
        %v1104 = vsel %vm752, %v1097, 0
        %v1107 = vsel %vm752, %v1102, 0
        %1109 = vmatpush.bf16.xpose.msra.mxu0 0
        %1110 = vmatpush.bf16.xpose.msra.mxu0 0
        %1111 = vmatpush.bf16.xpose.msra.mxu0 0
        %1112 = vmatpush.bf16.xpose.msra.mxu0 0
        %1113 = vmatpush.bf16.xpose.msra.mxu0 0
        %1114 = vmatpush.bf16.xpose.msra.mxu0 0
        %1115 = vmatpush.bf16.xpose.msra.mxu0 0
        %1116 = vmatpush.bf16.xpose.msra.mxu0 %v1107
        %1117 = vmatmul.bf16.gmra.mxu0 %v1104
        %v1118 = vpop.f32.mrf.mxu0
        %v1119 = vadd.f32 0.0, %v1118
        %v1120 = vpop.f32.mrf.mxu0
        %v1121 = vadd.f32 0.0, %v1120
        %1122 = vdwg.mxu0
        %v1125 = vunpack.c.l.b16 %v783
        %v1126 = vunpack.c.l.b16 %v784
        %v1127 = vpack.c.b16 %v1126, %v1125
        %v1130 = vunpack.c.l.b16 %v717
        %v1131 = vunpack.c.l.b16 %v718
        %v1132 = vpack.c.b16 %v1131, %v1130
        %v1134 = vsel %vm752, %v1127, 0
        %v1137 = vsel %vm752, %v1132, 0
        %1139 = vmatpush.bf16.xpose.msra.mxu0 0
        %1140 = vmatpush.bf16.xpose.msra.mxu0 0
        %1141 = vmatpush.bf16.xpose.msra.mxu0 0
        %1142 = vmatpush.bf16.xpose.msra.mxu0 0
        %1143 = vmatpush.bf16.xpose.msra.mxu0 0
        %1144 = vmatpush.bf16.xpose.msra.mxu0 0
        %1145 = vmatpush.bf16.xpose.msra.mxu0 0
        %1146 = vmatpush.bf16.xpose.msra.mxu0 %v1137
        %1147 = vmatmul.bf16.gmra.mxu0 %v1134
        %v1148 = vpop.f32.mrf.mxu0
        %v1149 = vadd.f32 0.0, %v1148
        %v1150 = vpop.f32.mrf.mxu0
        %v1151 = vadd.f32 0.0, %v1150
        %1152 = vdwg.mxu0
        %v1155 = vunpack.c.l.b16 %v785
        %v1156 = vunpack.c.l.b16 %v786
        %v1157 = vpack.c.b16 %v1156, %v1155
        %v1160 = vunpack.c.l.b16 %v719
        %v1161 = vunpack.c.l.b16 %v720
        %v1162 = vpack.c.b16 %v1161, %v1160
        %v1164 = vsel %vm752, %v1157, 0
        %v1167 = vsel %vm752, %v1162, 0
        %1169 = vmatpush.bf16.xpose.msra.mxu0 0
        %1170 = vmatpush.bf16.xpose.msra.mxu0 0
        %1171 = vmatpush.bf16.xpose.msra.mxu0 0
        %1172 = vmatpush.bf16.xpose.msra.mxu0 0
        %1173 = vmatpush.bf16.xpose.msra.mxu0 0
        %1174 = vmatpush.bf16.xpose.msra.mxu0 0
        %1175 = vmatpush.bf16.xpose.msra.mxu0 0
        %1176 = vmatpush.bf16.xpose.msra.mxu0 %v1167
        %1177 = vmatmul.bf16.gmra.mxu0 %v1164
        %v1178 = vpop.f32.mrf.mxu0
        %v1179 = vadd.f32 0.0, %v1178
        %v1180 = vpop.f32.mrf.mxu0
        %v1181 = vadd.f32 0.0, %v1180
        %1182 = vdwg.mxu0
        %v1185 = vunpack.c.l.b16 %v787
        %v1186 = vunpack.c.l.b16 %v788
        %v1187 = vpack.c.b16 %v1186, %v1185
        %v1190 = vunpack.c.l.b16 %v721
        %v1191 = vunpack.c.l.b16 %v722
        %v1192 = vpack.c.b16 %v1191, %v1190
        %v1194 = vsel %vm752, %v1187, 0
        %v1197 = vsel %vm752, %v1192, 0
        %1199 = vmatpush.bf16.xpose.msra.mxu0 0
        %1200 = vmatpush.bf16.xpose.msra.mxu0 0
        %1201 = vmatpush.bf16.xpose.msra.mxu0 0
        %1202 = vmatpush.bf16.xpose.msra.mxu0 0
        %1203 = vmatpush.bf16.xpose.msra.mxu0 0
        %1204 = vmatpush.bf16.xpose.msra.mxu0 0
        %1205 = vmatpush.bf16.xpose.msra.mxu0 0
        %1206 = vmatpush.bf16.xpose.msra.mxu0 %v1197
        %1207 = vmatmul.bf16.gmra.mxu0 %v1194
        %v1208 = vpop.f32.mrf.mxu0
        %v1209 = vadd.f32 0.0, %v1208
        %v1210 = vpop.f32.mrf.mxu0
        %v1211 = vadd.f32 0.0, %v1210
        %1212 = vdwg.mxu0
        %v1215 = vunpack.c.l.b16 %v789
        %v1216 = vunpack.c.l.b16 %v790
        %v1217 = vpack.c.b16 %v1216, %v1215
        %v1220 = vunpack.c.l.b16 %v723
        %v1221 = vunpack.c.l.b16 %v724
        %v1222 = vpack.c.b16 %v1221, %v1220
        %v1224 = vsel %vm752, %v1217, 0
        %v1227 = vsel %vm752, %v1222, 0
        %1229 = vmatpush.bf16.xpose.msra.mxu0 0
        %1230 = vmatpush.bf16.xpose.msra.mxu0 0
        %1231 = vmatpush.bf16.xpose.msra.mxu0 0
        %1232 = vmatpush.bf16.xpose.msra.mxu0 0
        %1233 = vmatpush.bf16.xpose.msra.mxu0 0
        %1234 = vmatpush.bf16.xpose.msra.mxu0 0
        %1235 = vmatpush.bf16.xpose.msra.mxu0 0
        %1236 = vmatpush.bf16.xpose.msra.mxu0 %v1227
        %1237 = vmatmul.bf16.gmra.mxu0 %v1224
        %v1238 = vpop.f32.mrf.mxu0
        %v1239 = vadd.f32 0.0, %v1238
        %v1240 = vpop.f32.mrf.mxu0
        %v1241 = vadd.f32 0.0, %v1240
        %1242 = vdwg.mxu0
        %v1245 = vunpack.c.l.b16 %v791
        %v1246 = vunpack.c.l.b16 %v792
        %v1247 = vpack.c.b16 %v1246, %v1245
        %v1250 = vunpack.c.l.b16 %v725
        %v1251 = vunpack.c.l.b16 %v726
        %v1252 = vpack.c.b16 %v1251, %v1250
        %v1254 = vsel %vm752, %v1247, 0
        %v1257 = vsel %vm752, %v1252, 0
        %1259 = vmatpush.bf16.xpose.msra.mxu0 0
        %1260 = vmatpush.bf16.xpose.msra.mxu0 0
        %1261 = vmatpush.bf16.xpose.msra.mxu0 0
        %1262 = vmatpush.bf16.xpose.msra.mxu0 0
        %1263 = vmatpush.bf16.xpose.msra.mxu0 0
        %1264 = vmatpush.bf16.xpose.msra.mxu0 0
        %1265 = vmatpush.bf16.xpose.msra.mxu0 0
        %1266 = vmatpush.bf16.xpose.msra.mxu0 %v1257
        %1267 = vmatmul.bf16.gmra.mxu0 %v1254
        %v1268 = vpop.f32.mrf.mxu0
        %v1269 = vadd.f32 0.0, %v1268
        %v1270 = vpop.f32.mrf.mxu0
        %v1271 = vadd.f32 0.0, %v1270
        %1272 = vdwg.mxu0
        %v1273 = vld [vmem:[#allocation2] sm:$0xff]
        %v1274 = vld [vmem:[#allocation2 + $0x8] sm:$0xff]
        %v1275 = vld [vmem:[#allocation2 + $0x10] sm:$0xff]
        %v1276 = vld [vmem:[#allocation2 + $0x18] sm:$0xff]
        %v1277 = vld [vmem:[#allocation2 + $0x20] sm:$0xff]
        %v1278 = vld [vmem:[#allocation2 + $0x28] sm:$0xff]
        %v1279 = vld [vmem:[#allocation2 + $0x30] sm:$0xff]
        %v1280 = vld [vmem:[#allocation2 + $0x38] sm:$0xff]
        %v1281 = vld [vmem:[#allocation2 + $0x40] sm:$0xff]
        %v1282 = vld [vmem:[#allocation2 + $0x48] sm:$0xff]
        %v1283 = vld [vmem:[#allocation2 + $0x50] sm:$0xff]
        %v1284 = vld [vmem:[#allocation2 + $0x58] sm:$0xff]
        %v1285 = vld [vmem:[#allocation2 + $0x60] sm:$0xff]
        %v1286 = vld [vmem:[#allocation2 + $0x68] sm:$0xff]
        %v1287 = vld [vmem:[#allocation2 + $0x70] sm:$0xff]
        %v1288 = vld [vmem:[#allocation2 + $0x78] sm:$0xff]
        %v1289 = vmul.f32 %v1273, %v819
        %v1290 = vmul.f32 %v1274, %v849
        %v1291 = vmul.f32 %v1275, %v879
        %v1292 = vmul.f32 %v1276, %v909
        %v1293 = vmul.f32 %v1277, %v939
        %v1294 = vmul.f32 %v1278, %v969
        %v1295 = vmul.f32 %v1279, %v999
        %v1296 = vmul.f32 %v1280, %v1029
        %v1297 = vmul.f32 %v1281, %v1059
        %v1298 = vmul.f32 %v1282, %v1089
        %v1299 = vmul.f32 %v1283, %v1119
        %v1300 = vmul.f32 %v1284, %v1149
        %v1301 = vmul.f32 %v1285, %v1179
        %v1302 = vmul.f32 %v1286, %v1209
        %v1303 = vmul.f32 %v1287, %v1239
        %v1304 = vmul.f32 %v1288, %v1269
        %vm1305 = vcmask 123904
        %v1306 = vsel %vm1305, %v1289, 0.0
        %v1307 = vrot.slane %v1306, 4
        %v1308 = vadd.f32 %v1306, %v1307
        %v1309 = vrot.slane %v1308, 2
        %v1310 = vadd.f32 %v1308, %v1309
        %v1311 = vrot.slane %v1310, 1
        %v1312 = vadd.f32 %v1310, %v1311
        %v1313 = vsel %vm1305, %v1290, 0.0
        %v1314 = vrot.slane %v1313, 4
        %v1315 = vadd.f32 %v1313, %v1314
        %v1316 = vrot.slane %v1315, 2
        %v1317 = vadd.f32 %v1315, %v1316
        %v1318 = vrot.slane %v1317, 1
        %v1319 = vadd.f32 %v1317, %v1318
        %v1320 = vsel %vm1305, %v1291, 0.0
        %v1321 = vrot.slane %v1320, 4
        %v1322 = vadd.f32 %v1320, %v1321
        %v1323 = vrot.slane %v1322, 2
        %v1324 = vadd.f32 %v1322, %v1323
        %v1325 = vrot.slane %v1324, 1
        %v1326 = vadd.f32 %v1324, %v1325
        %v1327 = vsel %vm1305, %v1292, 0.0
        %v1328 = vrot.slane %v1327, 4
        %v1329 = vadd.f32 %v1327, %v1328
        %v1330 = vrot.slane %v1329, 2
        %v1331 = vadd.f32 %v1329, %v1330
        %v1332 = vrot.slane %v1331, 1
        %v1333 = vadd.f32 %v1331, %v1332
        %v1334 = vsel %vm1305, %v1293, 0.0
        %v1335 = vrot.slane %v1334, 4
        %v1336 = vadd.f32 %v1334, %v1335
        %v1337 = vrot.slane %v1336, 2
        %v1338 = vadd.f32 %v1336, %v1337
        %v1339 = vrot.slane %v1338, 1
        %v1340 = vadd.f32 %v1338, %v1339
        %v1341 = vsel %vm1305, %v1294, 0.0
        %v1342 = vrot.slane %v1341, 4
        %v1343 = vadd.f32 %v1341, %v1342
        %v1344 = vrot.slane %v1343, 2
        %v1345 = vadd.f32 %v1343, %v1344
        %v1346 = vrot.slane %v1345, 1
        %v1347 = vadd.f32 %v1345, %v1346
        %v1348 = vsel %vm1305, %v1295, 0.0
        %v1349 = vrot.slane %v1348, 4
        %v1350 = vadd.f32 %v1348, %v1349
        %v1351 = vrot.slane %v1350, 2
        %v1352 = vadd.f32 %v1350, %v1351
        %v1353 = vrot.slane %v1352, 1
        %v1354 = vadd.f32 %v1352, %v1353
        %v1355 = vsel %vm1305, %v1296, 0.0
        %v1356 = vrot.slane %v1355, 4
        %v1357 = vadd.f32 %v1355, %v1356
        %v1358 = vrot.slane %v1357, 2
        %v1359 = vadd.f32 %v1357, %v1358
        %v1360 = vrot.slane %v1359, 1
        %v1361 = vadd.f32 %v1359, %v1360
        %v1362 = vsel %vm1305, %v1297, 0.0
        %v1363 = vrot.slane %v1362, 4
        %v1364 = vadd.f32 %v1362, %v1363
        %v1365 = vrot.slane %v1364, 2
        %v1366 = vadd.f32 %v1364, %v1365
        %v1367 = vrot.slane %v1366, 1
        %v1368 = vadd.f32 %v1366, %v1367
        %v1369 = vsel %vm1305, %v1298, 0.0
        %v1370 = vrot.slane %v1369, 4
        %v1371 = vadd.f32 %v1369, %v1370
        %v1372 = vrot.slane %v1371, 2
        %v1373 = vadd.f32 %v1371, %v1372
        %v1374 = vrot.slane %v1373, 1
        %v1375 = vadd.f32 %v1373, %v1374
        %v1376 = vsel %vm1305, %v1299, 0.0
        %v1377 = vrot.slane %v1376, 4
        %v1378 = vadd.f32 %v1376, %v1377
        %v1379 = vrot.slane %v1378, 2
        %v1380 = vadd.f32 %v1378, %v1379
        %v1381 = vrot.slane %v1380, 1
        %v1382 = vadd.f32 %v1380, %v1381
        %v1383 = vsel %vm1305, %v1300, 0.0
        %v1384 = vrot.slane %v1383, 4
        %v1385 = vadd.f32 %v1383, %v1384
        %v1386 = vrot.slane %v1385, 2
        %v1387 = vadd.f32 %v1385, %v1386
        %v1388 = vrot.slane %v1387, 1
        %v1389 = vadd.f32 %v1387, %v1388
        %v1390 = vsel %vm1305, %v1301, 0.0
        %v1391 = vrot.slane %v1390, 4
        %v1392 = vadd.f32 %v1390, %v1391
        %v1393 = vrot.slane %v1392, 2
        %v1394 = vadd.f32 %v1392, %v1393
        %v1395 = vrot.slane %v1394, 1
        %v1396 = vadd.f32 %v1394, %v1395
        %v1397 = vsel %vm1305, %v1302, 0.0
        %v1398 = vrot.slane %v1397, 4
        %v1399 = vadd.f32 %v1397, %v1398
        %v1400 = vrot.slane %v1399, 2
        %v1401 = vadd.f32 %v1399, %v1400
        %v1402 = vrot.slane %v1401, 1
        %v1403 = vadd.f32 %v1401, %v1402
        %v1404 = vsel %vm1305, %v1303, 0.0
        %v1405 = vrot.slane %v1404, 4
        %v1406 = vadd.f32 %v1404, %v1405
        %v1407 = vrot.slane %v1406, 2
        %v1408 = vadd.f32 %v1406, %v1407
        %v1409 = vrot.slane %v1408, 1
        %v1410 = vadd.f32 %v1408, %v1409
        %v1411 = vsel %vm1305, %v1304, 0.0
        %v1412 = vrot.slane %v1411, 4
        %v1413 = vadd.f32 %v1411, %v1412
        %v1414 = vrot.slane %v1413, 2
        %v1415 = vadd.f32 %v1413, %v1414
        %v1416 = vrot.slane %v1415, 1
        %v1417 = vadd.f32 %v1415, %v1416
        %v1420 = vrot.slane %v733, 1
        %v1421 = vrot.slane %v733, 2
        %v1422 = vrot.slane %v733, 3
        %v1423 = vrot.slane %v733, 4
        %v1424 = vrot.slane %v733, 5
        %v1425 = vrot.slane %v733, 6
        %v1426 = vrot.slane %v733, 7
        %v1427 = vrot.slane %v734, 1
        %v1428 = vrot.slane %v734, 2
        %v1429 = vrot.slane %v734, 3
        %v1430 = vrot.slane %v734, 4
        %v1431 = vrot.slane %v734, 5
        %v1432 = vrot.slane %v734, 6
        %v1433 = vrot.slane %v734, 7
        %v1450 = vmul.f32 %v1312, %v733
        %v1451 = vmul.f32 %v1319, %v1420
        %v1452 = vmul.f32 %v1326, %v1421
        %v1453 = vmul.f32 %v1333, %v1422
        %v1454 = vmul.f32 %v1340, %v1423
        %v1455 = vmul.f32 %v1347, %v1424
        %v1456 = vmul.f32 %v1354, %v1425
        %v1457 = vmul.f32 %v1361, %v1426
        %v1458 = vmul.f32 %v1368, %v734
        %v1459 = vmul.f32 %v1375, %v1427
        %v1460 = vmul.f32 %v1382, %v1428
        %v1461 = vmul.f32 %v1389, %v1429
        %v1462 = vmul.f32 %v1396, %v1430
        %v1463 = vmul.f32 %v1403, %v1431
        %v1464 = vmul.f32 %v1410, %v1432
        %v1465 = vmul.f32 %v1417, %v1433
        %v1482 = vrot.slane %v1451, 7
        %vm1483 = vcmask 1041409
        %v1484 = vsel %vm1483, %v1482, %v1450
        %v1485 = vrot.slane %v1452, 6
        %vm1486 = vcmask 1042434
        %v1487 = vsel %vm1486, %v1485, %v1484
        %v1488 = vrot.slane %v1453, 5
        %vm1489 = vcmask 1043459
        %v1490 = vsel %vm1489, %v1488, %v1487
        %v1491 = vrot.slane %v1454, 4
        %vm1492 = vcmask 1044484
        %v1493 = vsel %vm1492, %v1491, %v1490
        %v1494 = vrot.slane %v1455, 3
        %vm1495 = vcmask 1045509
        %v1496 = vsel %vm1495, %v1494, %v1493
        %v1497 = vrot.slane %v1456, 2
        %vm1498 = vcmask 1046534
        %v1499 = vsel %vm1498, %v1497, %v1496
        %v1500 = vrot.slane %v1457, 1
        %vm1501 = vcmask 1047559
        %v1502 = vsel %vm1501, %v1500, %v1499
        %v1503 = vrot.slane %v1459, 7
        %v1504 = vsel %vm1483, %v1503, %v1458
        %v1505 = vrot.slane %v1460, 6
        %v1506 = vsel %vm1486, %v1505, %v1504
        %v1507 = vrot.slane %v1461, 5
        %v1508 = vsel %vm1489, %v1507, %v1506
        %v1509 = vrot.slane %v1462, 4
        %v1510 = vsel %vm1492, %v1509, %v1508
        %v1511 = vrot.slane %v1463, 3
        %v1512 = vsel %vm1495, %v1511, %v1510
        %v1513 = vrot.slane %v1464, 2
        %v1514 = vsel %vm1498, %v1513, %v1512
        %v1515 = vrot.slane %v1465, 1
        %v1516 = vsel %vm1501, %v1515, %v1514
        %1519 = vst.msk [vmem:[%s331] sm:$0xff] %vm752, %v1502
        %1520 = vst.msk [vmem:[%s331 + $0x8] sm:$0xff] %vm752, %v1516
        %v1537 = vrot.slane %v1289, 2
        %v1538 = vrot.slane %v1290, 2
        %v1539 = vrot.slane %v1291, 2
        %v1540 = vrot.slane %v1292, 2
        %v1541 = vrot.slane %v1293, 2
        %v1542 = vrot.slane %v1294, 2
        %v1543 = vrot.slane %v1295, 2
        %v1544 = vrot.slane %v1296, 2
        %v1545 = vrot.slane %v1297, 2
        %v1546 = vrot.slane %v1298, 2
        %v1547 = vrot.slane %v1299, 2
        %v1548 = vrot.slane %v1300, 2
        %v1549 = vrot.slane %v1301, 2
        %v1550 = vrot.slane %v1302, 2
        %v1551 = vrot.slane %v1303, 2
        %v1552 = vrot.slane %v1304, 2
        %v1569 = vsel %vm1305, %v1537, 0.0
        %v1570 = vrot.slane %v1569, 4
        %v1571 = vadd.f32 %v1569, %v1570
        %v1572 = vrot.slane %v1571, 2
        %v1573 = vadd.f32 %v1571, %v1572
        %v1574 = vrot.slane %v1573, 1
        %v1575 = vadd.f32 %v1573, %v1574
        %v1576 = vsel %vm1305, %v1538, 0.0
        %v1577 = vrot.slane %v1576, 4
        %v1578 = vadd.f32 %v1576, %v1577
        %v1579 = vrot.slane %v1578, 2
        %v1580 = vadd.f32 %v1578, %v1579
        %v1581 = vrot.slane %v1580, 1
        %v1582 = vadd.f32 %v1580, %v1581
        %v1583 = vsel %vm1305, %v1539, 0.0
        %v1584 = vrot.slane %v1583, 4
        %v1585 = vadd.f32 %v1583, %v1584
        %v1586 = vrot.slane %v1585, 2
        %v1587 = vadd.f32 %v1585, %v1586
        %v1588 = vrot.slane %v1587, 1
        %v1589 = vadd.f32 %v1587, %v1588
        %v1590 = vsel %vm1305, %v1540, 0.0
        %v1591 = vrot.slane %v1590, 4
        %v1592 = vadd.f32 %v1590, %v1591
        %v1593 = vrot.slane %v1592, 2
        %v1594 = vadd.f32 %v1592, %v1593
        %v1595 = vrot.slane %v1594, 1
        %v1596 = vadd.f32 %v1594, %v1595
        %v1597 = vsel %vm1305, %v1541, 0.0
        %v1598 = vrot.slane %v1597, 4
        %v1599 = vadd.f32 %v1597, %v1598
        %v1600 = vrot.slane %v1599, 2
        %v1601 = vadd.f32 %v1599, %v1600
        %v1602 = vrot.slane %v1601, 1
        %v1603 = vadd.f32 %v1601, %v1602
        %v1604 = vsel %vm1305, %v1542, 0.0
        %v1605 = vrot.slane %v1604, 4
        %v1606 = vadd.f32 %v1604, %v1605
        %v1607 = vrot.slane %v1606, 2
        %v1608 = vadd.f32 %v1606, %v1607
        %v1609 = vrot.slane %v1608, 1
        %v1610 = vadd.f32 %v1608, %v1609
        %v1611 = vsel %vm1305, %v1543, 0.0
        %v1612 = vrot.slane %v1611, 4
        %v1613 = vadd.f32 %v1611, %v1612
        %v1614 = vrot.slane %v1613, 2
        %v1615 = vadd.f32 %v1613, %v1614
        %v1616 = vrot.slane %v1615, 1
        %v1617 = vadd.f32 %v1615, %v1616
        %v1618 = vsel %vm1305, %v1544, 0.0
        %v1619 = vrot.slane %v1618, 4
        %v1620 = vadd.f32 %v1618, %v1619
        %v1621 = vrot.slane %v1620, 2
        %v1622 = vadd.f32 %v1620, %v1621
        %v1623 = vrot.slane %v1622, 1
        %v1624 = vadd.f32 %v1622, %v1623
        %v1625 = vsel %vm1305, %v1545, 0.0
        %v1626 = vrot.slane %v1625, 4
        %v1627 = vadd.f32 %v1625, %v1626
        %v1628 = vrot.slane %v1627, 2
        %v1629 = vadd.f32 %v1627, %v1628
        %v1630 = vrot.slane %v1629, 1
        %v1631 = vadd.f32 %v1629, %v1630
        %v1632 = vsel %vm1305, %v1546, 0.0
        %v1633 = vrot.slane %v1632, 4
        %v1634 = vadd.f32 %v1632, %v1633
        %v1635 = vrot.slane %v1634, 2
        %v1636 = vadd.f32 %v1634, %v1635
        %v1637 = vrot.slane %v1636, 1
        %v1638 = vadd.f32 %v1636, %v1637
        %v1639 = vsel %vm1305, %v1547, 0.0
        %v1640 = vrot.slane %v1639, 4
        %v1641 = vadd.f32 %v1639, %v1640
        %v1642 = vrot.slane %v1641, 2
        %v1643 = vadd.f32 %v1641, %v1642
        %v1644 = vrot.slane %v1643, 1
        %v1645 = vadd.f32 %v1643, %v1644
        %v1646 = vsel %vm1305, %v1548, 0.0
        %v1647 = vrot.slane %v1646, 4
        %v1648 = vadd.f32 %v1646, %v1647
        %v1649 = vrot.slane %v1648, 2
        %v1650 = vadd.f32 %v1648, %v1649
        %v1651 = vrot.slane %v1650, 1
        %v1652 = vadd.f32 %v1650, %v1651
        %v1653 = vsel %vm1305, %v1549, 0.0
        %v1654 = vrot.slane %v1653, 4
        %v1655 = vadd.f32 %v1653, %v1654
        %v1656 = vrot.slane %v1655, 2
        %v1657 = vadd.f32 %v1655, %v1656
        %v1658 = vrot.slane %v1657, 1
        %v1659 = vadd.f32 %v1657, %v1658
        %v1660 = vsel %vm1305, %v1550, 0.0
        %v1661 = vrot.slane %v1660, 4
        %v1662 = vadd.f32 %v1660, %v1661
        %v1663 = vrot.slane %v1662, 2
        %v1664 = vadd.f32 %v1662, %v1663
        %v1665 = vrot.slane %v1664, 1
        %v1666 = vadd.f32 %v1664, %v1665
        %v1667 = vsel %vm1305, %v1551, 0.0
        %v1668 = vrot.slane %v1667, 4
        %v1669 = vadd.f32 %v1667, %v1668
        %v1670 = vrot.slane %v1669, 2
        %v1671 = vadd.f32 %v1669, %v1670
        %v1672 = vrot.slane %v1671, 1
        %v1673 = vadd.f32 %v1671, %v1672
        %v1674 = vsel %vm1305, %v1552, 0.0
        %v1675 = vrot.slane %v1674, 4
        %v1676 = vadd.f32 %v1674, %v1675
        %v1677 = vrot.slane %v1676, 2
        %v1678 = vadd.f32 %v1676, %v1677
        %v1679 = vrot.slane %v1678, 1
        %v1680 = vadd.f32 %v1678, %v1679
        %v1681 = vmul.f32 %v1575, %v733
        %v1682 = vmul.f32 %v1582, %v1420
        %v1683 = vmul.f32 %v1589, %v1421
        %v1684 = vmul.f32 %v1596, %v1422
        %v1685 = vmul.f32 %v1603, %v1423
        %v1686 = vmul.f32 %v1610, %v1424
        %v1687 = vmul.f32 %v1617, %v1425
        %v1688 = vmul.f32 %v1624, %v1426
        %v1689 = vmul.f32 %v1631, %v734
        %v1690 = vmul.f32 %v1638, %v1427
        %v1691 = vmul.f32 %v1645, %v1428
        %v1692 = vmul.f32 %v1652, %v1429
        %v1693 = vmul.f32 %v1659, %v1430
        %v1694 = vmul.f32 %v1666, %v1431
        %v1695 = vmul.f32 %v1673, %v1432
        %v1696 = vmul.f32 %v1680, %v1433
        %v1713 = vrot.slane %v1682, 7
        %v1714 = vsel %vm1483, %v1713, %v1681
        %v1715 = vrot.slane %v1683, 6
        %v1716 = vsel %vm1486, %v1715, %v1714
        %v1717 = vrot.slane %v1684, 5
        %v1718 = vsel %vm1489, %v1717, %v1716
        %v1719 = vrot.slane %v1685, 4
        %v1720 = vsel %vm1492, %v1719, %v1718
        %v1721 = vrot.slane %v1686, 3
        %v1722 = vsel %vm1495, %v1721, %v1720
        %v1723 = vrot.slane %v1687, 2
        %v1724 = vsel %vm1498, %v1723, %v1722
        %v1725 = vrot.slane %v1688, 1
        %v1726 = vsel %vm1501, %v1725, %v1724
        %v1727 = vrot.slane %v1690, 7
        %v1728 = vsel %vm1483, %v1727, %v1689
        %v1729 = vrot.slane %v1691, 6
        %v1730 = vsel %vm1486, %v1729, %v1728
        %v1731 = vrot.slane %v1692, 5
        %v1732 = vsel %vm1489, %v1731, %v1730
        %v1733 = vrot.slane %v1693, 4
        %v1734 = vsel %vm1492, %v1733, %v1732
        %v1735 = vrot.slane %v1694, 3
        %v1736 = vsel %vm1495, %v1735, %v1734
        %v1737 = vrot.slane %v1695, 2
        %v1738 = vsel %vm1498, %v1737, %v1736
        %v1739 = vrot.slane %v1696, 1
        %v1740 = vsel %vm1501, %v1739, %v1738
        %s1743 = scalar_lea.vmem %s331, 16 [#allocation8]
        %1744 = vst.msk [vmem:[%s1743] sm:$0xff] %vm752, %v1726
        %1745 = vst.msk [vmem:[%s1743 + $0x8] sm:$0xff] %vm752, %v1740
        %v1746 = vrot.slane %v1289, 4
        %v1747 = vrot.slane %v1290, 4
        %v1748 = vrot.slane %v1291, 4
        %v1749 = vrot.slane %v1292, 4
        %v1750 = vrot.slane %v1293, 4
        %v1751 = vrot.slane %v1294, 4
        %v1752 = vrot.slane %v1295, 4
        %v1753 = vrot.slane %v1296, 4
        %v1754 = vrot.slane %v1297, 4
        %v1755 = vrot.slane %v1298, 4
        %v1756 = vrot.slane %v1299, 4
        %v1757 = vrot.slane %v1300, 4
        %v1758 = vrot.slane %v1301, 4
        %v1759 = vrot.slane %v1302, 4
        %v1760 = vrot.slane %v1303, 4
        %v1761 = vrot.slane %v1304, 4
        %v1778 = vsel %vm1305, %v1746, 0.0
        %v1779 = vrot.slane %v1778, 4
        %v1780 = vadd.f32 %v1778, %v1779
        %v1781 = vrot.slane %v1780, 2
        %v1782 = vadd.f32 %v1780, %v1781
        %v1783 = vrot.slane %v1782, 1
        %v1784 = vadd.f32 %v1782, %v1783
        %v1785 = vsel %vm1305, %v1747, 0.0
        %v1786 = vrot.slane %v1785, 4
        %v1787 = vadd.f32 %v1785, %v1786
        %v1788 = vrot.slane %v1787, 2
        %v1789 = vadd.f32 %v1787, %v1788
        %v1790 = vrot.slane %v1789, 1
        %v1791 = vadd.f32 %v1789, %v1790
        %v1792 = vsel %vm1305, %v1748, 0.0
        %v1793 = vrot.slane %v1792, 4
        %v1794 = vadd.f32 %v1792, %v1793
        %v1795 = vrot.slane %v1794, 2
        %v1796 = vadd.f32 %v1794, %v1795
        %v1797 = vrot.slane %v1796, 1
        %v1798 = vadd.f32 %v1796, %v1797
        %v1799 = vsel %vm1305, %v1749, 0.0
        %v1800 = vrot.slane %v1799, 4
        %v1801 = vadd.f32 %v1799, %v1800
        %v1802 = vrot.slane %v1801, 2
        %v1803 = vadd.f32 %v1801, %v1802
        %v1804 = vrot.slane %v1803, 1
        %v1805 = vadd.f32 %v1803, %v1804
        %v1806 = vsel %vm1305, %v1750, 0.0
        %v1807 = vrot.slane %v1806, 4
        %v1808 = vadd.f32 %v1806, %v1807
        %v1809 = vrot.slane %v1808, 2
        %v1810 = vadd.f32 %v1808, %v1809
        %v1811 = vrot.slane %v1810, 1
        %v1812 = vadd.f32 %v1810, %v1811
        %v1813 = vsel %vm1305, %v1751, 0.0
        %v1814 = vrot.slane %v1813, 4
        %v1815 = vadd.f32 %v1813, %v1814
        %v1816 = vrot.slane %v1815, 2
        %v1817 = vadd.f32 %v1815, %v1816
        %v1818 = vrot.slane %v1817, 1
        %v1819 = vadd.f32 %v1817, %v1818
        %v1820 = vsel %vm1305, %v1752, 0.0
        %v1821 = vrot.slane %v1820, 4
        %v1822 = vadd.f32 %v1820, %v1821
        %v1823 = vrot.slane %v1822, 2
        %v1824 = vadd.f32 %v1822, %v1823
        %v1825 = vrot.slane %v1824, 1
        %v1826 = vadd.f32 %v1824, %v1825
        %v1827 = vsel %vm1305, %v1753, 0.0
        %v1828 = vrot.slane %v1827, 4
        %v1829 = vadd.f32 %v1827, %v1828
        %v1830 = vrot.slane %v1829, 2
        %v1831 = vadd.f32 %v1829, %v1830
        %v1832 = vrot.slane %v1831, 1
        %v1833 = vadd.f32 %v1831, %v1832
        %v1834 = vsel %vm1305, %v1754, 0.0
        %v1835 = vrot.slane %v1834, 4
        %v1836 = vadd.f32 %v1834, %v1835
        %v1837 = vrot.slane %v1836, 2
        %v1838 = vadd.f32 %v1836, %v1837
        %v1839 = vrot.slane %v1838, 1
        %v1840 = vadd.f32 %v1838, %v1839
        %v1841 = vsel %vm1305, %v1755, 0.0
        %v1842 = vrot.slane %v1841, 4
        %v1843 = vadd.f32 %v1841, %v1842
        %v1844 = vrot.slane %v1843, 2
        %v1845 = vadd.f32 %v1843, %v1844
        %v1846 = vrot.slane %v1845, 1
        %v1847 = vadd.f32 %v1845, %v1846
        %v1848 = vsel %vm1305, %v1756, 0.0
        %v1849 = vrot.slane %v1848, 4
        %v1850 = vadd.f32 %v1848, %v1849
        %v1851 = vrot.slane %v1850, 2
        %v1852 = vadd.f32 %v1850, %v1851
        %v1853 = vrot.slane %v1852, 1
        %v1854 = vadd.f32 %v1852, %v1853
        %v1855 = vsel %vm1305, %v1757, 0.0
        %v1856 = vrot.slane %v1855, 4
        %v1857 = vadd.f32 %v1855, %v1856
        %v1858 = vrot.slane %v1857, 2
        %v1859 = vadd.f32 %v1857, %v1858
        %v1860 = vrot.slane %v1859, 1
        %v1861 = vadd.f32 %v1859, %v1860
        %v1862 = vsel %vm1305, %v1758, 0.0
        %v1863 = vrot.slane %v1862, 4
        %v1864 = vadd.f32 %v1862, %v1863
        %v1865 = vrot.slane %v1864, 2
        %v1866 = vadd.f32 %v1864, %v1865
        %v1867 = vrot.slane %v1866, 1
        %v1868 = vadd.f32 %v1866, %v1867
        %v1869 = vsel %vm1305, %v1759, 0.0
        %v1870 = vrot.slane %v1869, 4
        %v1871 = vadd.f32 %v1869, %v1870
        %v1872 = vrot.slane %v1871, 2
        %v1873 = vadd.f32 %v1871, %v1872
        %v1874 = vrot.slane %v1873, 1
        %v1875 = vadd.f32 %v1873, %v1874
        %v1876 = vsel %vm1305, %v1760, 0.0
        %v1877 = vrot.slane %v1876, 4
        %v1878 = vadd.f32 %v1876, %v1877
        %v1879 = vrot.slane %v1878, 2
        %v1880 = vadd.f32 %v1878, %v1879
        %v1881 = vrot.slane %v1880, 1
        %v1882 = vadd.f32 %v1880, %v1881
        %v1883 = vsel %vm1305, %v1761, 0.0
        %v1884 = vrot.slane %v1883, 4
        %v1885 = vadd.f32 %v1883, %v1884
        %v1886 = vrot.slane %v1885, 2
        %v1887 = vadd.f32 %v1885, %v1886
        %v1888 = vrot.slane %v1887, 1
        %v1889 = vadd.f32 %v1887, %v1888
        %v1890 = vmul.f32 %v1784, %v733
        %v1891 = vmul.f32 %v1791, %v1420
        %v1892 = vmul.f32 %v1798, %v1421
        %v1893 = vmul.f32 %v1805, %v1422
        %v1894 = vmul.f32 %v1812, %v1423
        %v1895 = vmul.f32 %v1819, %v1424
        %v1896 = vmul.f32 %v1826, %v1425
        %v1897 = vmul.f32 %v1833, %v1426
        %v1898 = vmul.f32 %v1840, %v734
        %v1899 = vmul.f32 %v1847, %v1427
        %v1900 = vmul.f32 %v1854, %v1428
        %v1901 = vmul.f32 %v1861, %v1429
        %v1902 = vmul.f32 %v1868, %v1430
        %v1903 = vmul.f32 %v1875, %v1431
        %v1904 = vmul.f32 %v1882, %v1432
        %v1905 = vmul.f32 %v1889, %v1433
        %v1922 = vrot.slane %v1891, 7
        %v1923 = vsel %vm1483, %v1922, %v1890
        %v1924 = vrot.slane %v1892, 6
        %v1925 = vsel %vm1486, %v1924, %v1923
        %v1926 = vrot.slane %v1893, 5
        %v1927 = vsel %vm1489, %v1926, %v1925
        %v1928 = vrot.slane %v1894, 4
        %v1929 = vsel %vm1492, %v1928, %v1927
        %v1930 = vrot.slane %v1895, 3
        %v1931 = vsel %vm1495, %v1930, %v1929
        %v1932 = vrot.slane %v1896, 2
        %v1933 = vsel %vm1498, %v1932, %v1931
        %v1934 = vrot.slane %v1897, 1
        %v1935 = vsel %vm1501, %v1934, %v1933
        %v1936 = vrot.slane %v1899, 7
        %v1937 = vsel %vm1483, %v1936, %v1898
        %v1938 = vrot.slane %v1900, 6
        %v1939 = vsel %vm1486, %v1938, %v1937
        %v1940 = vrot.slane %v1901, 5
        %v1941 = vsel %vm1489, %v1940, %v1939
        %v1942 = vrot.slane %v1902, 4
        %v1943 = vsel %vm1492, %v1942, %v1941
        %v1944 = vrot.slane %v1903, 3
        %v1945 = vsel %vm1495, %v1944, %v1943
        %v1946 = vrot.slane %v1904, 2
        %v1947 = vsel %vm1498, %v1946, %v1945
        %v1948 = vrot.slane %v1905, 1
        %v1949 = vsel %vm1501, %v1948, %v1947
        %s1952 = scalar_lea.vmem %s331, 32 [#allocation8]
        %1953 = vst.msk [vmem:[%s1952] sm:$0xff] %vm752, %v1935
        %1954 = vst.msk [vmem:[%s1952 + $0x8] sm:$0xff] %vm752, %v1949
        %v1955 = vrot.slane %v1289, 6
        %v1956 = vrot.slane %v1290, 6
        %v1957 = vrot.slane %v1291, 6
        %v1958 = vrot.slane %v1292, 6
        %v1959 = vrot.slane %v1293, 6
        %v1960 = vrot.slane %v1294, 6
        %v1961 = vrot.slane %v1295, 6
        %v1962 = vrot.slane %v1296, 6
        %v1963 = vrot.slane %v1297, 6
        %v1964 = vrot.slane %v1298, 6
        %v1965 = vrot.slane %v1299, 6
        %v1966 = vrot.slane %v1300, 6
        %v1967 = vrot.slane %v1301, 6
        %v1968 = vrot.slane %v1302, 6
        %v1969 = vrot.slane %v1303, 6
        %v1970 = vrot.slane %v1304, 6
        %v1987 = vsel %vm1305, %v1955, 0.0
        %v1988 = vrot.slane %v1987, 4
        %v1989 = vadd.f32 %v1987, %v1988
        %v1990 = vrot.slane %v1989, 2
        %v1991 = vadd.f32 %v1989, %v1990
        %v1992 = vrot.slane %v1991, 1
        %v1993 = vadd.f32 %v1991, %v1992
        %v1994 = vsel %vm1305, %v1956, 0.0
        %v1995 = vrot.slane %v1994, 4
        %v1996 = vadd.f32 %v1994, %v1995
        %v1997 = vrot.slane %v1996, 2
        %v1998 = vadd.f32 %v1996, %v1997
        %v1999 = vrot.slane %v1998, 1
        %v2000 = vadd.f32 %v1998, %v1999
        %v2001 = vsel %vm1305, %v1957, 0.0
        %v2002 = vrot.slane %v2001, 4
        %v2003 = vadd.f32 %v2001, %v2002
        %v2004 = vrot.slane %v2003, 2
        %v2005 = vadd.f32 %v2003, %v2004
        %v2006 = vrot.slane %v2005, 1
        %v2007 = vadd.f32 %v2005, %v2006
        %v2008 = vsel %vm1305, %v1958, 0.0
        %v2009 = vrot.slane %v2008, 4
        %v2010 = vadd.f32 %v2008, %v2009
        %v2011 = vrot.slane %v2010, 2
        %v2012 = vadd.f32 %v2010, %v2011
        %v2013 = vrot.slane %v2012, 1
        %v2014 = vadd.f32 %v2012, %v2013
        %v2015 = vsel %vm1305, %v1959, 0.0
        %v2016 = vrot.slane %v2015, 4
        %v2017 = vadd.f32 %v2015, %v2016
        %v2018 = vrot.slane %v2017, 2
        %v2019 = vadd.f32 %v2017, %v2018
        %v2020 = vrot.slane %v2019, 1
        %v2021 = vadd.f32 %v2019, %v2020
        %v2022 = vsel %vm1305, %v1960, 0.0
        %v2023 = vrot.slane %v2022, 4
        %v2024 = vadd.f32 %v2022, %v2023
        %v2025 = vrot.slane %v2024, 2
        %v2026 = vadd.f32 %v2024, %v2025
        %v2027 = vrot.slane %v2026, 1
        %v2028 = vadd.f32 %v2026, %v2027
        %v2029 = vsel %vm1305, %v1961, 0.0
        %v2030 = vrot.slane %v2029, 4
        %v2031 = vadd.f32 %v2029, %v2030
        %v2032 = vrot.slane %v2031, 2
        %v2033 = vadd.f32 %v2031, %v2032
        %v2034 = vrot.slane %v2033, 1
        %v2035 = vadd.f32 %v2033, %v2034
        %v2036 = vsel %vm1305, %v1962, 0.0
        %v2037 = vrot.slane %v2036, 4
        %v2038 = vadd.f32 %v2036, %v2037
        %v2039 = vrot.slane %v2038, 2
        %v2040 = vadd.f32 %v2038, %v2039
        %v2041 = vrot.slane %v2040, 1
        %v2042 = vadd.f32 %v2040, %v2041
        %v2043 = vsel %vm1305, %v1963, 0.0
        %v2044 = vrot.slane %v2043, 4
        %v2045 = vadd.f32 %v2043, %v2044
        %v2046 = vrot.slane %v2045, 2
        %v2047 = vadd.f32 %v2045, %v2046
        %v2048 = vrot.slane %v2047, 1
        %v2049 = vadd.f32 %v2047, %v2048
        %v2050 = vsel %vm1305, %v1964, 0.0
        %v2051 = vrot.slane %v2050, 4
        %v2052 = vadd.f32 %v2050, %v2051
        %v2053 = vrot.slane %v2052, 2
        %v2054 = vadd.f32 %v2052, %v2053
        %v2055 = vrot.slane %v2054, 1
        %v2056 = vadd.f32 %v2054, %v2055
        %v2057 = vsel %vm1305, %v1965, 0.0
        %v2058 = vrot.slane %v2057, 4
        %v2059 = vadd.f32 %v2057, %v2058
        %v2060 = vrot.slane %v2059, 2
        %v2061 = vadd.f32 %v2059, %v2060
        %v2062 = vrot.slane %v2061, 1
        %v2063 = vadd.f32 %v2061, %v2062
        %v2064 = vsel %vm1305, %v1966, 0.0
        %v2065 = vrot.slane %v2064, 4
        %v2066 = vadd.f32 %v2064, %v2065
        %v2067 = vrot.slane %v2066, 2
        %v2068 = vadd.f32 %v2066, %v2067
        %v2069 = vrot.slane %v2068, 1
        %v2070 = vadd.f32 %v2068, %v2069
        %v2071 = vsel %vm1305, %v1967, 0.0
        %v2072 = vrot.slane %v2071, 4
        %v2073 = vadd.f32 %v2071, %v2072
        %v2074 = vrot.slane %v2073, 2
        %v2075 = vadd.f32 %v2073, %v2074
        %v2076 = vrot.slane %v2075, 1
        %v2077 = vadd.f32 %v2075, %v2076
        %v2078 = vsel %vm1305, %v1968, 0.0
        %v2079 = vrot.slane %v2078, 4
        %v2080 = vadd.f32 %v2078, %v2079
        %v2081 = vrot.slane %v2080, 2
        %v2082 = vadd.f32 %v2080, %v2081
        %v2083 = vrot.slane %v2082, 1
        %v2084 = vadd.f32 %v2082, %v2083
        %v2085 = vsel %vm1305, %v1969, 0.0
        %v2086 = vrot.slane %v2085, 4
        %v2087 = vadd.f32 %v2085, %v2086
        %v2088 = vrot.slane %v2087, 2
        %v2089 = vadd.f32 %v2087, %v2088
        %v2090 = vrot.slane %v2089, 1
        %v2091 = vadd.f32 %v2089, %v2090
        %v2092 = vsel %vm1305, %v1970, 0.0
        %v2093 = vrot.slane %v2092, 4
        %v2094 = vadd.f32 %v2092, %v2093
        %v2095 = vrot.slane %v2094, 2
        %v2096 = vadd.f32 %v2094, %v2095
        %v2097 = vrot.slane %v2096, 1
        %v2098 = vadd.f32 %v2096, %v2097
        %v2099 = vmul.f32 %v1993, %v733
        %v2100 = vmul.f32 %v2000, %v1420
        %v2101 = vmul.f32 %v2007, %v1421
        %v2102 = vmul.f32 %v2014, %v1422
        %v2103 = vmul.f32 %v2021, %v1423
        %v2104 = vmul.f32 %v2028, %v1424
        %v2105 = vmul.f32 %v2035, %v1425
        %v2106 = vmul.f32 %v2042, %v1426
        %v2107 = vmul.f32 %v2049, %v734
        %v2108 = vmul.f32 %v2056, %v1427
        %v2109 = vmul.f32 %v2063, %v1428
        %v2110 = vmul.f32 %v2070, %v1429
        %v2111 = vmul.f32 %v2077, %v1430
        %v2112 = vmul.f32 %v2084, %v1431
        %v2113 = vmul.f32 %v2091, %v1432
        %v2114 = vmul.f32 %v2098, %v1433
        %v2131 = vrot.slane %v2100, 7
        %v2132 = vsel %vm1483, %v2131, %v2099
        %v2133 = vrot.slane %v2101, 6
        %v2134 = vsel %vm1486, %v2133, %v2132
        %v2135 = vrot.slane %v2102, 5
        %v2136 = vsel %vm1489, %v2135, %v2134
        %v2137 = vrot.slane %v2103, 4
        %v2138 = vsel %vm1492, %v2137, %v2136
        %v2139 = vrot.slane %v2104, 3
        %v2140 = vsel %vm1495, %v2139, %v2138
        %v2141 = vrot.slane %v2105, 2
        %v2142 = vsel %vm1498, %v2141, %v2140
        %v2143 = vrot.slane %v2106, 1
        %v2144 = vsel %vm1501, %v2143, %v2142
        %v2145 = vrot.slane %v2108, 7
        %v2146 = vsel %vm1483, %v2145, %v2107
        %v2147 = vrot.slane %v2109, 6
        %v2148 = vsel %vm1486, %v2147, %v2146
        %v2149 = vrot.slane %v2110, 5
        %v2150 = vsel %vm1489, %v2149, %v2148
        %v2151 = vrot.slane %v2111, 4
        %v2152 = vsel %vm1492, %v2151, %v2150
        %v2153 = vrot.slane %v2112, 3
        %v2154 = vsel %vm1495, %v2153, %v2152
        %v2155 = vrot.slane %v2113, 2
        %v2156 = vsel %vm1498, %v2155, %v2154
        %v2157 = vrot.slane %v2114, 1
        %v2158 = vsel %vm1501, %v2157, %v2156
        %s2161 = scalar_lea.vmem %s331, 48 [#allocation8]
        %2162 = vst.msk [vmem:[%s2161] sm:$0xff] %vm752, %v2144
        %2163 = vst.msk [vmem:[%s2161 + $0x8] sm:$0xff] %vm752, %v2158
        %v2164 = vrot.slane %v881, 4
        %vm2165 = vcmask 1047556
        %v2166 = vsel %vm2165, %v2164, %v821
        %v2168 = vunpack.c.l.s4 1983009808
        %v2169 = vunpack.c.0.s8 %v2168
        %v2170 = vperm.slane %v2166, %v2169
        %v2171 = vrot.slane %v911, 4
        %v2172 = vsel %vm2165, %v2171, %v851
        %v2174 = vunpack.c.l.s4 1983009808
        %v2175 = vunpack.c.0.s8 %v2174
        %v2176 = vperm.slane %v2172, %v2175
        %v2177 = vrot.slane %v1001, 4
        %v2178 = vsel %vm2165, %v2177, %v941
        %v2180 = vunpack.c.l.s4 1983009808
        %v2181 = vunpack.c.0.s8 %v2180
        %v2182 = vperm.slane %v2178, %v2181
        %v2183 = vrot.slane %v1031, 4
        %v2184 = vsel %vm2165, %v2183, %v971
        %v2186 = vunpack.c.l.s4 1983009808
        %v2187 = vunpack.c.0.s8 %v2186
        %v2188 = vperm.slane %v2184, %v2187
        %v2189 = vrot.slane %v2176, 4
        %v2190 = vsel %vm2165, %v2189, %v2170
        %v2191 = vrot.slane %v2170, 4
        %v2192 = vsel %vm2165, %v2176, %v2191
        %v2194 = vunpack.c.l.s4 1934713408
        %v2195 = vunpack.c.0.s8 %v2194
        %v2196 = vperm.slane %v2190, %v2195
        %v2198 = vunpack.c.l.s4 1934713408
        %v2199 = vunpack.c.0.s8 %v2198
        %v2200 = vperm.slane %v2192, %v2199
        %v2201 = vrot.slane %v2188, 4
        %v2202 = vsel %vm2165, %v2201, %v2182
        %v2203 = vrot.slane %v2182, 4
        %v2204 = vsel %vm2165, %v2188, %v2203
        %v2206 = vunpack.c.l.s4 1934713408
        %v2207 = vunpack.c.0.s8 %v2206
        %v2208 = vperm.slane %v2202, %v2207
        %v2210 = vunpack.c.l.s4 1934713408
        %v2211 = vunpack.c.0.s8 %v2210
        %v2212 = vperm.slane %v2204, %v2211
        %v2213 = vrot.slane %v2208, 4
        %v2214 = vsel %vm2165, %v2213, %v2196
        %v2215 = vrot.slane %v2196, 4
        %v2216 = vsel %vm2165, %v2208, %v2215
        %v2217 = vrot.slane %v2212, 4
        %v2218 = vsel %vm2165, %v2217, %v2200
        %v2219 = vrot.slane %v2200, 4
        %v2220 = vsel %vm2165, %v2212, %v2219
        %v2221 = vrot.slane %v1121, 4
        %v2222 = vsel %vm2165, %v2221, %v1061
        %v2224 = vunpack.c.l.s4 1983009808
        %v2225 = vunpack.c.0.s8 %v2224
        %v2226 = vperm.slane %v2222, %v2225
        %v2227 = vrot.slane %v1151, 4
        %v2228 = vsel %vm2165, %v2227, %v1091
        %v2230 = vunpack.c.l.s4 1983009808
        %v2231 = vunpack.c.0.s8 %v2230
        %v2232 = vperm.slane %v2228, %v2231
        %v2233 = vrot.slane %v1241, 4
        %v2234 = vsel %vm2165, %v2233, %v1181
        %v2236 = vunpack.c.l.s4 1983009808
        %v2237 = vunpack.c.0.s8 %v2236
        %v2238 = vperm.slane %v2234, %v2237
        %v2239 = vrot.slane %v1271, 4
        %v2240 = vsel %vm2165, %v2239, %v1211
        %v2242 = vunpack.c.l.s4 1983009808
        %v2243 = vunpack.c.0.s8 %v2242
        %v2244 = vperm.slane %v2240, %v2243
        %v2245 = vrot.slane %v2232, 4
        %v2246 = vsel %vm2165, %v2245, %v2226
        %v2247 = vrot.slane %v2226, 4
        %v2248 = vsel %vm2165, %v2232, %v2247
        %v2250 = vunpack.c.l.s4 1934713408
        %v2251 = vunpack.c.0.s8 %v2250
        %v2252 = vperm.slane %v2246, %v2251
        %v2254 = vunpack.c.l.s4 1934713408
        %v2255 = vunpack.c.0.s8 %v2254
        %v2256 = vperm.slane %v2248, %v2255
        %v2257 = vrot.slane %v2244, 4
        %v2258 = vsel %vm2165, %v2257, %v2238
        %v2259 = vrot.slane %v2238, 4
        %v2260 = vsel %vm2165, %v2244, %v2259
        %v2262 = vunpack.c.l.s4 1934713408
        %v2263 = vunpack.c.0.s8 %v2262
        %v2264 = vperm.slane %v2258, %v2263
        %v2266 = vunpack.c.l.s4 1934713408
        %v2267 = vunpack.c.0.s8 %v2266
        %v2268 = vperm.slane %v2260, %v2267
        %v2269 = vrot.slane %v2264, 4
        %v2270 = vsel %vm2165, %v2269, %v2252
        %v2271 = vrot.slane %v2252, 4
        %v2272 = vsel %vm2165, %v2264, %v2271
        %v2273 = vrot.slane %v2268, 4
        %v2274 = vsel %vm2165, %v2273, %v2256
        %v2275 = vrot.slane %v2256, 4
        %v2276 = vsel %vm2165, %v2268, %v2275
        %s2277 = scalar_lea.vmem %s331, 128 [#allocation8]
        %2278 = vst.msk [vmem:[%s2277] sm:$0xff] %vm752, %v2214
        %2279 = vst.msk [vmem:[%s2277 + $0x8] sm:$0xff] %vm752, %v2270
        %2280 = vst.msk [vmem:[%s2277 + $0x10] sm:$0xff] %vm752, %v2216
        %2281 = vst.msk [vmem:[%s2277 + $0x18] sm:$0xff] %vm752, %v2272
        %2282 = vst.msk [vmem:[%s2277 + $0x20] sm:$0xff] %vm752, %v2218
        %2283 = vst.msk [vmem:[%s2277 + $0x28] sm:$0xff] %vm752, %v2274
        %2284 = vst.msk [vmem:[%s2277 + $0x30] sm:$0xff] %vm752, %v2220
        %2285 = vst.msk [vmem:[%s2277 + $0x38] sm:$0xff] %vm752, %v2276
        %s2286 = sand.u32 %s165, 1
        %s2287 = scalar_lea.sflag [#allocation4], %s2286
        %s2288 = sand.u32 %s165, 1
        %s2289 = smul.addr %s2288, 192
        %s2290 = scalar_lea.vmem [#allocation8], %s2289
        // Predicated region
        $region49: #{tpu_custom_call.1} parent=35 // pred_check
          %p2291 = pneg %p175
        $region50: #{tpu_custom_call.1} parent=35 // pred_check_branch
          %2293 = sbr.rel (%p2291) target = $region52
        $region51: #{tpu_custom_call.1} parent=35 // pred_region
          #allocation10 [shape = 'u32[6]{0}', space=smem, size = 0x18, scoped, tag = 'DMA stride descriptor']
          %s2294 = smul.u32 2, %s26
          %2296 = vsyncadd %s2287, 0
          %s2297 = smul.addr %s27, 2
          %s2298 = sadd.s32 %s2294, %s2297
          %s2299 = smul.addr %s25, 192
          %s2300 = sadd.s32 %s2298, %s2299
          %s2301 = smul.addr %s2300, 8
          %s2302 = scalar_lea.hbm %s4, %s2301
          %s2304 = sshll.u32 1, 14
          %s2305 = sxor.u32 4294967295, %s2304
          %s2308 = sshll.u32 7, 18
          %s2309 = sxor.u32 4294967295, %s2308
          %s2310 = sand.u32 0, %s2309
          %s2312 = sor.u32 %s2310, 0
          %s2313 = sshll.u32 %s2290, 4
          %s2314 = int_to_ptr.vmem [resolvable:$true] %s2313
          %s2315 = sshll.u32 %s2302, 4
          %s2316 = int_to_ptr.hbm [resolvable:$true] %s2315
          %2322 = sst [smem:[#allocation10]] 256
          %s2323 = scalar_lea.smem [#allocation10], 1
          %2324 = sst [smem:[%s2323]] 2048
          %s2325 = scalar_lea.smem [#allocation10], 2
          %2326 = sst [smem:[%s2325]] 2
          %s2327 = scalar_lea.smem [#allocation10], 3
          %2328 = sst [smem:[%s2327]] 128
          %s2329 = scalar_lea.smem [#allocation10], 4
          %2330 = sst [smem:[%s2329]] 128
          %s2331 = scalar_lea.smem [#allocation10], 5
          %2332 = sst [smem:[%s2331]] 8
          %2334 = dma.general %s2314, 3072, %s2316, %s2287, [#allocation9], [#allocation10], %s2312, 0
        $region52: #{tpu_custom_call.1} parent=35 // pred_fallthru
          _
      $region36: #{tpu_custom_call.1} parent=5 // pred_fallthru
        _
      %p2335 = scmp.le.s32.totalorder 2, %s15
      // Predicated region
      $region53: #{tpu_custom_call.1} parent=5 // pred_check
        %p2336 = pneg %p2335
      $region54: #{tpu_custom_call.1} parent=5 // pred_check_branch
        %2338 = sbr.rel (%p2336) target = $region56
      $region55: #{tpu_custom_call.1} parent=5 // pred_region
        %s2339 = ssub.s32 %s15, 2
        // Predicated region
        $region57: #{tpu_custom_call.1} parent=55 // pred_check
          %p2340 = pneg %p181
        $region58: #{tpu_custom_call.1} parent=55 // pred_check_branch
          %2342 = sbr.rel (%p2340) target = $region60
        $region59: #{tpu_custom_call.1} parent=55 // pred_region
          %s2343 = sand.u32 %s166, 1
          %s2344 = scalar_lea.sflag [#allocation4], %s2343
          %s2345 = sand.u32 %s166, 1
          %s2346 = smul.addr %s2345, 192
          %s2347 = scalar_lea.vmem [#allocation8], %s2346
          %2349 = dma.done %s2344, 3072
        $region60: #{tpu_custom_call.1} parent=55 // pred_fallthru
          _
      $region56: #{tpu_custom_call.1} parent=5 // pred_fallthru
        _
    $region6: #{tpu_custom_call.1} parent=1 // loop_footer
      %s19 = sadd.s32 1, %s15
    $region7: #{tpu_custom_call.1} parent=1 // loop_footer_branch
      %14 = sbr.rel target = $region3
    $region8: #{tpu_custom_call.1} parent=1 // loop_exit
      _
    %2350 = vsyncpa [#allocation3], 1
    %s2351 = scalar_lea.sflag [#allocation3], 1
    %2352 = vsyncpa %s2351, 1
    %2353 = vsyncpa [#allocation6], 1
    %2354 = vsyncpa [#allocation4], 1
    %s2355 = scalar_lea.sflag [#allocation4], 1
    %2356 = vsyncpa %s2355, 1

// kernel: tpu_custom_call.1
$region0: #{tpu_custom_call.1}
  #allocation0 [shape = 'u32[]', space=smem, size = 0x4, offset = 0x4, fixed_abs, tag = 'smem constant byte address 0x4 - core index']
  #allocation1 [shape = 'u32[72,128]{1,0:T(1,128)}', space=vmem, size = 0x9000, scoped, tag = 'internal scratch']
  #allocation9 [shape = 's32[]', space=sflag, size = 0x4, offset = 0, fixed_abs, tag = 'sflag constant byte address 0x0 - dummy sync flag']
  %s0 = inlined_call_operand.hbm [shape: f32[2,16,8,16], index: 0, kind: input, shape index: {}]
  %s1 = inlined_call_operand.vmem [shape: bf16[2,16,12,16], index: 1, kind: input, shape index: {}]
  %s2 = inlined_call_operand.hbm [shape: f32[2,4,16,16], index: 2, kind: input, shape index: {}]
  %s3 = inlined_call_operand.hbm [shape: f32[2,8,16,16], index: 3, kind: input, shape index: {}]
  %s4 = inlined_call_operand.hbm [shape: f32[2,12,8,16,16], index: 4, kind: output, shape index: {}]
  %s5 = sld [smem:[#allocation0]]
  $region61: #{tpu_custom_call.1} parent=0
    _
  %s7 = ssub.s32 1, %s5
  %s8 = scalar_select 0, %s7, %s5
  $region1: #{tpu_custom_call.1} parent=0
    #allocation2 [shape = 'u8[131072]{0}', space=vmem, size = 0x20000, scoped, tag = 'input window, operand 0']
    #allocation3 [shape = 's32[2]{0}', space=sflag, size = 0x8, scoped, tag = 'scoped memory for tpu_custom_call.1']
    #allocation4 [shape = 's32[2]{0}', space=sflag, size = 0x8, scoped, tag = 'scoped memory for tpu_custom_call.1']
    #allocation5 [shape = 'u8[65536]{0}', space=vmem, size = 0x10000, scoped, tag = 'input window, operand 2']
    #allocation6 [shape = 's32[2]{0}', space=sflag, size = 0x8, scoped, tag = 'scoped memory for tpu_custom_call.1']
    #allocation7 [shape = 'u8[16384]{0}', space=vmem, size = 0x4000, scoped, tag = 'input window, operand 3']
    #allocation8 [shape = 'u8[196608]{0}', space=vmem, size = 0x30000, scoped, tag = 'output window, operand 0']
    %9 = vsyncpa [#allocation3], 0
    %s10 = scalar_lea.sflag [#allocation3], 1
    %11 = vsyncpa %s10, 0
    %12 = vsyncpa [#allocation6], 0
    %s13 = scalar_lea.sflag [#allocation6], 1
    %14 = vsyncpa %s13, 0
    %15 = vsyncpa [#allocation4], 0
    %s16 = scalar_lea.sflag [#allocation4], 1
    %17 = vsyncpa %s16, 0
    loop: start=0, step=1, limit=18
    $region2: #{tpu_custom_call.1} parent=1 // loop_pre_header
      _
    $region3: #{tpu_custom_call.1} parent=1 // loop_header
      %s19 = sphi 0, %s23
      %p20 = scmp.ge.s32.totalorder %s19, 18
      %s26 = sphi 0, %s45
      %s27 = sphi 0, %s41
      %s28 = sphi 0, %s37
      %s29 = sphi 0, %s26
      %s30 = sphi 0, %s27
      %s31 = sphi 0, %s28
      %s32 = sphi 0, %s29
      %s33 = sphi 0, %s30
      %s34 = sphi 0, %s31
      %s50 = sphi 0, %s52
      %s53 = sphi 0, %s50
      %s54 = sphi 0, %s53
      %s70 = sphi 0, %s54
      %s78 = sphi 0, %s80
      %s81 = sphi 0, %s78
      %s82 = sphi 0, %s81
      %s98 = sphi 0, %s82
      %s106 = sphi 0, %s108
      %s109 = sphi 0, %s106
      %s110 = sphi 0, %s109
      %s126 = sphi 0, %s110
      %s136 = sphi 0, %s138
      %s139 = sphi 0, %s136
      %s140 = sphi 0, %s139
      %s156 = sphi 0, %s140
      %s166 = sphi 0, %s168
      %s169 = sphi 0, %s166
      %s170 = sphi 0, %s169
      %s186 = sphi 0, %s170
    $region4: #{tpu_custom_call.1} parent=1 // loop_header_branch
      %22 = sbr.rel (%p20) target = $region8
    $region5: #{tpu_custom_call.1} parent=1 // loop_body
      %s24 = ssub.s32 %s19, 1
      %s25 = ssub.s32 %s19, 2
      %s35 = sadd.s32 1, %s28
      %p36 = scmp.ge.s32.totalorder %s35, 8
      %s37 = scalar_select %p36, 0, %s35
      %s38 = sadd.s32 1, %s27
      %s39 = scalar_select %p36, %s38, %s27
      %p40 = scmp.ge.s32.totalorder %s39, 1
      %s41 = scalar_select %p40, 0, %s39
      %s42 = sadd.s32 1, %s26
      %s43 = scalar_select %p40, %s42, %s26
      %p44 = scmp.ge.s32.totalorder %s43, 2
      %s45 = scalar_select %p44, 0, %s43
      %s46 = ssub.s32 %s26, %s45
      %s47 = ssub.s32 %s27, %s41
      %s48 = sor.u32 %s46, %s47
      %p49 = scmp.eq.s32.totalorder %s48, 0
      %s51 = sadd.s32 %s50, 1
      %s52 = scalar_select %p49, %s50, %s51
      %p55 = pneg %p49
      %p56 = scmp.eq.s32.totalorder %s19, 15
      %p57 = por %p55, %p56
      %p58 = scmp.ne.s32.totalorder %s50, %s53
      %p59 = scmp.eq.s32.totalorder %s19, 0
      %p60 = por %p58, %p59
      %p61 = scmp.ne.s32.totalorder %s50, %s53
      %p62 = scmp.eq.s32.totalorder %s24, 15
      %p63 = por %p61, %p62
      %p64 = scmp.ne.s32.totalorder %s53, %s54
      %p65 = scmp.eq.s32.totalorder %s24, 0
      %p66 = por %p64, %p65
      %p67 = scmp.ne.s32.totalorder %s53, %s54
      %p68 = scmp.eq.s32.totalorder %s25, 15
      %p69 = por %p67, %p68
      %p71 = scmp.ne.s32.totalorder %s54, %s70
      %p72 = scmp.eq.s32.totalorder %s25, 0
      %p73 = por %p71, %p72
      %s74 = ssub.s32 %s26, %s45
      %s75 = ssub.s32 %s27, %s41
      %s76 = sor.u32 %s74, %s75
      %p77 = scmp.eq.s32.totalorder %s76, 0
      %s79 = sadd.s32 %s78, 1
      %s80 = scalar_select %p77, %s78, %s79
      %p83 = pneg %p77
      %p84 = scmp.eq.s32.totalorder %s19, 15
      %p85 = por %p83, %p84
      %p86 = scmp.ne.s32.totalorder %s78, %s81
      %p87 = scmp.eq.s32.totalorder %s19, 0
      %p88 = por %p86, %p87
      %p89 = scmp.ne.s32.totalorder %s78, %s81
      %p90 = scmp.eq.s32.totalorder %s24, 15
      %p91 = por %p89, %p90
      %p92 = scmp.ne.s32.totalorder %s81, %s82
      %p93 = scmp.eq.s32.totalorder %s24, 0
      %p94 = por %p92, %p93
      %p95 = scmp.ne.s32.totalorder %s81, %s82
      %p96 = scmp.eq.s32.totalorder %s25, 15
      %p97 = por %p95, %p96
      %p99 = scmp.ne.s32.totalorder %s82, %s98
      %p100 = scmp.eq.s32.totalorder %s25, 0
      %p101 = por %p99, %p100
      %s102 = ssub.s32 %s26, %s45
      %s103 = ssub.s32 %s27, %s41
      %s104 = sor.u32 %s102, %s103
      %p105 = scmp.eq.s32.totalorder %s104, 0
      %s107 = sadd.s32 %s106, 1
      %s108 = scalar_select %p105, %s106, %s107
      %p111 = pneg %p105
      %p112 = scmp.eq.s32.totalorder %s19, 15
      %p113 = por %p111, %p112
      %p114 = scmp.ne.s32.totalorder %s106, %s109
      %p115 = scmp.eq.s32.totalorder %s19, 0
      %p116 = por %p114, %p115
      %p117 = scmp.ne.s32.totalorder %s106, %s109
      %p118 = scmp.eq.s32.totalorder %s24, 15
      %p119 = por %p117, %p118
      %p120 = scmp.ne.s32.totalorder %s109, %s110
      %p121 = scmp.eq.s32.totalorder %s24, 0
      %p122 = por %p120, %p121
      %p123 = scmp.ne.s32.totalorder %s109, %s110
      %p124 = scmp.eq.s32.totalorder %s25, 15
      %p125 = por %p123, %p124
      %p127 = scmp.ne.s32.totalorder %s110, %s126
      %p128 = scmp.eq.s32.totalorder %s25, 0
      %p129 = por %p127, %p128
      %s130 = ssub.s32 %s26, %s45
      %s131 = ssub.s32 %s28, %s37
      %s132 = sor.u32 %s130, %s131
      %s133 = ssub.s32 %s27, %s41
      %s134 = sor.u32 %s132, %s133
      %p135 = scmp.eq.s32.totalorder %s134, 0
      %s137 = sadd.s32 %s136, 1
      %s138 = scalar_select %p135, %s136, %s137
      %p141 = pneg %p135
      %p142 = scmp.eq.s32.totalorder %s19, 15
      %p143 = por %p141, %p142
      %p144 = scmp.ne.s32.totalorder %s136, %s139
      %p145 = scmp.eq.s32.totalorder %s19, 0
      %p146 = por %p144, %p145
      %p147 = scmp.ne.s32.totalorder %s136, %s139
      %p148 = scmp.eq.s32.totalorder %s24, 15
      %p149 = por %p147, %p148
      %p150 = scmp.ne.s32.totalorder %s139, %s140
      %p151 = scmp.eq.s32.totalorder %s24, 0
      %p152 = por %p150, %p151
      %p153 = scmp.ne.s32.totalorder %s139, %s140
      %p154 = scmp.eq.s32.totalorder %s25, 15
      %p155 = por %p153, %p154
      %p157 = scmp.ne.s32.totalorder %s140, %s156
      %p158 = scmp.eq.s32.totalorder %s25, 0
      %p159 = por %p157, %p158
      %s160 = ssub.s32 %s26, %s45
      %s161 = ssub.s32 %s28, %s37
      %s162 = sor.u32 %s160, %s161
      %s163 = ssub.s32 %s27, %s41
      %s164 = sor.u32 %s162, %s163
      %p165 = scmp.eq.s32.totalorder %s164, 0
      %s167 = sadd.s32 %s166, 1
      %s168 = scalar_select %p165, %s166, %s167
      %p171 = pneg %p165
      %p172 = scmp.eq.s32.totalorder %s19, 15
      %p173 = por %p171, %p172
      %p174 = scmp.ne.s32.totalorder %s166, %s169
      %p175 = scmp.eq.s32.totalorder %s19, 0
      %p176 = por %p174, %p175
      %p177 = scmp.ne.s32.totalorder %s166, %s169
      %p178 = scmp.eq.s32.totalorder %s24, 15
      %p179 = por %p177, %p178
      %p180 = scmp.ne.s32.totalorder %s169, %s170
      %p181 = scmp.eq.s32.totalorder %s24, 0
      %p182 = por %p180, %p181
      %p183 = scmp.ne.s32.totalorder %s169, %s170
      %p184 = scmp.eq.s32.totalorder %s25, 15
      %p185 = por %p183, %p184
      %p187 = scmp.ne.s32.totalorder %s170, %s186
      %p188 = scmp.eq.s32.totalorder %s25, 0
      %p189 = por %p187, %p188
      %p190 = scmp.le.s32.totalorder 1, %s19
      %p191 = scmp.lt.s32.totalorder %s19, 17
      %p192 = pnand %p190, %p191
      %p193 = pneg %p192
      // Predicated region
      $region9: #{tpu_custom_call.1} parent=5 // pred_check
        _
      $region10: #{tpu_custom_call.1} parent=5 // pred_check_branch
        %195 = sbr.rel (%p192) target = $region12
      $region11: #{tpu_custom_call.1} parent=5 // pred_region
        %s196 = ssub.s32 %s19, 1
      $region12: #{tpu_custom_call.1} parent=5 // pred_fallthru
        _
      %p197 = scmp.lt.s32.totalorder %s19, 16
      // Predicated region
      $region13: #{tpu_custom_call.1} parent=5 // pred_check
        %p198 = pneg %p197
      $region14: #{tpu_custom_call.1} parent=5 // pred_check_branch
        %200 = sbr.rel (%p198) target = $region16
      $region15: #{tpu_custom_call.1} parent=5 // pred_region
        // Predicated region
        $region17: #{tpu_custom_call.1} parent=15 // pred_check
          %p201 = pneg %p60
        $region18: #{tpu_custom_call.1} parent=15 // pred_check_branch
          %203 = sbr.rel (%p201) target = $region20
        $region19: #{tpu_custom_call.1} parent=15 // pred_region
          %s204 = sand.u32 %s50, 1
          %s205 = scalar_lea.sflag [#allocation3], %s204
          %s206 = sand.u32 %s50, 1
          %s207 = smul.addr %s206, 128
          %s208 = scalar_lea.vmem [#allocation2], %s207
          %s209 = smul.u32 16, %s27
          %211 = vsyncadd %s205, 0
          %s212 = smul.addr %s26, 16
          %s213 = sadd.s32 %s209, %s212
          %s214 = smul.addr %s213, 8
          %s215 = scalar_lea.hbm %s0, %s214
          %s216 = sshll.u32 %s215, 4
          %s217 = int_to_ptr.hbm [resolvable:$true] %s216
          %s218 = sshll.u32 %s208, 4
          %s219 = int_to_ptr.vmem [resolvable:$true] %s218
          %224 = dma.hbm_to_vmem [thread:$0]  %s217, 2048, %s219, %s205, 128, 128, 8
        $region20: #{tpu_custom_call.1} parent=15 // pred_fallthru
          _
        // Predicated region
        $region21: #{tpu_custom_call.1} parent=15 // pred_check
          %p225 = pneg %p88
        $region22: #{tpu_custom_call.1} parent=15 // pred_check_branch
          %227 = sbr.rel (%p225) target = $region24
        $region23: #{tpu_custom_call.1} parent=15 // pred_region
          %s228 = smul.u32 16, %s27
          %p229 = scmp.lt.s32.totalorder %s26, 1
          %s230 = scalar_select %p229, %s26, 1
          %p231 = scmp.lt.s32.totalorder %s228, 15
          %s232 = scalar_select %p231, %s228, 15
          %s233 = smul.addr %s232, 2
          %s234 = smul.addr %s230, 32
          %s235 = sadd.s32 %s233, %s234
          %s236 = smul.addr %s235, 4
          %s237 = scalar_lea.vmem %s1, %s236
          %s238 = smul.u32 16, %s27
        $region24: #{tpu_custom_call.1} parent=15 // pred_fallthru
          _
        // Predicated region
        $region25: #{tpu_custom_call.1} parent=15 // pred_check
          %p239 = pneg %p116
        $region26: #{tpu_custom_call.1} parent=15 // pred_check_branch
          %241 = sbr.rel (%p239) target = $region28
        $region27: #{tpu_custom_call.1} parent=15 // pred_region
          %s242 = sand.u32 %s19, 1
          %s243 = scalar_lea.sflag [#allocation6], %s242
          %s244 = sand.u32 %s106, 1
          %s245 = smul.addr %s244, 64
          %s246 = scalar_lea.vmem [#allocation5], %s245
          %s247 = smul.u32 2, %s27
          %249 = vsyncadd %s243, 0
          %s250 = smul.addr %s26, 8
          %s251 = sadd.s32 %s247, %s250
          %s252 = smul.addr %s251, 8
          %s253 = scalar_lea.hbm %s2, %s252
          %s254 = sshll.u32 %s253, 4
          %s255 = int_to_ptr.hbm [resolvable:$true] %s254
          %s256 = sshll.u32 %s246, 4
          %s257 = int_to_ptr.vmem [resolvable:$true] %s256
          %262 = dma.hbm_to_vmem [thread:$0]  %s255, 1024, %s257, %s243, 128, 128, 8
        $region28: #{tpu_custom_call.1} parent=15 // pred_fallthru
          _
        // Predicated region
        $region29: #{tpu_custom_call.1} parent=15 // pred_check
          %p263 = pneg %p146
        $region30: #{tpu_custom_call.1} parent=15 // pred_check_branch
          %265 = sbr.rel (%p263) target = $region32
        $region31: #{tpu_custom_call.1} parent=15 // pred_region
          %s266 = sand.u32 %s19, 1
          %s267 = scalar_lea.sflag [#allocation6], %s266
          %s268 = sand.u32 %s136, 1
          %s269 = smul.addr %s268, 16
          %s270 = scalar_lea.vmem [#allocation7], %s269
          %s271 = smul.u32 2, %s27
          %273 = vsyncadd %s267, 0
          %s274 = smul.addr %s28, 2
          %s275 = sadd.s32 %s271, %s274
          %s276 = smul.addr %s26, 16
          %s277 = sadd.s32 %s275, %s276
          %s278 = smul.addr %s277, 8
          %s279 = scalar_lea.hbm %s3, %s278
          %s280 = sshll.u32 %s279, 4
          %s281 = int_to_ptr.hbm [resolvable:$true] %s280
          %s282 = sshll.u32 %s270, 4
          %s283 = int_to_ptr.vmem [resolvable:$true] %s282
          %288 = dma.hbm_to_vmem [thread:$0]  %s281, 256, %s283, %s267, 128, 128, 8
        $region32: #{tpu_custom_call.1} parent=15 // pred_fallthru
          _
      $region16: #{tpu_custom_call.1} parent=5 // pred_fallthru
        _
      %p289 = scmp.le.s32.totalorder 1, %s19
      %p290 = scmp.lt.s32.totalorder %s19, 17
      %p291 = pnand %p289, %p290
      %p292 = pneg %p291
      // Predicated region
      $region33: #{tpu_custom_call.1} parent=5 // pred_check
        _
      $region34: #{tpu_custom_call.1} parent=5 // pred_check_branch
        %294 = sbr.rel (%p291) target = $region36
      $region35: #{tpu_custom_call.1} parent=5 // pred_region
        %s295 = ssub.s32 %s19, 1
        %s296 = sand.u32 %s53, 1
        %s297 = scalar_lea.sflag [#allocation3], %s296
        %s298 = sand.u32 %s53, 1
        %s299 = smul.addr %s298, 128
        %s300 = scalar_lea.vmem [#allocation2], %s299
        // Predicated region
        $region37: #{tpu_custom_call.1} parent=35 // pred_check
          %p301 = pneg %p66
        $region38: #{tpu_custom_call.1} parent=35 // pred_check_branch
          %303 = sbr.rel (%p301) target = $region40
        $region39: #{tpu_custom_call.1} parent=35 // pred_region
          %305 = dma.done %s297, 2048
        $region40: #{tpu_custom_call.1} parent=35 // pred_fallthru
          _
        %s306 = sand.u32 %s24, 1
        %s307 = scalar_lea.sflag [#allocation6], %s306
        %s308 = sand.u32 %s109, 1
        %s309 = smul.addr %s308, 64
        %s310 = scalar_lea.vmem [#allocation5], %s309
        // Predicated region
        $region41: #{tpu_custom_call.1} parent=35 // pred_check
          %p311 = pneg %p122
        $region42: #{tpu_custom_call.1} parent=35 // pred_check_branch
          %313 = sbr.rel (%p311) target = $region44
        $region43: #{tpu_custom_call.1} parent=35 // pred_region
          %315 = dma.done %s307, 1024
        $region44: #{tpu_custom_call.1} parent=35 // pred_fallthru
          _
        %s316 = sand.u32 %s24, 1
        %s317 = scalar_lea.sflag [#allocation6], %s316
        %s318 = sand.u32 %s139, 1
        %s319 = smul.addr %s318, 16
        %s320 = scalar_lea.vmem [#allocation7], %s319
        // Predicated region
        $region45: #{tpu_custom_call.1} parent=35 // pred_check
          %p321 = pneg %p152
        $region46: #{tpu_custom_call.1} parent=35 // pred_check_branch
          %323 = sbr.rel (%p321) target = $region48
        $region47: #{tpu_custom_call.1} parent=35 // pred_region
          %325 = dma.done %s317, 256
        $region48: #{tpu_custom_call.1} parent=35 // pred_fallthru
          _
        %s326 = sand.u32 %s53, 1
        %s327 = scalar_lea.sflag [#allocation3], %s326
        %s328 = sand.u32 %s53, 1
        %s329 = smul.addr %s328, 128
        %s330 = scalar_lea.vmem [#allocation2], %s329
        %p331 = pneg %p66
        %p332 = pneg %p63
        %s333 = smul.u32 16, %s30
        %p334 = scmp.lt.s32.totalorder %s29, 1
        %s335 = scalar_select %p334, %s29, 1
        %p336 = scmp.lt.s32.totalorder %s333, 15
        %s337 = scalar_select %p336, %s333, 15
        %s338 = smul.addr %s337, 2
        %s339 = smul.addr %s335, 32
        %s340 = sadd.s32 %s338, %s339
        %s341 = smul.addr %s340, 4
        %s342 = scalar_lea.vmem %s1, %s341
        %p343 = pneg %p94
        %p344 = pneg %p91
        %s345 = sand.u32 %s24, 1
        %s346 = scalar_lea.sflag [#allocation6], %s345
        %s347 = sand.u32 %s109, 1
        %s348 = smul.addr %s347, 64
        %s349 = scalar_lea.vmem [#allocation5], %s348
        %p350 = pneg %p122
        %p351 = pneg %p119
        %s352 = sand.u32 %s24, 1
        %s353 = scalar_lea.sflag [#allocation6], %s352
        %s354 = sand.u32 %s139, 1
        %s355 = smul.addr %s354, 16
        %s356 = scalar_lea.vmem [#allocation7], %s355
        %p357 = pneg %p152
        %p358 = pneg %p149
        %p359 = pneg %p182
        %p360 = pneg %p179
        %s361 = sand.u32 %s169, 1
        %s362 = scalar_lea.sflag [#allocation4], %s361
        %s363 = sand.u32 %s169, 1
        %s364 = smul.addr %s363, 192
        %s365 = scalar_lea.vmem [#allocation8], %s364
        %s366 = smul.u32 16, %s30
        %s367 = smul.u32 16, %s30
        %p368 = scmp.lt.s32.totalorder %s29, 1
        %s369 = scalar_select %p368, %s29, 1
        %p370 = scmp.lt.s32.totalorder %s367, 15
        %s371 = scalar_select %p370, %s367, 15
        %s372 = smul.addr %s371, 2
        %s373 = smul.addr %s369, 32
        %s374 = sadd.s32 %s372, %s373
        %s375 = smul.addr %s374, 4
        %s376 = scalar_lea.vmem %s1, %s375
        %s377 = smul.u32 16, %s30
        %s378 = smul.u32 2, %s30
        %s379 = smul.u32 2, %s30
        %s380 = smul.u32 2, %s30
        %v382 = vld [vmem:[%s320] sm:$0xff]
        %v383 = vld [vmem:[%s320 + $0x8] sm:$0xff]
        %v384 = vlaneseq
        %v385 = vand.u32 %v384, 127
        %v386 = vcvt.s32.f32 %v385
        %v387 = vsub.f32 %v386, %v382
        %v388 = vsub.f32 %v386, %v383
        %v389 = vmul.f32 %v387, 1.0666667
        %v390 = vmul.f32 %v388, 1.0666667
        %v391 = vsub.f32 %v389, 0.5
        %v392 = vsub.f32 %v390, 0.5
        %v393 = vperm.slane %v391, 0
        %v394 = vlaneseq
        %v395 = vshrl.u32 %v394, 7
        %397 = vset.pattern.permute.xlu0 %v395
        %398 = vperm.xlu0 %397, %v393
        %v399 = vpop.permute.xlu0 %398
        %v400 = vlaneseq
        %v401 = vshrl.u32 %v400, 7
        %v402 = vadd.s32 %v401, 8
        %403 = vset.pattern.permute.xlu0 %v402
        %404 = vperm.xlu0 %403, %v393
        %v405 = vpop.permute.xlu0 %404
        %v406 = vperm.slane %v391, 1
        %v407 = vlaneseq
        %v408 = vshrl.u32 %v407, 7
        %410 = vset.pattern.permute.xlu0 %v408
        %411 = vperm.xlu0 %410, %v406
        %v412 = vpop.permute.xlu0 %411
        %v413 = vlaneseq
        %v414 = vshrl.u32 %v413, 7
        %v415 = vadd.s32 %v414, 8
        %416 = vset.pattern.permute.xlu0 %v415
        %417 = vperm.xlu0 %416, %v406
        %v418 = vpop.permute.xlu0 %417
        %v419 = vperm.slane %v391, 2
        %v420 = vlaneseq
        %v421 = vshrl.u32 %v420, 7
        %423 = vset.pattern.permute.xlu0 %v421
        %424 = vperm.xlu0 %423, %v419
        %v425 = vpop.permute.xlu0 %424
        %v426 = vlaneseq
        %v427 = vshrl.u32 %v426, 7
        %v428 = vadd.s32 %v427, 8
        %429 = vset.pattern.permute.xlu0 %v428
        %430 = vperm.xlu0 %429, %v419
        %v431 = vpop.permute.xlu0 %430
        %v432 = vperm.slane %v391, 3
        %v433 = vlaneseq
        %v434 = vshrl.u32 %v433, 7
        %436 = vset.pattern.permute.xlu0 %v434
        %437 = vperm.xlu0 %436, %v432
        %v438 = vpop.permute.xlu0 %437
        %v439 = vlaneseq
        %v440 = vshrl.u32 %v439, 7
        %v441 = vadd.s32 %v440, 8
        %442 = vset.pattern.permute.xlu0 %v441
        %443 = vperm.xlu0 %442, %v432
        %v444 = vpop.permute.xlu0 %443
        %v445 = vperm.slane %v391, 4
        %v446 = vlaneseq
        %v447 = vshrl.u32 %v446, 7
        %449 = vset.pattern.permute.xlu0 %v447
        %450 = vperm.xlu0 %449, %v445
        %v451 = vpop.permute.xlu0 %450
        %v452 = vlaneseq
        %v453 = vshrl.u32 %v452, 7
        %v454 = vadd.s32 %v453, 8
        %455 = vset.pattern.permute.xlu0 %v454
        %456 = vperm.xlu0 %455, %v445
        %v457 = vpop.permute.xlu0 %456
        %v458 = vperm.slane %v391, 5
        %v459 = vlaneseq
        %v460 = vshrl.u32 %v459, 7
        %462 = vset.pattern.permute.xlu0 %v460
        %463 = vperm.xlu0 %462, %v458
        %v464 = vpop.permute.xlu0 %463
        %v465 = vlaneseq
        %v466 = vshrl.u32 %v465, 7
        %v467 = vadd.s32 %v466, 8
        %468 = vset.pattern.permute.xlu0 %v467
        %469 = vperm.xlu0 %468, %v458
        %v470 = vpop.permute.xlu0 %469
        %v471 = vperm.slane %v391, 6
        %v472 = vlaneseq
        %v473 = vshrl.u32 %v472, 7
        %475 = vset.pattern.permute.xlu0 %v473
        %476 = vperm.xlu0 %475, %v471
        %v477 = vpop.permute.xlu0 %476
        %v478 = vlaneseq
        %v479 = vshrl.u32 %v478, 7
        %v480 = vadd.s32 %v479, 8
        %481 = vset.pattern.permute.xlu0 %v480
        %482 = vperm.xlu0 %481, %v471
        %v483 = vpop.permute.xlu0 %482
        %v484 = vperm.slane %v391, 7
        %v485 = vlaneseq
        %v486 = vshrl.u32 %v485, 7
        %488 = vset.pattern.permute.xlu0 %v486
        %489 = vperm.xlu0 %488, %v484
        %v490 = vpop.permute.xlu0 %489
        %v491 = vlaneseq
        %v492 = vshrl.u32 %v491, 7
        %v493 = vadd.s32 %v492, 8
        %494 = vset.pattern.permute.xlu0 %v493
        %495 = vperm.xlu0 %494, %v484
        %v496 = vpop.permute.xlu0 %495
        %v497 = vperm.slane %v392, 0
        %v498 = vlaneseq
        %v499 = vshrl.u32 %v498, 7
        %501 = vset.pattern.permute.xlu0 %v499
        %502 = vperm.xlu0 %501, %v497
        %v503 = vpop.permute.xlu0 %502
        %v504 = vlaneseq
        %v505 = vshrl.u32 %v504, 7
        %v506 = vadd.s32 %v505, 8
        %507 = vset.pattern.permute.xlu0 %v506
        %508 = vperm.xlu0 %507, %v497
        %v509 = vpop.permute.xlu0 %508
        %v510 = vperm.slane %v392, 1
        %v511 = vlaneseq
        %v512 = vshrl.u32 %v511, 7
        %514 = vset.pattern.permute.xlu0 %v512
        %515 = vperm.xlu0 %514, %v510
        %v516 = vpop.permute.xlu0 %515
        %v517 = vlaneseq
        %v518 = vshrl.u32 %v517, 7
        %v519 = vadd.s32 %v518, 8
        %520 = vset.pattern.permute.xlu0 %v519
        %521 = vperm.xlu0 %520, %v510
        %v522 = vpop.permute.xlu0 %521
        %v523 = vperm.slane %v392, 2
        %v524 = vlaneseq
        %v525 = vshrl.u32 %v524, 7
        %527 = vset.pattern.permute.xlu0 %v525
        %528 = vperm.xlu0 %527, %v523
        %v529 = vpop.permute.xlu0 %528
        %v530 = vlaneseq
        %v531 = vshrl.u32 %v530, 7
        %v532 = vadd.s32 %v531, 8
        %533 = vset.pattern.permute.xlu0 %v532
        %534 = vperm.xlu0 %533, %v523
        %v535 = vpop.permute.xlu0 %534
        %v536 = vperm.slane %v392, 3
        %v537 = vlaneseq
        %v538 = vshrl.u32 %v537, 7
        %540 = vset.pattern.permute.xlu0 %v538
        %541 = vperm.xlu0 %540, %v536
        %v542 = vpop.permute.xlu0 %541
        %v543 = vlaneseq
        %v544 = vshrl.u32 %v543, 7
        %v545 = vadd.s32 %v544, 8
        %546 = vset.pattern.permute.xlu0 %v545
        %547 = vperm.xlu0 %546, %v536
        %v548 = vpop.permute.xlu0 %547
        %v549 = vperm.slane %v392, 4
        %v550 = vlaneseq
        %v551 = vshrl.u32 %v550, 7
        %553 = vset.pattern.permute.xlu0 %v551
        %554 = vperm.xlu0 %553, %v549
        %v555 = vpop.permute.xlu0 %554
        %v556 = vlaneseq
        %v557 = vshrl.u32 %v556, 7
        %v558 = vadd.s32 %v557, 8
        %559 = vset.pattern.permute.xlu0 %v558
        %560 = vperm.xlu0 %559, %v549
        %v561 = vpop.permute.xlu0 %560
        %v562 = vperm.slane %v392, 5
        %v563 = vlaneseq
        %v564 = vshrl.u32 %v563, 7
        %566 = vset.pattern.permute.xlu0 %v564
        %567 = vperm.xlu0 %566, %v562
        %v568 = vpop.permute.xlu0 %567
        %v569 = vlaneseq
        %v570 = vshrl.u32 %v569, 7
        %v571 = vadd.s32 %v570, 8
        %572 = vset.pattern.permute.xlu0 %v571
        %573 = vperm.xlu0 %572, %v562
        %v574 = vpop.permute.xlu0 %573
        %v575 = vperm.slane %v392, 6
        %v576 = vlaneseq
        %v577 = vshrl.u32 %v576, 7
        %579 = vset.pattern.permute.xlu0 %v577
        %580 = vperm.xlu0 %579, %v575
        %v581 = vpop.permute.xlu0 %580
        %v582 = vlaneseq
        %v583 = vshrl.u32 %v582, 7
        %v584 = vadd.s32 %v583, 8
        %585 = vset.pattern.permute.xlu0 %v584
        %586 = vperm.xlu0 %585, %v575
        %v587 = vpop.permute.xlu0 %586
        %v588 = vperm.slane %v392, 7
        %v589 = vlaneseq
        %v590 = vshrl.u32 %v589, 7
        %592 = vset.pattern.permute.xlu0 %v590
        %593 = vperm.xlu0 %592, %v588
        %v594 = vpop.permute.xlu0 %593
        %v595 = vlaneseq
        %v596 = vshrl.u32 %v595, 7
        %v597 = vadd.s32 %v596, 8
        %598 = vset.pattern.permute.xlu0 %v597
        %599 = vperm.xlu0 %598, %v588
        %v600 = vpop.permute.xlu0 %599
        %v601 = vsub.f32 %v386, %v399
        %v602 = vsub.f32 %v386, %v405
        %v603 = vsub.f32 %v386, %v412
        %v604 = vsub.f32 %v386, %v418
        %v605 = vsub.f32 %v386, %v425
        %v606 = vsub.f32 %v386, %v431
        %v607 = vsub.f32 %v386, %v438
        %v608 = vsub.f32 %v386, %v444
        %v609 = vsub.f32 %v386, %v451
        %v610 = vsub.f32 %v386, %v457
        %v611 = vsub.f32 %v386, %v464
        %v612 = vsub.f32 %v386, %v470
        %v613 = vsub.f32 %v386, %v477
        %v614 = vsub.f32 %v386, %v483
        %v615 = vsub.f32 %v386, %v490
        %v616 = vsub.f32 %v386, %v496
        %v617 = vsub.f32 %v386, %v503
        %v618 = vsub.f32 %v386, %v509
        %v619 = vsub.f32 %v386, %v516
        %v620 = vsub.f32 %v386, %v522
        %v621 = vsub.f32 %v386, %v529
        %v622 = vsub.f32 %v386, %v535
        %v623 = vsub.f32 %v386, %v542
        %v624 = vsub.f32 %v386, %v548
        %v625 = vsub.f32 %v386, %v555
        %v626 = vsub.f32 %v386, %v561
        %v627 = vsub.f32 %v386, %v568
        %v628 = vsub.f32 %v386, %v574
        %v629 = vsub.f32 %v386, %v581
        %v630 = vsub.f32 %v386, %v587
        %v631 = vsub.f32 %v386, %v594
        %v632 = vsub.f32 %v386, %v600
        %v633 = vand.u32 2147483647, %v601
        %v634 = vand.u32 2147483647, %v602
        %v635 = vand.u32 2147483647, %v603
        %v636 = vand.u32 2147483647, %v604
        %v637 = vand.u32 2147483647, %v605
        %v638 = vand.u32 2147483647, %v606
        %v639 = vand.u32 2147483647, %v607
        %v640 = vand.u32 2147483647, %v608
        %v641 = vand.u32 2147483647, %v609
        %v642 = vand.u32 2147483647, %v610
        %v643 = vand.u32 2147483647, %v611
        %v644 = vand.u32 2147483647, %v612
        %v645 = vand.u32 2147483647, %v613
        %v646 = vand.u32 2147483647, %v614
        %v647 = vand.u32 2147483647, %v615
        %v648 = vand.u32 2147483647, %v616
        %v649 = vand.u32 2147483647, %v617
        %v650 = vand.u32 2147483647, %v618
        %v651 = vand.u32 2147483647, %v619
        %v652 = vand.u32 2147483647, %v620
        %v653 = vand.u32 2147483647, %v621
        %v654 = vand.u32 2147483647, %v622
        %v655 = vand.u32 2147483647, %v623
        %v656 = vand.u32 2147483647, %v624
        %v657 = vand.u32 2147483647, %v625
        %v658 = vand.u32 2147483647, %v626
        %v659 = vand.u32 2147483647, %v627
        %v660 = vand.u32 2147483647, %v628
        %v661 = vand.u32 2147483647, %v629
        %v662 = vand.u32 2147483647, %v630
        %v663 = vand.u32 2147483647, %v631
        %v664 = vand.u32 2147483647, %v632
        %v665 = vsub.f32 1.0, %v633
        %v666 = vsub.f32 1.0, %v634
        %v667 = vsub.f32 1.0, %v635
        %v668 = vsub.f32 1.0, %v636
        %v669 = vsub.f32 1.0, %v637
        %v670 = vsub.f32 1.0, %v638
        %v671 = vsub.f32 1.0, %v639
        %v672 = vsub.f32 1.0, %v640
        %v673 = vsub.f32 1.0, %v641
        %v674 = vsub.f32 1.0, %v642
        %v675 = vsub.f32 1.0, %v643
        %v676 = vsub.f32 1.0, %v644
        %v677 = vsub.f32 1.0, %v645
        %v678 = vsub.f32 1.0, %v646
        %v679 = vsub.f32 1.0, %v647
        %v680 = vsub.f32 1.0, %v648
        %v681 = vsub.f32 1.0, %v649
        %v682 = vsub.f32 1.0, %v650
        %v683 = vsub.f32 1.0, %v651
        %v684 = vsub.f32 1.0, %v652
        %v685 = vsub.f32 1.0, %v653
        %v686 = vsub.f32 1.0, %v654
        %v687 = vsub.f32 1.0, %v655
        %v688 = vsub.f32 1.0, %v656
        %v689 = vsub.f32 1.0, %v657
        %v690 = vsub.f32 1.0, %v658
        %v691 = vsub.f32 1.0, %v659
        %v692 = vsub.f32 1.0, %v660
        %v693 = vsub.f32 1.0, %v661
        %v694 = vsub.f32 1.0, %v662
        %v695 = vsub.f32 1.0, %v663
        %v696 = vsub.f32 1.0, %v664
        %v697 = vmax.f32 %v665, 0.0
        %v698 = vmax.f32 %v666, 0.0
        %v699 = vmax.f32 %v667, 0.0
        %v700 = vmax.f32 %v668, 0.0
        %v701 = vmax.f32 %v669, 0.0
        %v702 = vmax.f32 %v670, 0.0
        %v703 = vmax.f32 %v671, 0.0
        %v704 = vmax.f32 %v672, 0.0
        %v705 = vmax.f32 %v673, 0.0
        %v706 = vmax.f32 %v674, 0.0
        %v707 = vmax.f32 %v675, 0.0
        %v708 = vmax.f32 %v676, 0.0
        %v709 = vmax.f32 %v677, 0.0
        %v710 = vmax.f32 %v678, 0.0
        %v711 = vmax.f32 %v679, 0.0
        %v712 = vmax.f32 %v680, 0.0
        %v713 = vmax.f32 %v681, 0.0
        %v714 = vmax.f32 %v682, 0.0
        %v715 = vmax.f32 %v683, 0.0
        %v716 = vmax.f32 %v684, 0.0
        %v717 = vmax.f32 %v685, 0.0
        %v718 = vmax.f32 %v686, 0.0
        %v719 = vmax.f32 %v687, 0.0
        %v720 = vmax.f32 %v688, 0.0
        %v721 = vmax.f32 %v689, 0.0
        %v722 = vmax.f32 %v690, 0.0
        %v723 = vmax.f32 %v691, 0.0
        %v724 = vmax.f32 %v692, 0.0
        %v725 = vmax.f32 %v693, 0.0
        %v726 = vmax.f32 %v694, 0.0
        %v727 = vmax.f32 %v695, 0.0
        %v728 = vmax.f32 %v696, 0.0
        %v729 = vpack.c.bf16 %v697, %v697
        %v730 = vpack.c.bf16 %v698, %v698
        %v731 = vpack.c.bf16 %v699, %v699
        %v732 = vpack.c.bf16 %v700, %v700
        %v733 = vpack.c.bf16 %v701, %v701
        %v734 = vpack.c.bf16 %v702, %v702
        %v735 = vpack.c.bf16 %v703, %v703
        %v736 = vpack.c.bf16 %v704, %v704
        %v737 = vpack.c.bf16 %v705, %v705
        %v738 = vpack.c.bf16 %v706, %v706
        %v739 = vpack.c.bf16 %v707, %v707
        %v740 = vpack.c.bf16 %v708, %v708
        %v741 = vpack.c.bf16 %v709, %v709
        %v742 = vpack.c.bf16 %v710, %v710
        %v743 = vpack.c.bf16 %v711, %v711
        %v744 = vpack.c.bf16 %v712, %v712
        %v745 = vpack.c.bf16 %v713, %v713
        %v746 = vpack.c.bf16 %v714, %v714
        %v747 = vpack.c.bf16 %v715, %v715
        %v748 = vpack.c.bf16 %v716, %v716
        %v749 = vpack.c.bf16 %v717, %v717
        %v750 = vpack.c.bf16 %v718, %v718
        %v751 = vpack.c.bf16 %v719, %v719
        %v752 = vpack.c.bf16 %v720, %v720
        %v753 = vpack.c.bf16 %v721, %v721
        %v754 = vpack.c.bf16 %v722, %v722
        %v755 = vpack.c.bf16 %v723, %v723
        %v756 = vpack.c.bf16 %v724, %v724
        %v757 = vpack.c.bf16 %v725, %v725
        %v758 = vpack.c.bf16 %v726, %v726
        %v759 = vpack.c.bf16 %v727, %v727
        %v760 = vpack.c.bf16 %v728, %v728
        %vm761 = vcmp.ge.f32.partialorder %v386, %v382
        %vm762 = vcmp.ge.f32.partialorder %v386, %v383
        %v763 = vsel %vm761, 1, 0
        %v764 = vsel %vm762, 1, 0
        %v765 = vcvt.s32.f32 %v763
        %v766 = vcvt.s32.f32 %v764
        %v767 = vmul.f32 %v765, 0.5
        %v768 = vmul.f32 %v766, 0.5
        %v769 = vld [vmem:[%s310] sm:$0xff]
        %v770 = vld [vmem:[%s310 + $0x8] sm:$0xff]
        %v771 = vld [vmem:[%s310 + $0x10] sm:$0xff]
        %v772 = vld [vmem:[%s310 + $0x18] sm:$0xff]
        %v773 = vld [vmem:[%s310 + $0x20] sm:$0xff]
        %v774 = vld [vmem:[%s310 + $0x28] sm:$0xff]
        %v775 = vld [vmem:[%s310 + $0x30] sm:$0xff]
        %v776 = vld [vmem:[%s310 + $0x38] sm:$0xff]
        %v777 = vmul.f32 %v769, %v765
        %v778 = vmul.f32 %v770, %v766
        %v779 = vmul.f32 %v771, %v765
        %v780 = vmul.f32 %v772, %v766
        %v781 = vmul.f32 %v773, %v765
        %v782 = vmul.f32 %v774, %v766
        %v783 = vmul.f32 %v775, %v765
        %v784 = vmul.f32 %v776, %v766
        %s785 = scalar_lea.vmem %s365, 64 [#allocation8]
        %vm786 = vcmask 130048
        %787 = vst.msk [vmem:[%s785] sm:$0xff] %vm786, %v777
        %788 = vst.msk [vmem:[%s785 + $0x8] sm:$0xff] %vm786, %v778
        %789 = vst.msk [vmem:[%s785 + $0x10] sm:$0xff] %vm786, %v779
        %790 = vst.msk [vmem:[%s785 + $0x18] sm:$0xff] %vm786, %v780
        %791 = vst.msk [vmem:[%s785 + $0x20] sm:$0xff] %vm786, %v781
        %792 = vst.msk [vmem:[%s785 + $0x28] sm:$0xff] %vm786, %v782
        %793 = vst.msk [vmem:[%s785 + $0x30] sm:$0xff] %vm786, %v783
        %794 = vst.msk [vmem:[%s785 + $0x38] sm:$0xff] %vm786, %v784
        %v795 = vld [vmem:[%s376] sm:$0xf]
        %v796 = vld [vmem:[%s376 + $0x4] sm:$0x3]
        %v797 = vld [vmem:[%s376 + $0x8] sm:$0xf]
        %v798 = vld [vmem:[%s376 + $0xc] sm:$0x3]
        %v799 = vld [vmem:[%s376 + $0x10] sm:$0xf]
        %v800 = vld [vmem:[%s376 + $0x14] sm:$0x3]
        %v801 = vld [vmem:[%s376 + $0x18] sm:$0xf]
        %v802 = vld [vmem:[%s376 + $0x1c] sm:$0x3]
        %v803 = vld [vmem:[%s376 + $0x20] sm:$0xf]
        %v804 = vld [vmem:[%s376 + $0x24] sm:$0x3]
        %v805 = vld [vmem:[%s376 + $0x28] sm:$0xf]
        %v806 = vld [vmem:[%s376 + $0x2c] sm:$0x3]
        %v807 = vld [vmem:[%s376 + $0x30] sm:$0xf]
        %v808 = vld [vmem:[%s376 + $0x34] sm:$0x3]
        %v809 = vld [vmem:[%s376 + $0x38] sm:$0xf]
        %v810 = vld [vmem:[%s376 + $0x3c] sm:$0x3]
        %v811 = vld [vmem:[%s376 + $0x40] sm:$0xf]
        %v812 = vld [vmem:[%s376 + $0x44] sm:$0x3]
        %v813 = vld [vmem:[%s376 + $0x48] sm:$0xf]
        %v814 = vld [vmem:[%s376 + $0x4c] sm:$0x3]
        %v815 = vld [vmem:[%s376 + $0x50] sm:$0xf]
        %v816 = vld [vmem:[%s376 + $0x54] sm:$0x3]
        %v817 = vld [vmem:[%s376 + $0x58] sm:$0xf]
        %v818 = vld [vmem:[%s376 + $0x5c] sm:$0x3]
        %v819 = vld [vmem:[%s376 + $0x60] sm:$0xf]
        %v820 = vld [vmem:[%s376 + $0x64] sm:$0x3]
        %v821 = vld [vmem:[%s376 + $0x68] sm:$0xf]
        %v822 = vld [vmem:[%s376 + $0x6c] sm:$0x3]
        %v823 = vld [vmem:[%s376 + $0x70] sm:$0xf]
        %v824 = vld [vmem:[%s376 + $0x74] sm:$0x3]
        %v825 = vld [vmem:[%s376 + $0x78] sm:$0xf]
        %v826 = vld [vmem:[%s376 + $0x7c] sm:$0x3]
        %v829 = vunpack.c.l.b16 %v795
        %v830 = vunpack.c.l.b16 %v796
        %v831 = vpack.c.b16 %v830, %v829
        %v834 = vunpack.c.l.b16 %v729
        %v835 = vunpack.c.l.b16 %v730
        %v836 = vpack.c.b16 %v835, %v834
        %v838 = vsel %vm786, %v831, 0
        %v841 = vsel %vm786, %v836, 0
        %843 = vmatpush.bf16.xpose.msra.mxu0 0
        %844 = vmatpush.bf16.xpose.msra.mxu0 0
        %845 = vmatpush.bf16.xpose.msra.mxu0 0
        %846 = vmatpush.bf16.xpose.msra.mxu0 0
        %847 = vmatpush.bf16.xpose.msra.mxu0 0
        %848 = vmatpush.bf16.xpose.msra.mxu0 0
        %849 = vmatpush.bf16.xpose.msra.mxu0 0
        %850 = vmatpush.bf16.xpose.msra.mxu0 %v841
        %851 = vmatmul.bf16.gmra.mxu0 %v838
        %v852 = vpop.f32.mrf.mxu0
        %v853 = vadd.f32 0.0, %v852
        %v854 = vpop.f32.mrf.mxu0
        %v855 = vadd.f32 0.0, %v854
        %856 = vdwg.mxu0
        %v859 = vunpack.c.l.b16 %v797
        %v860 = vunpack.c.l.b16 %v798
        %v861 = vpack.c.b16 %v860, %v859
        %v864 = vunpack.c.l.b16 %v731
        %v865 = vunpack.c.l.b16 %v732
        %v866 = vpack.c.b16 %v865, %v864
        %v868 = vsel %vm786, %v861, 0
        %v871 = vsel %vm786, %v866, 0
        %873 = vmatpush.bf16.xpose.msra.mxu0 0
        %874 = vmatpush.bf16.xpose.msra.mxu0 0
        %875 = vmatpush.bf16.xpose.msra.mxu0 0
        %876 = vmatpush.bf16.xpose.msra.mxu0 0
        %877 = vmatpush.bf16.xpose.msra.mxu0 0
        %878 = vmatpush.bf16.xpose.msra.mxu0 0
        %879 = vmatpush.bf16.xpose.msra.mxu0 0
        %880 = vmatpush.bf16.xpose.msra.mxu0 %v871
        %881 = vmatmul.bf16.gmra.mxu0 %v868
        %v882 = vpop.f32.mrf.mxu0
        %v883 = vadd.f32 0.0, %v882
        %v884 = vpop.f32.mrf.mxu0
        %v885 = vadd.f32 0.0, %v884
        %886 = vdwg.mxu0
        %v889 = vunpack.c.l.b16 %v799
        %v890 = vunpack.c.l.b16 %v800
        %v891 = vpack.c.b16 %v890, %v889
        %v894 = vunpack.c.l.b16 %v733
        %v895 = vunpack.c.l.b16 %v734
        %v896 = vpack.c.b16 %v895, %v894
        %v898 = vsel %vm786, %v891, 0
        %v901 = vsel %vm786, %v896, 0
        %903 = vmatpush.bf16.xpose.msra.mxu0 0
        %904 = vmatpush.bf16.xpose.msra.mxu0 0
        %905 = vmatpush.bf16.xpose.msra.mxu0 0
        %906 = vmatpush.bf16.xpose.msra.mxu0 0
        %907 = vmatpush.bf16.xpose.msra.mxu0 0
        %908 = vmatpush.bf16.xpose.msra.mxu0 0
        %909 = vmatpush.bf16.xpose.msra.mxu0 0
        %910 = vmatpush.bf16.xpose.msra.mxu0 %v901
        %911 = vmatmul.bf16.gmra.mxu0 %v898
        %v912 = vpop.f32.mrf.mxu0
        %v913 = vadd.f32 0.0, %v912
        %v914 = vpop.f32.mrf.mxu0
        %v915 = vadd.f32 0.0, %v914
        %916 = vdwg.mxu0
        %v919 = vunpack.c.l.b16 %v801
        %v920 = vunpack.c.l.b16 %v802
        %v921 = vpack.c.b16 %v920, %v919
        %v924 = vunpack.c.l.b16 %v735
        %v925 = vunpack.c.l.b16 %v736
        %v926 = vpack.c.b16 %v925, %v924
        %v928 = vsel %vm786, %v921, 0
        %v931 = vsel %vm786, %v926, 0
        %933 = vmatpush.bf16.xpose.msra.mxu0 0
        %934 = vmatpush.bf16.xpose.msra.mxu0 0
        %935 = vmatpush.bf16.xpose.msra.mxu0 0
        %936 = vmatpush.bf16.xpose.msra.mxu0 0
        %937 = vmatpush.bf16.xpose.msra.mxu0 0
        %938 = vmatpush.bf16.xpose.msra.mxu0 0
        %939 = vmatpush.bf16.xpose.msra.mxu0 0
        %940 = vmatpush.bf16.xpose.msra.mxu0 %v931
        %941 = vmatmul.bf16.gmra.mxu0 %v928
        %v942 = vpop.f32.mrf.mxu0
        %v943 = vadd.f32 0.0, %v942
        %v944 = vpop.f32.mrf.mxu0
        %v945 = vadd.f32 0.0, %v944
        %946 = vdwg.mxu0
        %v949 = vunpack.c.l.b16 %v803
        %v950 = vunpack.c.l.b16 %v804
        %v951 = vpack.c.b16 %v950, %v949
        %v954 = vunpack.c.l.b16 %v737
        %v955 = vunpack.c.l.b16 %v738
        %v956 = vpack.c.b16 %v955, %v954
        %v958 = vsel %vm786, %v951, 0
        %v961 = vsel %vm786, %v956, 0
        %963 = vmatpush.bf16.xpose.msra.mxu0 0
        %964 = vmatpush.bf16.xpose.msra.mxu0 0
        %965 = vmatpush.bf16.xpose.msra.mxu0 0
        %966 = vmatpush.bf16.xpose.msra.mxu0 0
        %967 = vmatpush.bf16.xpose.msra.mxu0 0
        %968 = vmatpush.bf16.xpose.msra.mxu0 0
        %969 = vmatpush.bf16.xpose.msra.mxu0 0
        %970 = vmatpush.bf16.xpose.msra.mxu0 %v961
        %971 = vmatmul.bf16.gmra.mxu0 %v958
        %v972 = vpop.f32.mrf.mxu0
        %v973 = vadd.f32 0.0, %v972
        %v974 = vpop.f32.mrf.mxu0
        %v975 = vadd.f32 0.0, %v974
        %976 = vdwg.mxu0
        %v979 = vunpack.c.l.b16 %v805
        %v980 = vunpack.c.l.b16 %v806
        %v981 = vpack.c.b16 %v980, %v979
        %v984 = vunpack.c.l.b16 %v739
        %v985 = vunpack.c.l.b16 %v740
        %v986 = vpack.c.b16 %v985, %v984
        %v988 = vsel %vm786, %v981, 0
        %v991 = vsel %vm786, %v986, 0
        %993 = vmatpush.bf16.xpose.msra.mxu0 0
        %994 = vmatpush.bf16.xpose.msra.mxu0 0
        %995 = vmatpush.bf16.xpose.msra.mxu0 0
        %996 = vmatpush.bf16.xpose.msra.mxu0 0
        %997 = vmatpush.bf16.xpose.msra.mxu0 0
        %998 = vmatpush.bf16.xpose.msra.mxu0 0
        %999 = vmatpush.bf16.xpose.msra.mxu0 0
        %1000 = vmatpush.bf16.xpose.msra.mxu0 %v991
        %1001 = vmatmul.bf16.gmra.mxu0 %v988
        %v1002 = vpop.f32.mrf.mxu0
        %v1003 = vadd.f32 0.0, %v1002
        %v1004 = vpop.f32.mrf.mxu0
        %v1005 = vadd.f32 0.0, %v1004
        %1006 = vdwg.mxu0
        %v1009 = vunpack.c.l.b16 %v807
        %v1010 = vunpack.c.l.b16 %v808
        %v1011 = vpack.c.b16 %v1010, %v1009
        %v1014 = vunpack.c.l.b16 %v741
        %v1015 = vunpack.c.l.b16 %v742
        %v1016 = vpack.c.b16 %v1015, %v1014
        %v1018 = vsel %vm786, %v1011, 0
        %v1021 = vsel %vm786, %v1016, 0
        %1023 = vmatpush.bf16.xpose.msra.mxu0 0
        %1024 = vmatpush.bf16.xpose.msra.mxu0 0
        %1025 = vmatpush.bf16.xpose.msra.mxu0 0
        %1026 = vmatpush.bf16.xpose.msra.mxu0 0
        %1027 = vmatpush.bf16.xpose.msra.mxu0 0
        %1028 = vmatpush.bf16.xpose.msra.mxu0 0
        %1029 = vmatpush.bf16.xpose.msra.mxu0 0
        %1030 = vmatpush.bf16.xpose.msra.mxu0 %v1021
        %1031 = vmatmul.bf16.gmra.mxu0 %v1018
        %v1032 = vpop.f32.mrf.mxu0
        %v1033 = vadd.f32 0.0, %v1032
        %v1034 = vpop.f32.mrf.mxu0
        %v1035 = vadd.f32 0.0, %v1034
        %1036 = vdwg.mxu0
        %v1039 = vunpack.c.l.b16 %v809
        %v1040 = vunpack.c.l.b16 %v810
        %v1041 = vpack.c.b16 %v1040, %v1039
        %v1044 = vunpack.c.l.b16 %v743
        %v1045 = vunpack.c.l.b16 %v744
        %v1046 = vpack.c.b16 %v1045, %v1044
        %v1048 = vsel %vm786, %v1041, 0
        %v1051 = vsel %vm786, %v1046, 0
        %1053 = vmatpush.bf16.xpose.msra.mxu0 0
        %1054 = vmatpush.bf16.xpose.msra.mxu0 0
        %1055 = vmatpush.bf16.xpose.msra.mxu0 0
        %1056 = vmatpush.bf16.xpose.msra.mxu0 0
        %1057 = vmatpush.bf16.xpose.msra.mxu0 0
        %1058 = vmatpush.bf16.xpose.msra.mxu0 0
        %1059 = vmatpush.bf16.xpose.msra.mxu0 0
        %1060 = vmatpush.bf16.xpose.msra.mxu0 %v1051
        %1061 = vmatmul.bf16.gmra.mxu0 %v1048
        %v1062 = vpop.f32.mrf.mxu0
        %v1063 = vadd.f32 0.0, %v1062
        %v1064 = vpop.f32.mrf.mxu0
        %v1065 = vadd.f32 0.0, %v1064
        %1066 = vdwg.mxu0
        %v1069 = vunpack.c.l.b16 %v811
        %v1070 = vunpack.c.l.b16 %v812
        %v1071 = vpack.c.b16 %v1070, %v1069
        %v1074 = vunpack.c.l.b16 %v745
        %v1075 = vunpack.c.l.b16 %v746
        %v1076 = vpack.c.b16 %v1075, %v1074
        %v1078 = vsel %vm786, %v1071, 0
        %v1081 = vsel %vm786, %v1076, 0
        %1083 = vmatpush.bf16.xpose.msra.mxu0 0
        %1084 = vmatpush.bf16.xpose.msra.mxu0 0
        %1085 = vmatpush.bf16.xpose.msra.mxu0 0
        %1086 = vmatpush.bf16.xpose.msra.mxu0 0
        %1087 = vmatpush.bf16.xpose.msra.mxu0 0
        %1088 = vmatpush.bf16.xpose.msra.mxu0 0
        %1089 = vmatpush.bf16.xpose.msra.mxu0 0
        %1090 = vmatpush.bf16.xpose.msra.mxu0 %v1081
        %1091 = vmatmul.bf16.gmra.mxu0 %v1078
        %v1092 = vpop.f32.mrf.mxu0
        %v1093 = vadd.f32 0.0, %v1092
        %v1094 = vpop.f32.mrf.mxu0
        %v1095 = vadd.f32 0.0, %v1094
        %1096 = vdwg.mxu0
        %v1099 = vunpack.c.l.b16 %v813
        %v1100 = vunpack.c.l.b16 %v814
        %v1101 = vpack.c.b16 %v1100, %v1099
        %v1104 = vunpack.c.l.b16 %v747
        %v1105 = vunpack.c.l.b16 %v748
        %v1106 = vpack.c.b16 %v1105, %v1104
        %v1108 = vsel %vm786, %v1101, 0
        %v1111 = vsel %vm786, %v1106, 0
        %1113 = vmatpush.bf16.xpose.msra.mxu0 0
        %1114 = vmatpush.bf16.xpose.msra.mxu0 0
        %1115 = vmatpush.bf16.xpose.msra.mxu0 0
        %1116 = vmatpush.bf16.xpose.msra.mxu0 0
        %1117 = vmatpush.bf16.xpose.msra.mxu0 0
        %1118 = vmatpush.bf16.xpose.msra.mxu0 0
        %1119 = vmatpush.bf16.xpose.msra.mxu0 0
        %1120 = vmatpush.bf16.xpose.msra.mxu0 %v1111
        %1121 = vmatmul.bf16.gmra.mxu0 %v1108
        %v1122 = vpop.f32.mrf.mxu0
        %v1123 = vadd.f32 0.0, %v1122
        %v1124 = vpop.f32.mrf.mxu0
        %v1125 = vadd.f32 0.0, %v1124
        %1126 = vdwg.mxu0
        %v1129 = vunpack.c.l.b16 %v815
        %v1130 = vunpack.c.l.b16 %v816
        %v1131 = vpack.c.b16 %v1130, %v1129
        %v1134 = vunpack.c.l.b16 %v749
        %v1135 = vunpack.c.l.b16 %v750
        %v1136 = vpack.c.b16 %v1135, %v1134
        %v1138 = vsel %vm786, %v1131, 0
        %v1141 = vsel %vm786, %v1136, 0
        %1143 = vmatpush.bf16.xpose.msra.mxu0 0
        %1144 = vmatpush.bf16.xpose.msra.mxu0 0
        %1145 = vmatpush.bf16.xpose.msra.mxu0 0
        %1146 = vmatpush.bf16.xpose.msra.mxu0 0
        %1147 = vmatpush.bf16.xpose.msra.mxu0 0
        %1148 = vmatpush.bf16.xpose.msra.mxu0 0
        %1149 = vmatpush.bf16.xpose.msra.mxu0 0
        %1150 = vmatpush.bf16.xpose.msra.mxu0 %v1141
        %1151 = vmatmul.bf16.gmra.mxu0 %v1138
        %v1152 = vpop.f32.mrf.mxu0
        %v1153 = vadd.f32 0.0, %v1152
        %v1154 = vpop.f32.mrf.mxu0
        %v1155 = vadd.f32 0.0, %v1154
        %1156 = vdwg.mxu0
        %v1159 = vunpack.c.l.b16 %v817
        %v1160 = vunpack.c.l.b16 %v818
        %v1161 = vpack.c.b16 %v1160, %v1159
        %v1164 = vunpack.c.l.b16 %v751
        %v1165 = vunpack.c.l.b16 %v752
        %v1166 = vpack.c.b16 %v1165, %v1164
        %v1168 = vsel %vm786, %v1161, 0
        %v1171 = vsel %vm786, %v1166, 0
        %1173 = vmatpush.bf16.xpose.msra.mxu0 0
        %1174 = vmatpush.bf16.xpose.msra.mxu0 0
        %1175 = vmatpush.bf16.xpose.msra.mxu0 0
        %1176 = vmatpush.bf16.xpose.msra.mxu0 0
        %1177 = vmatpush.bf16.xpose.msra.mxu0 0
        %1178 = vmatpush.bf16.xpose.msra.mxu0 0
        %1179 = vmatpush.bf16.xpose.msra.mxu0 0
        %1180 = vmatpush.bf16.xpose.msra.mxu0 %v1171
        %1181 = vmatmul.bf16.gmra.mxu0 %v1168
        %v1182 = vpop.f32.mrf.mxu0
        %v1183 = vadd.f32 0.0, %v1182
        %v1184 = vpop.f32.mrf.mxu0
        %v1185 = vadd.f32 0.0, %v1184
        %1186 = vdwg.mxu0
        %v1189 = vunpack.c.l.b16 %v819
        %v1190 = vunpack.c.l.b16 %v820
        %v1191 = vpack.c.b16 %v1190, %v1189
        %v1194 = vunpack.c.l.b16 %v753
        %v1195 = vunpack.c.l.b16 %v754
        %v1196 = vpack.c.b16 %v1195, %v1194
        %v1198 = vsel %vm786, %v1191, 0
        %v1201 = vsel %vm786, %v1196, 0
        %1203 = vmatpush.bf16.xpose.msra.mxu0 0
        %1204 = vmatpush.bf16.xpose.msra.mxu0 0
        %1205 = vmatpush.bf16.xpose.msra.mxu0 0
        %1206 = vmatpush.bf16.xpose.msra.mxu0 0
        %1207 = vmatpush.bf16.xpose.msra.mxu0 0
        %1208 = vmatpush.bf16.xpose.msra.mxu0 0
        %1209 = vmatpush.bf16.xpose.msra.mxu0 0
        %1210 = vmatpush.bf16.xpose.msra.mxu0 %v1201
        %1211 = vmatmul.bf16.gmra.mxu0 %v1198
        %v1212 = vpop.f32.mrf.mxu0
        %v1213 = vadd.f32 0.0, %v1212
        %v1214 = vpop.f32.mrf.mxu0
        %v1215 = vadd.f32 0.0, %v1214
        %1216 = vdwg.mxu0
        %v1219 = vunpack.c.l.b16 %v821
        %v1220 = vunpack.c.l.b16 %v822
        %v1221 = vpack.c.b16 %v1220, %v1219
        %v1224 = vunpack.c.l.b16 %v755
        %v1225 = vunpack.c.l.b16 %v756
        %v1226 = vpack.c.b16 %v1225, %v1224
        %v1228 = vsel %vm786, %v1221, 0
        %v1231 = vsel %vm786, %v1226, 0
        %1233 = vmatpush.bf16.xpose.msra.mxu0 0
        %1234 = vmatpush.bf16.xpose.msra.mxu0 0
        %1235 = vmatpush.bf16.xpose.msra.mxu0 0
        %1236 = vmatpush.bf16.xpose.msra.mxu0 0
        %1237 = vmatpush.bf16.xpose.msra.mxu0 0
        %1238 = vmatpush.bf16.xpose.msra.mxu0 0
        %1239 = vmatpush.bf16.xpose.msra.mxu0 0
        %1240 = vmatpush.bf16.xpose.msra.mxu0 %v1231
        %1241 = vmatmul.bf16.gmra.mxu0 %v1228
        %v1242 = vpop.f32.mrf.mxu0
        %v1243 = vadd.f32 0.0, %v1242
        %v1244 = vpop.f32.mrf.mxu0
        %v1245 = vadd.f32 0.0, %v1244
        %1246 = vdwg.mxu0
        %v1249 = vunpack.c.l.b16 %v823
        %v1250 = vunpack.c.l.b16 %v824
        %v1251 = vpack.c.b16 %v1250, %v1249
        %v1254 = vunpack.c.l.b16 %v757
        %v1255 = vunpack.c.l.b16 %v758
        %v1256 = vpack.c.b16 %v1255, %v1254
        %v1258 = vsel %vm786, %v1251, 0
        %v1261 = vsel %vm786, %v1256, 0
        %1263 = vmatpush.bf16.xpose.msra.mxu0 0
        %1264 = vmatpush.bf16.xpose.msra.mxu0 0
        %1265 = vmatpush.bf16.xpose.msra.mxu0 0
        %1266 = vmatpush.bf16.xpose.msra.mxu0 0
        %1267 = vmatpush.bf16.xpose.msra.mxu0 0
        %1268 = vmatpush.bf16.xpose.msra.mxu0 0
        %1269 = vmatpush.bf16.xpose.msra.mxu0 0
        %1270 = vmatpush.bf16.xpose.msra.mxu0 %v1261
        %1271 = vmatmul.bf16.gmra.mxu0 %v1258
        %v1272 = vpop.f32.mrf.mxu0
        %v1273 = vadd.f32 0.0, %v1272
        %v1274 = vpop.f32.mrf.mxu0
        %v1275 = vadd.f32 0.0, %v1274
        %1276 = vdwg.mxu0
        %v1279 = vunpack.c.l.b16 %v825
        %v1280 = vunpack.c.l.b16 %v826
        %v1281 = vpack.c.b16 %v1280, %v1279
        %v1284 = vunpack.c.l.b16 %v759
        %v1285 = vunpack.c.l.b16 %v760
        %v1286 = vpack.c.b16 %v1285, %v1284
        %v1288 = vsel %vm786, %v1281, 0
        %v1291 = vsel %vm786, %v1286, 0
        %1293 = vmatpush.bf16.xpose.msra.mxu0 0
        %1294 = vmatpush.bf16.xpose.msra.mxu0 0
        %1295 = vmatpush.bf16.xpose.msra.mxu0 0
        %1296 = vmatpush.bf16.xpose.msra.mxu0 0
        %1297 = vmatpush.bf16.xpose.msra.mxu0 0
        %1298 = vmatpush.bf16.xpose.msra.mxu0 0
        %1299 = vmatpush.bf16.xpose.msra.mxu0 0
        %1300 = vmatpush.bf16.xpose.msra.mxu0 %v1291
        %1301 = vmatmul.bf16.gmra.mxu0 %v1288
        %v1302 = vpop.f32.mrf.mxu0
        %v1303 = vadd.f32 0.0, %v1302
        %v1304 = vpop.f32.mrf.mxu0
        %v1305 = vadd.f32 0.0, %v1304
        %1306 = vdwg.mxu0
        %v1307 = vld [vmem:[%s300] sm:$0xff]
        %v1308 = vld [vmem:[%s300 + $0x8] sm:$0xff]
        %v1309 = vld [vmem:[%s300 + $0x10] sm:$0xff]
        %v1310 = vld [vmem:[%s300 + $0x18] sm:$0xff]
        %v1311 = vld [vmem:[%s300 + $0x20] sm:$0xff]
        %v1312 = vld [vmem:[%s300 + $0x28] sm:$0xff]
        %v1313 = vld [vmem:[%s300 + $0x30] sm:$0xff]
        %v1314 = vld [vmem:[%s300 + $0x38] sm:$0xff]
        %v1315 = vld [vmem:[%s300 + $0x40] sm:$0xff]
        %v1316 = vld [vmem:[%s300 + $0x48] sm:$0xff]
        %v1317 = vld [vmem:[%s300 + $0x50] sm:$0xff]
        %v1318 = vld [vmem:[%s300 + $0x58] sm:$0xff]
        %v1319 = vld [vmem:[%s300 + $0x60] sm:$0xff]
        %v1320 = vld [vmem:[%s300 + $0x68] sm:$0xff]
        %v1321 = vld [vmem:[%s300 + $0x70] sm:$0xff]
        %v1322 = vld [vmem:[%s300 + $0x78] sm:$0xff]
        %v1323 = vmul.f32 %v1307, %v853
        %v1324 = vmul.f32 %v1308, %v883
        %v1325 = vmul.f32 %v1309, %v913
        %v1326 = vmul.f32 %v1310, %v943
        %v1327 = vmul.f32 %v1311, %v973
        %v1328 = vmul.f32 %v1312, %v1003
        %v1329 = vmul.f32 %v1313, %v1033
        %v1330 = vmul.f32 %v1314, %v1063
        %v1331 = vmul.f32 %v1315, %v1093
        %v1332 = vmul.f32 %v1316, %v1123
        %v1333 = vmul.f32 %v1317, %v1153
        %v1334 = vmul.f32 %v1318, %v1183
        %v1335 = vmul.f32 %v1319, %v1213
        %v1336 = vmul.f32 %v1320, %v1243
        %v1337 = vmul.f32 %v1321, %v1273
        %v1338 = vmul.f32 %v1322, %v1303
        %vm1339 = vcmask 123904
        %v1340 = vsel %vm1339, %v1323, 0.0
        %v1341 = vrot.slane %v1340, 4
        %v1342 = vadd.f32 %v1340, %v1341
        %v1343 = vrot.slane %v1342, 2
        %v1344 = vadd.f32 %v1342, %v1343
        %v1345 = vrot.slane %v1344, 1
        %v1346 = vadd.f32 %v1344, %v1345
        %v1347 = vsel %vm1339, %v1324, 0.0
        %v1348 = vrot.slane %v1347, 4
        %v1349 = vadd.f32 %v1347, %v1348
        %v1350 = vrot.slane %v1349, 2
        %v1351 = vadd.f32 %v1349, %v1350
        %v1352 = vrot.slane %v1351, 1
        %v1353 = vadd.f32 %v1351, %v1352
        %v1354 = vsel %vm1339, %v1325, 0.0
        %v1355 = vrot.slane %v1354, 4
        %v1356 = vadd.f32 %v1354, %v1355
        %v1357 = vrot.slane %v1356, 2
        %v1358 = vadd.f32 %v1356, %v1357
        %v1359 = vrot.slane %v1358, 1
        %v1360 = vadd.f32 %v1358, %v1359
        %v1361 = vsel %vm1339, %v1326, 0.0
        %v1362 = vrot.slane %v1361, 4
        %v1363 = vadd.f32 %v1361, %v1362
        %v1364 = vrot.slane %v1363, 2
        %v1365 = vadd.f32 %v1363, %v1364
        %v1366 = vrot.slane %v1365, 1
        %v1367 = vadd.f32 %v1365, %v1366
        %v1368 = vsel %vm1339, %v1327, 0.0
        %v1369 = vrot.slane %v1368, 4
        %v1370 = vadd.f32 %v1368, %v1369
        %v1371 = vrot.slane %v1370, 2
        %v1372 = vadd.f32 %v1370, %v1371
        %v1373 = vrot.slane %v1372, 1
        %v1374 = vadd.f32 %v1372, %v1373
        %v1375 = vsel %vm1339, %v1328, 0.0
        %v1376 = vrot.slane %v1375, 4
        %v1377 = vadd.f32 %v1375, %v1376
        %v1378 = vrot.slane %v1377, 2
        %v1379 = vadd.f32 %v1377, %v1378
        %v1380 = vrot.slane %v1379, 1
        %v1381 = vadd.f32 %v1379, %v1380
        %v1382 = vsel %vm1339, %v1329, 0.0
        %v1383 = vrot.slane %v1382, 4
        %v1384 = vadd.f32 %v1382, %v1383
        %v1385 = vrot.slane %v1384, 2
        %v1386 = vadd.f32 %v1384, %v1385
        %v1387 = vrot.slane %v1386, 1
        %v1388 = vadd.f32 %v1386, %v1387
        %v1389 = vsel %vm1339, %v1330, 0.0
        %v1390 = vrot.slane %v1389, 4
        %v1391 = vadd.f32 %v1389, %v1390
        %v1392 = vrot.slane %v1391, 2
        %v1393 = vadd.f32 %v1391, %v1392
        %v1394 = vrot.slane %v1393, 1
        %v1395 = vadd.f32 %v1393, %v1394
        %v1396 = vsel %vm1339, %v1331, 0.0
        %v1397 = vrot.slane %v1396, 4
        %v1398 = vadd.f32 %v1396, %v1397
        %v1399 = vrot.slane %v1398, 2
        %v1400 = vadd.f32 %v1398, %v1399
        %v1401 = vrot.slane %v1400, 1
        %v1402 = vadd.f32 %v1400, %v1401
        %v1403 = vsel %vm1339, %v1332, 0.0
        %v1404 = vrot.slane %v1403, 4
        %v1405 = vadd.f32 %v1403, %v1404
        %v1406 = vrot.slane %v1405, 2
        %v1407 = vadd.f32 %v1405, %v1406
        %v1408 = vrot.slane %v1407, 1
        %v1409 = vadd.f32 %v1407, %v1408
        %v1410 = vsel %vm1339, %v1333, 0.0
        %v1411 = vrot.slane %v1410, 4
        %v1412 = vadd.f32 %v1410, %v1411
        %v1413 = vrot.slane %v1412, 2
        %v1414 = vadd.f32 %v1412, %v1413
        %v1415 = vrot.slane %v1414, 1
        %v1416 = vadd.f32 %v1414, %v1415
        %v1417 = vsel %vm1339, %v1334, 0.0
        %v1418 = vrot.slane %v1417, 4
        %v1419 = vadd.f32 %v1417, %v1418
        %v1420 = vrot.slane %v1419, 2
        %v1421 = vadd.f32 %v1419, %v1420
        %v1422 = vrot.slane %v1421, 1
        %v1423 = vadd.f32 %v1421, %v1422
        %v1424 = vsel %vm1339, %v1335, 0.0
        %v1425 = vrot.slane %v1424, 4
        %v1426 = vadd.f32 %v1424, %v1425
        %v1427 = vrot.slane %v1426, 2
        %v1428 = vadd.f32 %v1426, %v1427
        %v1429 = vrot.slane %v1428, 1
        %v1430 = vadd.f32 %v1428, %v1429
        %v1431 = vsel %vm1339, %v1336, 0.0
        %v1432 = vrot.slane %v1431, 4
        %v1433 = vadd.f32 %v1431, %v1432
        %v1434 = vrot.slane %v1433, 2
        %v1435 = vadd.f32 %v1433, %v1434
        %v1436 = vrot.slane %v1435, 1
        %v1437 = vadd.f32 %v1435, %v1436
        %v1438 = vsel %vm1339, %v1337, 0.0
        %v1439 = vrot.slane %v1438, 4
        %v1440 = vadd.f32 %v1438, %v1439
        %v1441 = vrot.slane %v1440, 2
        %v1442 = vadd.f32 %v1440, %v1441
        %v1443 = vrot.slane %v1442, 1
        %v1444 = vadd.f32 %v1442, %v1443
        %v1445 = vsel %vm1339, %v1338, 0.0
        %v1446 = vrot.slane %v1445, 4
        %v1447 = vadd.f32 %v1445, %v1446
        %v1448 = vrot.slane %v1447, 2
        %v1449 = vadd.f32 %v1447, %v1448
        %v1450 = vrot.slane %v1449, 1
        %v1451 = vadd.f32 %v1449, %v1450
        %v1454 = vrot.slane %v767, 1
        %v1455 = vrot.slane %v767, 2
        %v1456 = vrot.slane %v767, 3
        %v1457 = vrot.slane %v767, 4
        %v1458 = vrot.slane %v767, 5
        %v1459 = vrot.slane %v767, 6
        %v1460 = vrot.slane %v767, 7
        %v1461 = vrot.slane %v768, 1
        %v1462 = vrot.slane %v768, 2
        %v1463 = vrot.slane %v768, 3
        %v1464 = vrot.slane %v768, 4
        %v1465 = vrot.slane %v768, 5
        %v1466 = vrot.slane %v768, 6
        %v1467 = vrot.slane %v768, 7
        %v1484 = vmul.f32 %v1346, %v767
        %v1485 = vmul.f32 %v1353, %v1454
        %v1486 = vmul.f32 %v1360, %v1455
        %v1487 = vmul.f32 %v1367, %v1456
        %v1488 = vmul.f32 %v1374, %v1457
        %v1489 = vmul.f32 %v1381, %v1458
        %v1490 = vmul.f32 %v1388, %v1459
        %v1491 = vmul.f32 %v1395, %v1460
        %v1492 = vmul.f32 %v1402, %v768
        %v1493 = vmul.f32 %v1409, %v1461
        %v1494 = vmul.f32 %v1416, %v1462
        %v1495 = vmul.f32 %v1423, %v1463
        %v1496 = vmul.f32 %v1430, %v1464
        %v1497 = vmul.f32 %v1437, %v1465
        %v1498 = vmul.f32 %v1444, %v1466
        %v1499 = vmul.f32 %v1451, %v1467
        %v1516 = vrot.slane %v1485, 7
        %vm1517 = vcmask 1041409
        %v1518 = vsel %vm1517, %v1516, %v1484
        %v1519 = vrot.slane %v1486, 6
        %vm1520 = vcmask 1042434
        %v1521 = vsel %vm1520, %v1519, %v1518
        %v1522 = vrot.slane %v1487, 5
        %vm1523 = vcmask 1043459
        %v1524 = vsel %vm1523, %v1522, %v1521
        %v1525 = vrot.slane %v1488, 4
        %vm1526 = vcmask 1044484
        %v1527 = vsel %vm1526, %v1525, %v1524
        %v1528 = vrot.slane %v1489, 3
        %vm1529 = vcmask 1045509
        %v1530 = vsel %vm1529, %v1528, %v1527
        %v1531 = vrot.slane %v1490, 2
        %vm1532 = vcmask 1046534
        %v1533 = vsel %vm1532, %v1531, %v1530
        %v1534 = vrot.slane %v1491, 1
        %vm1535 = vcmask 1047559
        %v1536 = vsel %vm1535, %v1534, %v1533
        %v1537 = vrot.slane %v1493, 7
        %v1538 = vsel %vm1517, %v1537, %v1492
        %v1539 = vrot.slane %v1494, 6
        %v1540 = vsel %vm1520, %v1539, %v1538
        %v1541 = vrot.slane %v1495, 5
        %v1542 = vsel %vm1523, %v1541, %v1540
        %v1543 = vrot.slane %v1496, 4
        %v1544 = vsel %vm1526, %v1543, %v1542
        %v1545 = vrot.slane %v1497, 3
        %v1546 = vsel %vm1529, %v1545, %v1544
        %v1547 = vrot.slane %v1498, 2
        %v1548 = vsel %vm1532, %v1547, %v1546
        %v1549 = vrot.slane %v1499, 1
        %v1550 = vsel %vm1535, %v1549, %v1548
        %1553 = vst.msk [vmem:[%s365] sm:$0xff] %vm786, %v1536
        %1554 = vst.msk [vmem:[%s365 + $0x8] sm:$0xff] %vm786, %v1550
        %v1571 = vrot.slane %v1323, 2
        %v1572 = vrot.slane %v1324, 2
        %v1573 = vrot.slane %v1325, 2
        %v1574 = vrot.slane %v1326, 2
        %v1575 = vrot.slane %v1327, 2
        %v1576 = vrot.slane %v1328, 2
        %v1577 = vrot.slane %v1329, 2
        %v1578 = vrot.slane %v1330, 2
        %v1579 = vrot.slane %v1331, 2
        %v1580 = vrot.slane %v1332, 2
        %v1581 = vrot.slane %v1333, 2
        %v1582 = vrot.slane %v1334, 2
        %v1583 = vrot.slane %v1335, 2
        %v1584 = vrot.slane %v1336, 2
        %v1585 = vrot.slane %v1337, 2
        %v1586 = vrot.slane %v1338, 2
        %v1603 = vsel %vm1339, %v1571, 0.0
        %v1604 = vrot.slane %v1603, 4
        %v1605 = vadd.f32 %v1603, %v1604
        %v1606 = vrot.slane %v1605, 2
        %v1607 = vadd.f32 %v1605, %v1606
        %v1608 = vrot.slane %v1607, 1
        %v1609 = vadd.f32 %v1607, %v1608
        %v1610 = vsel %vm1339, %v1572, 0.0
        %v1611 = vrot.slane %v1610, 4
        %v1612 = vadd.f32 %v1610, %v1611
        %v1613 = vrot.slane %v1612, 2
        %v1614 = vadd.f32 %v1612, %v1613
        %v1615 = vrot.slane %v1614, 1
        %v1616 = vadd.f32 %v1614, %v1615
        %v1617 = vsel %vm1339, %v1573, 0.0
        %v1618 = vrot.slane %v1617, 4
        %v1619 = vadd.f32 %v1617, %v1618
        %v1620 = vrot.slane %v1619, 2
        %v1621 = vadd.f32 %v1619, %v1620
        %v1622 = vrot.slane %v1621, 1
        %v1623 = vadd.f32 %v1621, %v1622
        %v1624 = vsel %vm1339, %v1574, 0.0
        %v1625 = vrot.slane %v1624, 4
        %v1626 = vadd.f32 %v1624, %v1625
        %v1627 = vrot.slane %v1626, 2
        %v1628 = vadd.f32 %v1626, %v1627
        %v1629 = vrot.slane %v1628, 1
        %v1630 = vadd.f32 %v1628, %v1629
        %v1631 = vsel %vm1339, %v1575, 0.0
        %v1632 = vrot.slane %v1631, 4
        %v1633 = vadd.f32 %v1631, %v1632
        %v1634 = vrot.slane %v1633, 2
        %v1635 = vadd.f32 %v1633, %v1634
        %v1636 = vrot.slane %v1635, 1
        %v1637 = vadd.f32 %v1635, %v1636
        %v1638 = vsel %vm1339, %v1576, 0.0
        %v1639 = vrot.slane %v1638, 4
        %v1640 = vadd.f32 %v1638, %v1639
        %v1641 = vrot.slane %v1640, 2
        %v1642 = vadd.f32 %v1640, %v1641
        %v1643 = vrot.slane %v1642, 1
        %v1644 = vadd.f32 %v1642, %v1643
        %v1645 = vsel %vm1339, %v1577, 0.0
        %v1646 = vrot.slane %v1645, 4
        %v1647 = vadd.f32 %v1645, %v1646
        %v1648 = vrot.slane %v1647, 2
        %v1649 = vadd.f32 %v1647, %v1648
        %v1650 = vrot.slane %v1649, 1
        %v1651 = vadd.f32 %v1649, %v1650
        %v1652 = vsel %vm1339, %v1578, 0.0
        %v1653 = vrot.slane %v1652, 4
        %v1654 = vadd.f32 %v1652, %v1653
        %v1655 = vrot.slane %v1654, 2
        %v1656 = vadd.f32 %v1654, %v1655
        %v1657 = vrot.slane %v1656, 1
        %v1658 = vadd.f32 %v1656, %v1657
        %v1659 = vsel %vm1339, %v1579, 0.0
        %v1660 = vrot.slane %v1659, 4
        %v1661 = vadd.f32 %v1659, %v1660
        %v1662 = vrot.slane %v1661, 2
        %v1663 = vadd.f32 %v1661, %v1662
        %v1664 = vrot.slane %v1663, 1
        %v1665 = vadd.f32 %v1663, %v1664
        %v1666 = vsel %vm1339, %v1580, 0.0
        %v1667 = vrot.slane %v1666, 4
        %v1668 = vadd.f32 %v1666, %v1667
        %v1669 = vrot.slane %v1668, 2
        %v1670 = vadd.f32 %v1668, %v1669
        %v1671 = vrot.slane %v1670, 1
        %v1672 = vadd.f32 %v1670, %v1671
        %v1673 = vsel %vm1339, %v1581, 0.0
        %v1674 = vrot.slane %v1673, 4
        %v1675 = vadd.f32 %v1673, %v1674
        %v1676 = vrot.slane %v1675, 2
        %v1677 = vadd.f32 %v1675, %v1676
        %v1678 = vrot.slane %v1677, 1
        %v1679 = vadd.f32 %v1677, %v1678
        %v1680 = vsel %vm1339, %v1582, 0.0
        %v1681 = vrot.slane %v1680, 4
        %v1682 = vadd.f32 %v1680, %v1681
        %v1683 = vrot.slane %v1682, 2
        %v1684 = vadd.f32 %v1682, %v1683
        %v1685 = vrot.slane %v1684, 1
        %v1686 = vadd.f32 %v1684, %v1685
        %v1687 = vsel %vm1339, %v1583, 0.0
        %v1688 = vrot.slane %v1687, 4
        %v1689 = vadd.f32 %v1687, %v1688
        %v1690 = vrot.slane %v1689, 2
        %v1691 = vadd.f32 %v1689, %v1690
        %v1692 = vrot.slane %v1691, 1
        %v1693 = vadd.f32 %v1691, %v1692
        %v1694 = vsel %vm1339, %v1584, 0.0
        %v1695 = vrot.slane %v1694, 4
        %v1696 = vadd.f32 %v1694, %v1695
        %v1697 = vrot.slane %v1696, 2
        %v1698 = vadd.f32 %v1696, %v1697
        %v1699 = vrot.slane %v1698, 1
        %v1700 = vadd.f32 %v1698, %v1699
        %v1701 = vsel %vm1339, %v1585, 0.0
        %v1702 = vrot.slane %v1701, 4
        %v1703 = vadd.f32 %v1701, %v1702
        %v1704 = vrot.slane %v1703, 2
        %v1705 = vadd.f32 %v1703, %v1704
        %v1706 = vrot.slane %v1705, 1
        %v1707 = vadd.f32 %v1705, %v1706
        %v1708 = vsel %vm1339, %v1586, 0.0
        %v1709 = vrot.slane %v1708, 4
        %v1710 = vadd.f32 %v1708, %v1709
        %v1711 = vrot.slane %v1710, 2
        %v1712 = vadd.f32 %v1710, %v1711
        %v1713 = vrot.slane %v1712, 1
        %v1714 = vadd.f32 %v1712, %v1713
        %v1715 = vmul.f32 %v1609, %v767
        %v1716 = vmul.f32 %v1616, %v1454
        %v1717 = vmul.f32 %v1623, %v1455
        %v1718 = vmul.f32 %v1630, %v1456
        %v1719 = vmul.f32 %v1637, %v1457
        %v1720 = vmul.f32 %v1644, %v1458
        %v1721 = vmul.f32 %v1651, %v1459
        %v1722 = vmul.f32 %v1658, %v1460
        %v1723 = vmul.f32 %v1665, %v768
        %v1724 = vmul.f32 %v1672, %v1461
        %v1725 = vmul.f32 %v1679, %v1462
        %v1726 = vmul.f32 %v1686, %v1463
        %v1727 = vmul.f32 %v1693, %v1464
        %v1728 = vmul.f32 %v1700, %v1465
        %v1729 = vmul.f32 %v1707, %v1466
        %v1730 = vmul.f32 %v1714, %v1467
        %v1747 = vrot.slane %v1716, 7
        %v1748 = vsel %vm1517, %v1747, %v1715
        %v1749 = vrot.slane %v1717, 6
        %v1750 = vsel %vm1520, %v1749, %v1748
        %v1751 = vrot.slane %v1718, 5
        %v1752 = vsel %vm1523, %v1751, %v1750
        %v1753 = vrot.slane %v1719, 4
        %v1754 = vsel %vm1526, %v1753, %v1752
        %v1755 = vrot.slane %v1720, 3
        %v1756 = vsel %vm1529, %v1755, %v1754
        %v1757 = vrot.slane %v1721, 2
        %v1758 = vsel %vm1532, %v1757, %v1756
        %v1759 = vrot.slane %v1722, 1
        %v1760 = vsel %vm1535, %v1759, %v1758
        %v1761 = vrot.slane %v1724, 7
        %v1762 = vsel %vm1517, %v1761, %v1723
        %v1763 = vrot.slane %v1725, 6
        %v1764 = vsel %vm1520, %v1763, %v1762
        %v1765 = vrot.slane %v1726, 5
        %v1766 = vsel %vm1523, %v1765, %v1764
        %v1767 = vrot.slane %v1727, 4
        %v1768 = vsel %vm1526, %v1767, %v1766
        %v1769 = vrot.slane %v1728, 3
        %v1770 = vsel %vm1529, %v1769, %v1768
        %v1771 = vrot.slane %v1729, 2
        %v1772 = vsel %vm1532, %v1771, %v1770
        %v1773 = vrot.slane %v1730, 1
        %v1774 = vsel %vm1535, %v1773, %v1772
        %s1777 = scalar_lea.vmem %s365, 16 [#allocation8]
        %1778 = vst.msk [vmem:[%s1777] sm:$0xff] %vm786, %v1760
        %1779 = vst.msk [vmem:[%s1777 + $0x8] sm:$0xff] %vm786, %v1774
        %v1780 = vrot.slane %v1323, 4
        %v1781 = vrot.slane %v1324, 4
        %v1782 = vrot.slane %v1325, 4
        %v1783 = vrot.slane %v1326, 4
        %v1784 = vrot.slane %v1327, 4
        %v1785 = vrot.slane %v1328, 4
        %v1786 = vrot.slane %v1329, 4
        %v1787 = vrot.slane %v1330, 4
        %v1788 = vrot.slane %v1331, 4
        %v1789 = vrot.slane %v1332, 4
        %v1790 = vrot.slane %v1333, 4
        %v1791 = vrot.slane %v1334, 4
        %v1792 = vrot.slane %v1335, 4
        %v1793 = vrot.slane %v1336, 4
        %v1794 = vrot.slane %v1337, 4
        %v1795 = vrot.slane %v1338, 4
        %v1812 = vsel %vm1339, %v1780, 0.0
        %v1813 = vrot.slane %v1812, 4
        %v1814 = vadd.f32 %v1812, %v1813
        %v1815 = vrot.slane %v1814, 2
        %v1816 = vadd.f32 %v1814, %v1815
        %v1817 = vrot.slane %v1816, 1
        %v1818 = vadd.f32 %v1816, %v1817
        %v1819 = vsel %vm1339, %v1781, 0.0
        %v1820 = vrot.slane %v1819, 4
        %v1821 = vadd.f32 %v1819, %v1820
        %v1822 = vrot.slane %v1821, 2
        %v1823 = vadd.f32 %v1821, %v1822
        %v1824 = vrot.slane %v1823, 1
        %v1825 = vadd.f32 %v1823, %v1824
        %v1826 = vsel %vm1339, %v1782, 0.0
        %v1827 = vrot.slane %v1826, 4
        %v1828 = vadd.f32 %v1826, %v1827
        %v1829 = vrot.slane %v1828, 2
        %v1830 = vadd.f32 %v1828, %v1829
        %v1831 = vrot.slane %v1830, 1
        %v1832 = vadd.f32 %v1830, %v1831
        %v1833 = vsel %vm1339, %v1783, 0.0
        %v1834 = vrot.slane %v1833, 4
        %v1835 = vadd.f32 %v1833, %v1834
        %v1836 = vrot.slane %v1835, 2
        %v1837 = vadd.f32 %v1835, %v1836
        %v1838 = vrot.slane %v1837, 1
        %v1839 = vadd.f32 %v1837, %v1838
        %v1840 = vsel %vm1339, %v1784, 0.0
        %v1841 = vrot.slane %v1840, 4
        %v1842 = vadd.f32 %v1840, %v1841
        %v1843 = vrot.slane %v1842, 2
        %v1844 = vadd.f32 %v1842, %v1843
        %v1845 = vrot.slane %v1844, 1
        %v1846 = vadd.f32 %v1844, %v1845
        %v1847 = vsel %vm1339, %v1785, 0.0
        %v1848 = vrot.slane %v1847, 4
        %v1849 = vadd.f32 %v1847, %v1848
        %v1850 = vrot.slane %v1849, 2
        %v1851 = vadd.f32 %v1849, %v1850
        %v1852 = vrot.slane %v1851, 1
        %v1853 = vadd.f32 %v1851, %v1852
        %v1854 = vsel %vm1339, %v1786, 0.0
        %v1855 = vrot.slane %v1854, 4
        %v1856 = vadd.f32 %v1854, %v1855
        %v1857 = vrot.slane %v1856, 2
        %v1858 = vadd.f32 %v1856, %v1857
        %v1859 = vrot.slane %v1858, 1
        %v1860 = vadd.f32 %v1858, %v1859
        %v1861 = vsel %vm1339, %v1787, 0.0
        %v1862 = vrot.slane %v1861, 4
        %v1863 = vadd.f32 %v1861, %v1862
        %v1864 = vrot.slane %v1863, 2
        %v1865 = vadd.f32 %v1863, %v1864
        %v1866 = vrot.slane %v1865, 1
        %v1867 = vadd.f32 %v1865, %v1866
        %v1868 = vsel %vm1339, %v1788, 0.0
        %v1869 = vrot.slane %v1868, 4
        %v1870 = vadd.f32 %v1868, %v1869
        %v1871 = vrot.slane %v1870, 2
        %v1872 = vadd.f32 %v1870, %v1871
        %v1873 = vrot.slane %v1872, 1
        %v1874 = vadd.f32 %v1872, %v1873
        %v1875 = vsel %vm1339, %v1789, 0.0
        %v1876 = vrot.slane %v1875, 4
        %v1877 = vadd.f32 %v1875, %v1876
        %v1878 = vrot.slane %v1877, 2
        %v1879 = vadd.f32 %v1877, %v1878
        %v1880 = vrot.slane %v1879, 1
        %v1881 = vadd.f32 %v1879, %v1880
        %v1882 = vsel %vm1339, %v1790, 0.0
        %v1883 = vrot.slane %v1882, 4
        %v1884 = vadd.f32 %v1882, %v1883
        %v1885 = vrot.slane %v1884, 2
        %v1886 = vadd.f32 %v1884, %v1885
        %v1887 = vrot.slane %v1886, 1
        %v1888 = vadd.f32 %v1886, %v1887
        %v1889 = vsel %vm1339, %v1791, 0.0
        %v1890 = vrot.slane %v1889, 4
        %v1891 = vadd.f32 %v1889, %v1890
        %v1892 = vrot.slane %v1891, 2
        %v1893 = vadd.f32 %v1891, %v1892
        %v1894 = vrot.slane %v1893, 1
        %v1895 = vadd.f32 %v1893, %v1894
        %v1896 = vsel %vm1339, %v1792, 0.0
        %v1897 = vrot.slane %v1896, 4
        %v1898 = vadd.f32 %v1896, %v1897
        %v1899 = vrot.slane %v1898, 2
        %v1900 = vadd.f32 %v1898, %v1899
        %v1901 = vrot.slane %v1900, 1
        %v1902 = vadd.f32 %v1900, %v1901
        %v1903 = vsel %vm1339, %v1793, 0.0
        %v1904 = vrot.slane %v1903, 4
        %v1905 = vadd.f32 %v1903, %v1904
        %v1906 = vrot.slane %v1905, 2
        %v1907 = vadd.f32 %v1905, %v1906
        %v1908 = vrot.slane %v1907, 1
        %v1909 = vadd.f32 %v1907, %v1908
        %v1910 = vsel %vm1339, %v1794, 0.0
        %v1911 = vrot.slane %v1910, 4
        %v1912 = vadd.f32 %v1910, %v1911
        %v1913 = vrot.slane %v1912, 2
        %v1914 = vadd.f32 %v1912, %v1913
        %v1915 = vrot.slane %v1914, 1
        %v1916 = vadd.f32 %v1914, %v1915
        %v1917 = vsel %vm1339, %v1795, 0.0
        %v1918 = vrot.slane %v1917, 4
        %v1919 = vadd.f32 %v1917, %v1918
        %v1920 = vrot.slane %v1919, 2
        %v1921 = vadd.f32 %v1919, %v1920
        %v1922 = vrot.slane %v1921, 1
        %v1923 = vadd.f32 %v1921, %v1922
        %v1924 = vmul.f32 %v1818, %v767
        %v1925 = vmul.f32 %v1825, %v1454
        %v1926 = vmul.f32 %v1832, %v1455
        %v1927 = vmul.f32 %v1839, %v1456
        %v1928 = vmul.f32 %v1846, %v1457
        %v1929 = vmul.f32 %v1853, %v1458
        %v1930 = vmul.f32 %v1860, %v1459
        %v1931 = vmul.f32 %v1867, %v1460
        %v1932 = vmul.f32 %v1874, %v768
        %v1933 = vmul.f32 %v1881, %v1461
        %v1934 = vmul.f32 %v1888, %v1462
        %v1935 = vmul.f32 %v1895, %v1463
        %v1936 = vmul.f32 %v1902, %v1464
        %v1937 = vmul.f32 %v1909, %v1465
        %v1938 = vmul.f32 %v1916, %v1466
        %v1939 = vmul.f32 %v1923, %v1467
        %v1956 = vrot.slane %v1925, 7
        %v1957 = vsel %vm1517, %v1956, %v1924
        %v1958 = vrot.slane %v1926, 6
        %v1959 = vsel %vm1520, %v1958, %v1957
        %v1960 = vrot.slane %v1927, 5
        %v1961 = vsel %vm1523, %v1960, %v1959
        %v1962 = vrot.slane %v1928, 4
        %v1963 = vsel %vm1526, %v1962, %v1961
        %v1964 = vrot.slane %v1929, 3
        %v1965 = vsel %vm1529, %v1964, %v1963
        %v1966 = vrot.slane %v1930, 2
        %v1967 = vsel %vm1532, %v1966, %v1965
        %v1968 = vrot.slane %v1931, 1
        %v1969 = vsel %vm1535, %v1968, %v1967
        %v1970 = vrot.slane %v1933, 7
        %v1971 = vsel %vm1517, %v1970, %v1932
        %v1972 = vrot.slane %v1934, 6
        %v1973 = vsel %vm1520, %v1972, %v1971
        %v1974 = vrot.slane %v1935, 5
        %v1975 = vsel %vm1523, %v1974, %v1973
        %v1976 = vrot.slane %v1936, 4
        %v1977 = vsel %vm1526, %v1976, %v1975
        %v1978 = vrot.slane %v1937, 3
        %v1979 = vsel %vm1529, %v1978, %v1977
        %v1980 = vrot.slane %v1938, 2
        %v1981 = vsel %vm1532, %v1980, %v1979
        %v1982 = vrot.slane %v1939, 1
        %v1983 = vsel %vm1535, %v1982, %v1981
        %s1986 = scalar_lea.vmem %s365, 32 [#allocation8]
        %1987 = vst.msk [vmem:[%s1986] sm:$0xff] %vm786, %v1969
        %1988 = vst.msk [vmem:[%s1986 + $0x8] sm:$0xff] %vm786, %v1983
        %v1989 = vrot.slane %v1323, 6
        %v1990 = vrot.slane %v1324, 6
        %v1991 = vrot.slane %v1325, 6
        %v1992 = vrot.slane %v1326, 6
        %v1993 = vrot.slane %v1327, 6
        %v1994 = vrot.slane %v1328, 6
        %v1995 = vrot.slane %v1329, 6
        %v1996 = vrot.slane %v1330, 6
        %v1997 = vrot.slane %v1331, 6
        %v1998 = vrot.slane %v1332, 6
        %v1999 = vrot.slane %v1333, 6
        %v2000 = vrot.slane %v1334, 6
        %v2001 = vrot.slane %v1335, 6
        %v2002 = vrot.slane %v1336, 6
        %v2003 = vrot.slane %v1337, 6
        %v2004 = vrot.slane %v1338, 6
        %v2021 = vsel %vm1339, %v1989, 0.0
        %v2022 = vrot.slane %v2021, 4
        %v2023 = vadd.f32 %v2021, %v2022
        %v2024 = vrot.slane %v2023, 2
        %v2025 = vadd.f32 %v2023, %v2024
        %v2026 = vrot.slane %v2025, 1
        %v2027 = vadd.f32 %v2025, %v2026
        %v2028 = vsel %vm1339, %v1990, 0.0
        %v2029 = vrot.slane %v2028, 4
        %v2030 = vadd.f32 %v2028, %v2029
        %v2031 = vrot.slane %v2030, 2
        %v2032 = vadd.f32 %v2030, %v2031
        %v2033 = vrot.slane %v2032, 1
        %v2034 = vadd.f32 %v2032, %v2033
        %v2035 = vsel %vm1339, %v1991, 0.0
        %v2036 = vrot.slane %v2035, 4
        %v2037 = vadd.f32 %v2035, %v2036
        %v2038 = vrot.slane %v2037, 2
        %v2039 = vadd.f32 %v2037, %v2038
        %v2040 = vrot.slane %v2039, 1
        %v2041 = vadd.f32 %v2039, %v2040
        %v2042 = vsel %vm1339, %v1992, 0.0
        %v2043 = vrot.slane %v2042, 4
        %v2044 = vadd.f32 %v2042, %v2043
        %v2045 = vrot.slane %v2044, 2
        %v2046 = vadd.f32 %v2044, %v2045
        %v2047 = vrot.slane %v2046, 1
        %v2048 = vadd.f32 %v2046, %v2047
        %v2049 = vsel %vm1339, %v1993, 0.0
        %v2050 = vrot.slane %v2049, 4
        %v2051 = vadd.f32 %v2049, %v2050
        %v2052 = vrot.slane %v2051, 2
        %v2053 = vadd.f32 %v2051, %v2052
        %v2054 = vrot.slane %v2053, 1
        %v2055 = vadd.f32 %v2053, %v2054
        %v2056 = vsel %vm1339, %v1994, 0.0
        %v2057 = vrot.slane %v2056, 4
        %v2058 = vadd.f32 %v2056, %v2057
        %v2059 = vrot.slane %v2058, 2
        %v2060 = vadd.f32 %v2058, %v2059
        %v2061 = vrot.slane %v2060, 1
        %v2062 = vadd.f32 %v2060, %v2061
        %v2063 = vsel %vm1339, %v1995, 0.0
        %v2064 = vrot.slane %v2063, 4
        %v2065 = vadd.f32 %v2063, %v2064
        %v2066 = vrot.slane %v2065, 2
        %v2067 = vadd.f32 %v2065, %v2066
        %v2068 = vrot.slane %v2067, 1
        %v2069 = vadd.f32 %v2067, %v2068
        %v2070 = vsel %vm1339, %v1996, 0.0
        %v2071 = vrot.slane %v2070, 4
        %v2072 = vadd.f32 %v2070, %v2071
        %v2073 = vrot.slane %v2072, 2
        %v2074 = vadd.f32 %v2072, %v2073
        %v2075 = vrot.slane %v2074, 1
        %v2076 = vadd.f32 %v2074, %v2075
        %v2077 = vsel %vm1339, %v1997, 0.0
        %v2078 = vrot.slane %v2077, 4
        %v2079 = vadd.f32 %v2077, %v2078
        %v2080 = vrot.slane %v2079, 2
        %v2081 = vadd.f32 %v2079, %v2080
        %v2082 = vrot.slane %v2081, 1
        %v2083 = vadd.f32 %v2081, %v2082
        %v2084 = vsel %vm1339, %v1998, 0.0
        %v2085 = vrot.slane %v2084, 4
        %v2086 = vadd.f32 %v2084, %v2085
        %v2087 = vrot.slane %v2086, 2
        %v2088 = vadd.f32 %v2086, %v2087
        %v2089 = vrot.slane %v2088, 1
        %v2090 = vadd.f32 %v2088, %v2089
        %v2091 = vsel %vm1339, %v1999, 0.0
        %v2092 = vrot.slane %v2091, 4
        %v2093 = vadd.f32 %v2091, %v2092
        %v2094 = vrot.slane %v2093, 2
        %v2095 = vadd.f32 %v2093, %v2094
        %v2096 = vrot.slane %v2095, 1
        %v2097 = vadd.f32 %v2095, %v2096
        %v2098 = vsel %vm1339, %v2000, 0.0
        %v2099 = vrot.slane %v2098, 4
        %v2100 = vadd.f32 %v2098, %v2099
        %v2101 = vrot.slane %v2100, 2
        %v2102 = vadd.f32 %v2100, %v2101
        %v2103 = vrot.slane %v2102, 1
        %v2104 = vadd.f32 %v2102, %v2103
        %v2105 = vsel %vm1339, %v2001, 0.0
        %v2106 = vrot.slane %v2105, 4
        %v2107 = vadd.f32 %v2105, %v2106
        %v2108 = vrot.slane %v2107, 2
        %v2109 = vadd.f32 %v2107, %v2108
        %v2110 = vrot.slane %v2109, 1
        %v2111 = vadd.f32 %v2109, %v2110
        %v2112 = vsel %vm1339, %v2002, 0.0
        %v2113 = vrot.slane %v2112, 4
        %v2114 = vadd.f32 %v2112, %v2113
        %v2115 = vrot.slane %v2114, 2
        %v2116 = vadd.f32 %v2114, %v2115
        %v2117 = vrot.slane %v2116, 1
        %v2118 = vadd.f32 %v2116, %v2117
        %v2119 = vsel %vm1339, %v2003, 0.0
        %v2120 = vrot.slane %v2119, 4
        %v2121 = vadd.f32 %v2119, %v2120
        %v2122 = vrot.slane %v2121, 2
        %v2123 = vadd.f32 %v2121, %v2122
        %v2124 = vrot.slane %v2123, 1
        %v2125 = vadd.f32 %v2123, %v2124
        %v2126 = vsel %vm1339, %v2004, 0.0
        %v2127 = vrot.slane %v2126, 4
        %v2128 = vadd.f32 %v2126, %v2127
        %v2129 = vrot.slane %v2128, 2
        %v2130 = vadd.f32 %v2128, %v2129
        %v2131 = vrot.slane %v2130, 1
        %v2132 = vadd.f32 %v2130, %v2131
        %v2133 = vmul.f32 %v2027, %v767
        %v2134 = vmul.f32 %v2034, %v1454
        %v2135 = vmul.f32 %v2041, %v1455
        %v2136 = vmul.f32 %v2048, %v1456
        %v2137 = vmul.f32 %v2055, %v1457
        %v2138 = vmul.f32 %v2062, %v1458
        %v2139 = vmul.f32 %v2069, %v1459
        %v2140 = vmul.f32 %v2076, %v1460
        %v2141 = vmul.f32 %v2083, %v768
        %v2142 = vmul.f32 %v2090, %v1461
        %v2143 = vmul.f32 %v2097, %v1462
        %v2144 = vmul.f32 %v2104, %v1463
        %v2145 = vmul.f32 %v2111, %v1464
        %v2146 = vmul.f32 %v2118, %v1465
        %v2147 = vmul.f32 %v2125, %v1466
        %v2148 = vmul.f32 %v2132, %v1467
        %v2165 = vrot.slane %v2134, 7
        %v2166 = vsel %vm1517, %v2165, %v2133
        %v2167 = vrot.slane %v2135, 6
        %v2168 = vsel %vm1520, %v2167, %v2166
        %v2169 = vrot.slane %v2136, 5
        %v2170 = vsel %vm1523, %v2169, %v2168
        %v2171 = vrot.slane %v2137, 4
        %v2172 = vsel %vm1526, %v2171, %v2170
        %v2173 = vrot.slane %v2138, 3
        %v2174 = vsel %vm1529, %v2173, %v2172
        %v2175 = vrot.slane %v2139, 2
        %v2176 = vsel %vm1532, %v2175, %v2174
        %v2177 = vrot.slane %v2140, 1
        %v2178 = vsel %vm1535, %v2177, %v2176
        %v2179 = vrot.slane %v2142, 7
        %v2180 = vsel %vm1517, %v2179, %v2141
        %v2181 = vrot.slane %v2143, 6
        %v2182 = vsel %vm1520, %v2181, %v2180
        %v2183 = vrot.slane %v2144, 5
        %v2184 = vsel %vm1523, %v2183, %v2182
        %v2185 = vrot.slane %v2145, 4
        %v2186 = vsel %vm1526, %v2185, %v2184
        %v2187 = vrot.slane %v2146, 3
        %v2188 = vsel %vm1529, %v2187, %v2186
        %v2189 = vrot.slane %v2147, 2
        %v2190 = vsel %vm1532, %v2189, %v2188
        %v2191 = vrot.slane %v2148, 1
        %v2192 = vsel %vm1535, %v2191, %v2190
        %s2195 = scalar_lea.vmem %s365, 48 [#allocation8]
        %2196 = vst.msk [vmem:[%s2195] sm:$0xff] %vm786, %v2178
        %2197 = vst.msk [vmem:[%s2195 + $0x8] sm:$0xff] %vm786, %v2192
        %v2198 = vrot.slane %v915, 4
        %vm2199 = vcmask 1047556
        %v2200 = vsel %vm2199, %v2198, %v855
        %v2202 = vunpack.c.l.s4 1983009808
        %v2203 = vunpack.c.0.s8 %v2202
        %v2204 = vperm.slane %v2200, %v2203
        %v2205 = vrot.slane %v945, 4
        %v2206 = vsel %vm2199, %v2205, %v885
        %v2208 = vunpack.c.l.s4 1983009808
        %v2209 = vunpack.c.0.s8 %v2208
        %v2210 = vperm.slane %v2206, %v2209
        %v2211 = vrot.slane %v1035, 4
        %v2212 = vsel %vm2199, %v2211, %v975
        %v2214 = vunpack.c.l.s4 1983009808
        %v2215 = vunpack.c.0.s8 %v2214
        %v2216 = vperm.slane %v2212, %v2215
        %v2217 = vrot.slane %v1065, 4
        %v2218 = vsel %vm2199, %v2217, %v1005
        %v2220 = vunpack.c.l.s4 1983009808
        %v2221 = vunpack.c.0.s8 %v2220
        %v2222 = vperm.slane %v2218, %v2221
        %v2223 = vrot.slane %v2210, 4
        %v2224 = vsel %vm2199, %v2223, %v2204
        %v2225 = vrot.slane %v2204, 4
        %v2226 = vsel %vm2199, %v2210, %v2225
        %v2228 = vunpack.c.l.s4 1934713408
        %v2229 = vunpack.c.0.s8 %v2228
        %v2230 = vperm.slane %v2224, %v2229
        %v2232 = vunpack.c.l.s4 1934713408
        %v2233 = vunpack.c.0.s8 %v2232
        %v2234 = vperm.slane %v2226, %v2233
        %v2235 = vrot.slane %v2222, 4
        %v2236 = vsel %vm2199, %v2235, %v2216
        %v2237 = vrot.slane %v2216, 4
        %v2238 = vsel %vm2199, %v2222, %v2237
        %v2240 = vunpack.c.l.s4 1934713408
        %v2241 = vunpack.c.0.s8 %v2240
        %v2242 = vperm.slane %v2236, %v2241
        %v2244 = vunpack.c.l.s4 1934713408
        %v2245 = vunpack.c.0.s8 %v2244
        %v2246 = vperm.slane %v2238, %v2245
        %v2247 = vrot.slane %v2242, 4
        %v2248 = vsel %vm2199, %v2247, %v2230
        %v2249 = vrot.slane %v2230, 4
        %v2250 = vsel %vm2199, %v2242, %v2249
        %v2251 = vrot.slane %v2246, 4
        %v2252 = vsel %vm2199, %v2251, %v2234
        %v2253 = vrot.slane %v2234, 4
        %v2254 = vsel %vm2199, %v2246, %v2253
        %v2255 = vrot.slane %v1155, 4
        %v2256 = vsel %vm2199, %v2255, %v1095
        %v2258 = vunpack.c.l.s4 1983009808
        %v2259 = vunpack.c.0.s8 %v2258
        %v2260 = vperm.slane %v2256, %v2259
        %v2261 = vrot.slane %v1185, 4
        %v2262 = vsel %vm2199, %v2261, %v1125
        %v2264 = vunpack.c.l.s4 1983009808
        %v2265 = vunpack.c.0.s8 %v2264
        %v2266 = vperm.slane %v2262, %v2265
        %v2267 = vrot.slane %v1275, 4
        %v2268 = vsel %vm2199, %v2267, %v1215
        %v2270 = vunpack.c.l.s4 1983009808
        %v2271 = vunpack.c.0.s8 %v2270
        %v2272 = vperm.slane %v2268, %v2271
        %v2273 = vrot.slane %v1305, 4
        %v2274 = vsel %vm2199, %v2273, %v1245
        %v2276 = vunpack.c.l.s4 1983009808
        %v2277 = vunpack.c.0.s8 %v2276
        %v2278 = vperm.slane %v2274, %v2277
        %v2279 = vrot.slane %v2266, 4
        %v2280 = vsel %vm2199, %v2279, %v2260
        %v2281 = vrot.slane %v2260, 4
        %v2282 = vsel %vm2199, %v2266, %v2281
        %v2284 = vunpack.c.l.s4 1934713408
        %v2285 = vunpack.c.0.s8 %v2284
        %v2286 = vperm.slane %v2280, %v2285
        %v2288 = vunpack.c.l.s4 1934713408
        %v2289 = vunpack.c.0.s8 %v2288
        %v2290 = vperm.slane %v2282, %v2289
        %v2291 = vrot.slane %v2278, 4
        %v2292 = vsel %vm2199, %v2291, %v2272
        %v2293 = vrot.slane %v2272, 4
        %v2294 = vsel %vm2199, %v2278, %v2293
        %v2296 = vunpack.c.l.s4 1934713408
        %v2297 = vunpack.c.0.s8 %v2296
        %v2298 = vperm.slane %v2292, %v2297
        %v2300 = vunpack.c.l.s4 1934713408
        %v2301 = vunpack.c.0.s8 %v2300
        %v2302 = vperm.slane %v2294, %v2301
        %v2303 = vrot.slane %v2298, 4
        %v2304 = vsel %vm2199, %v2303, %v2286
        %v2305 = vrot.slane %v2286, 4
        %v2306 = vsel %vm2199, %v2298, %v2305
        %v2307 = vrot.slane %v2302, 4
        %v2308 = vsel %vm2199, %v2307, %v2290
        %v2309 = vrot.slane %v2290, 4
        %v2310 = vsel %vm2199, %v2302, %v2309
        %s2311 = scalar_lea.vmem %s365, 128 [#allocation8]
        %2312 = vst.msk [vmem:[%s2311] sm:$0xff] %vm786, %v2248
        %2313 = vst.msk [vmem:[%s2311 + $0x8] sm:$0xff] %vm786, %v2304
        %2314 = vst.msk [vmem:[%s2311 + $0x10] sm:$0xff] %vm786, %v2250
        %2315 = vst.msk [vmem:[%s2311 + $0x18] sm:$0xff] %vm786, %v2306
        %2316 = vst.msk [vmem:[%s2311 + $0x20] sm:$0xff] %vm786, %v2252
        %2317 = vst.msk [vmem:[%s2311 + $0x28] sm:$0xff] %vm786, %v2308
        %2318 = vst.msk [vmem:[%s2311 + $0x30] sm:$0xff] %vm786, %v2254
        %2319 = vst.msk [vmem:[%s2311 + $0x38] sm:$0xff] %vm786, %v2310
        %s2320 = sand.u32 %s169, 1
        %s2321 = scalar_lea.sflag [#allocation4], %s2320
        %s2322 = sand.u32 %s169, 1
        %s2323 = smul.addr %s2322, 192
        %s2324 = scalar_lea.vmem [#allocation8], %s2323
        // Predicated region
        $region49: #{tpu_custom_call.1} parent=35 // pred_check
          %p2325 = pneg %p179
        $region50: #{tpu_custom_call.1} parent=35 // pred_check_branch
          %2327 = sbr.rel (%p2325) target = $region52
        $region51: #{tpu_custom_call.1} parent=35 // pred_region
          #allocation10 [shape = 'u32[6]{0}', space=smem, size = 0x18, scoped, tag = 'DMA stride descriptor']
          %s2328 = smul.u32 2, %s30
          %2330 = vsyncadd %s2321, 0
          %s2331 = smul.addr %s31, 2
          %s2332 = sadd.s32 %s2328, %s2331
          %s2333 = smul.addr %s29, 192
          %s2334 = sadd.s32 %s2332, %s2333
          %s2335 = smul.addr %s2334, 8
          %s2336 = scalar_lea.hbm %s4, %s2335
          %s2338 = sshll.u32 1, 14
          %s2339 = sxor.u32 4294967295, %s2338
          %s2342 = sshll.u32 7, 18
          %s2343 = sxor.u32 4294967295, %s2342
          %s2344 = sand.u32 0, %s2343
          %s2346 = sor.u32 %s2344, 0
          %s2347 = sshll.u32 %s2324, 4
          %s2348 = int_to_ptr.vmem [resolvable:$true] %s2347
          %s2349 = sshll.u32 %s2336, 4
          %s2350 = int_to_ptr.hbm [resolvable:$true] %s2349
          %2356 = sst [smem:[#allocation10]] 256
          %s2357 = scalar_lea.smem [#allocation10], 1
          %2358 = sst [smem:[%s2357]] 2048
          %s2359 = scalar_lea.smem [#allocation10], 2
          %2360 = sst [smem:[%s2359]] 2
          %s2361 = scalar_lea.smem [#allocation10], 3
          %2362 = sst [smem:[%s2361]] 128
          %s2363 = scalar_lea.smem [#allocation10], 4
          %2364 = sst [smem:[%s2363]] 128
          %s2365 = scalar_lea.smem [#allocation10], 5
          %2366 = sst [smem:[%s2365]] 8
          %2368 = dma.general %s2348, 3072, %s2350, %s2321, [#allocation9], [#allocation10], %s2346, 0
        $region52: #{tpu_custom_call.1} parent=35 // pred_fallthru
          _
      $region36: #{tpu_custom_call.1} parent=5 // pred_fallthru
        _
      %p2369 = scmp.le.s32.totalorder 2, %s19
      // Predicated region
      $region53: #{tpu_custom_call.1} parent=5 // pred_check
        %p2370 = pneg %p2369
      $region54: #{tpu_custom_call.1} parent=5 // pred_check_branch
        %2372 = sbr.rel (%p2370) target = $region56
      $region55: #{tpu_custom_call.1} parent=5 // pred_region
        %s2373 = ssub.s32 %s19, 2
        // Predicated region
        $region57: #{tpu_custom_call.1} parent=55 // pred_check
          %p2374 = pneg %p185
        $region58: #{tpu_custom_call.1} parent=55 // pred_check_branch
          %2376 = sbr.rel (%p2374) target = $region60
        $region59: #{tpu_custom_call.1} parent=55 // pred_region
          %s2377 = sand.u32 %s170, 1
          %s2378 = scalar_lea.sflag [#allocation4], %s2377
          %s2379 = sand.u32 %s170, 1
          %s2380 = smul.addr %s2379, 192
          %s2381 = scalar_lea.vmem [#allocation8], %s2380
          %2383 = dma.done %s2378, 3072
        $region60: #{tpu_custom_call.1} parent=55 // pred_fallthru
          _
      $region56: #{tpu_custom_call.1} parent=5 // pred_fallthru
        _
    $region6: #{tpu_custom_call.1} parent=1 // loop_footer
      %s23 = sadd.s32 1, %s19
    $region7: #{tpu_custom_call.1} parent=1 // loop_footer_branch
      %18 = sbr.rel target = $region3
    $region8: #{tpu_custom_call.1} parent=1 // loop_exit
      _
    %2384 = vsyncpa [#allocation3], 1
    %s2385 = scalar_lea.sflag [#allocation3], 1
    %2386 = vsyncpa %s2385, 1
    %2387 = vsyncpa [#allocation6], 1
    %s2388 = scalar_lea.sflag [#allocation6], 1
    %2389 = vsyncpa %s2388, 1
    %2390 = vsyncpa [#allocation4], 1
    %s2391 = scalar_lea.sflag [#allocation4], 1
    %2392 = vsyncpa %s2391, 1

</llo_original>
